<compile_context>
chip_gen: v7x
topology: tpu7x:2x2x1
jax: 0.10.0
libtpu: 0.0.40
codegen_flags: <defaults>
</compile_context>

<pallas_src>
import jax
import jax.numpy as jnp
from jax.experimental import pallas as pl
from jax.experimental.pallas import tpu as pltpu

CAT_DIM = 1536            # cat_embeddings dim (768 text + 768 visual)
SE_HID = CAT_DIM // 8     # SE bottleneck (192) as in the reference
SE_HID_PAD = 256          # zero-padded bottleneck for lane-dense vregs / clean MXU K
EMB_DIM = 256             # output embedding dim
BN_EPS = 1e-5


# ----------------------------------------------------------------------------
# Pallas kernel: BN(eval) -> SE gate -> elementwise gate -> Linear(1536, 256)
# One grid step processes a [TILE_B, 1536] slab of the batch; weights resident.
# ----------------------------------------------------------------------------
def simnet_head_kernel(x_ref, bn_scale_ref, bn_shift_ref,
                       w1_ref, b1_ref, w2_ref, b2_ref,
                       we_ref, be_ref, out_ref):
    x = x_ref[...]                                                     # [tb, 1536] f32

    # BatchNorm1d eval mode folded into per-channel scale/shift (wrapper-side fold).
    xn = x * bn_scale_ref[...] + bn_shift_ref[...]                     # [tb, 1536] f32

    # Squeeze-excitation gate (MXU in bf16, f32 accumulation).
    xn_bf = xn.astype(jnp.bfloat16)
    h = jnp.dot(xn_bf, w1_ref[...],
                preferred_element_type=jnp.float32) + b1_ref[...]      # [tb, 256]
    h = jnp.maximum(h, 0.0)
    g = jnp.dot(h.astype(jnp.bfloat16), w2_ref[...],
                preferred_element_type=jnp.float32) + b2_ref[...]      # [tb, 1536]
    g = jax.nn.sigmoid(g)
    y = xn * g                                                         # [tb, 1536] f32

    # Final projection (self.embed).
    out = jnp.dot(y.astype(jnp.bfloat16), we_ref[...],
                  preferred_element_type=jnp.float32) + be_ref[...]    # [tb, 256]
    out_ref[...] = out.astype(out_ref.dtype)


def simnet_head(cat_embeddings, params, tile_b=512):
    """cat_embeddings: [B, 1536] float32 -> [B, 256] float32."""
    B = cat_embeddings.shape[0]

    # Batch tile: multiple of 8 sublanes, capped by (padded) batch and tile_b.
    tb = max(8, min(tile_b, ((B + 7) // 8) * 8))
    tb = (tb // 8) * 8
    n_tiles = pl.cdiv(B, tb)
    b_pad = n_tiles * tb
    x = cat_embeddings
    if b_pad != B:
        x = jnp.pad(x, ((0, b_pad - B), (0, 0)))

    # Fold BN (eval mode, running stats) into a single scale/shift per channel.
    inv_std = 1.0 / jnp.sqrt(params["bn_var"] + BN_EPS)
    bn_scale = (params["bn_gamma"] * inv_std)[None, :]                               # [1, 1536]
    bn_shift = (params["bn_beta"] - params["bn_mean"] * params["bn_gamma"] * inv_std)[None, :]

    ins = (
        x,
        bn_scale, bn_shift,
        params["se_w1"], params["se_b1"][None, :],
        params["se_w2"], params["se_b2"][None, :],
        params["embed_w"], params["embed_b"][None, :],
    )

    resident = lambda shape: pl.BlockSpec(shape, lambda i: (0, 0))
    in_specs = [
        pl.BlockSpec((tb, CAT_DIM), lambda i: (i, 0)),   # x: tiled over batch
        resident((1, CAT_DIM)),                          # bn_scale
        resident((1, CAT_DIM)),                          # bn_shift
        resident((CAT_DIM, SE_HID_PAD)),                 # se_w1 (bf16)
        resident((1, SE_HID_PAD)),                       # se_b1
        resident((SE_HID_PAD, CAT_DIM)),                 # se_w2 (bf16)
        resident((1, CAT_DIM)),                          # se_b2
        resident((CAT_DIM, EMB_DIM)),                    # embed_w (bf16)
        resident((1, EMB_DIM)),                          # embed_b
    ]
    out_spec = pl.BlockSpec((tb, EMB_DIM), lambda i: (i, 0))

    # Honest VMEM budget: bf16 weights + f32 small vectors + double-buffered
    # x/out tiles + the three live [tb, 1536] f32 temporaries, plus margin.
    weight_bytes = 2 * (2 * CAT_DIM * SE_HID_PAD + CAT_DIM * EMB_DIM)
    small_bytes = 4 * (4 * CAT_DIM + SE_HID_PAD + EMB_DIM)
    io_bytes = 2 * tb * (CAT_DIM + EMB_DIM) * 4
    tmp_bytes = 3 * tb * CAT_DIM * 4
    vmem_limit = int(weight_bytes + small_bytes + io_bytes + tmp_bytes + (4 << 20))

    out = pl.pallas_call(
        simnet_head_kernel,
        out_shape=jax.ShapeDtypeStruct((b_pad, EMB_DIM), jnp.float32),
        grid=(n_tiles,),
        in_specs=in_specs,
        out_specs=out_spec,
        compiler_params=pltpu.CompilerParams(
            dimension_semantics=("parallel",),
            vmem_limit_bytes=vmem_limit,
        ),
    )(*ins)
    return out[:B]


# ----------------------------------------------------------------------------
# Plain-JAX glue: deterministic parameters + MULTIBERT feature-extraction stub
# ----------------------------------------------------------------------------
def init_params(key):
    ks = jax.random.split(key, 8)
    scale = 0.02

    # SE gate linears, stored [in, out] (PyTorch Linear weight transposed),
    # bottleneck zero-padded 192 -> 256 (padded ReLU units output 0 and the
    # padded rows of se_w2 are 0, so the result is unchanged), cast to bf16.
    se_w1 = scale * jax.random.normal(ks[1], (CAT_DIM, SE_HID), jnp.float32)
    se_b1 = jnp.zeros((SE_HID,), jnp.float32)
    se_w2 = scale * jax.random.normal(ks[2], (SE_HID, CAT_DIM), jnp.float32)
    se_b2 = jnp.zeros((CAT_DIM,), jnp.float32)
    se_w1 = jnp.pad(se_w1, ((0, 0), (0, SE_HID_PAD - SE_HID))).astype(jnp.bfloat16)
    se_b1 = jnp.pad(se_b1, (0, SE_HID_PAD - SE_HID))
    se_w2 = jnp.pad(se_w2, ((0, SE_HID_PAD - SE_HID), (0, 0))).astype(jnp.bfloat16)

    embed_w = (scale * jax.random.normal(ks[3], (CAT_DIM, EMB_DIM), jnp.float32)
               ).astype(jnp.bfloat16)

    return {
        # SE_BN(1536): BatchNorm1d running stats + affine (kept f32)
        "bn_gamma": jnp.ones((CAT_DIM,), jnp.float32),
        "bn_beta": jnp.zeros((CAT_DIM,), jnp.float32),
        "bn_mean": scale * jax.random.normal(ks[0], (CAT_DIM,), jnp.float32),
        "bn_var": jnp.ones((CAT_DIM,), jnp.float32),
        # SE gate (bf16 weights, f32 biases)
        "se_w1": se_w1, "se_b1": se_b1,
        "se_w2": se_w2, "se_b2": se_b2,
        # self.embed = nn.Linear(1536, 256), stored [in, out], bf16 weight
        "embed_w": embed_w,
        "embed_b": jnp.zeros((EMB_DIM,), jnp.float32),
        # MULTIBERT stub parameters
        "tok_embed": scale * jax.random.normal(ks[4], (100, CAT_DIM // 2), jnp.float32),
        "frame_proj": scale * jax.random.normal(ks[5], (32, CAT_DIM // 2), jnp.float32),
    }


def extract_features_stub(text_ids, frames, params):
    # TODO(synk): stand-in for MULTIBERT.extract_features (definition not provided).
    text_feat = jnp.mean(params["tok_embed"][text_ids], axis=1)              # [B, 768]
    frame_feat = jnp.mean(frames @ params["frame_proj"], axis=1)             # [B, 768]
    return jnp.concatenate([text_feat, frame_feat], axis=-1)                 # [B, 1536]


def simnet_forward(text_ids, frames, params):
    cat_embeddings = extract_features_stub(text_ids, frames, params)
    return simnet_head(cat_embeddings, params)


if __name__ == "__main__":
    key = jax.random.PRNGKey(0)
    pkey, tkey, fkey = jax.random.split(key, 3)

    params = init_params(pkey)

    B, SEQ, N_FRAMES, FRAME_DIM = 8, 8, 4, 32
    text_ids = jax.random.randint(tkey, (B, SEQ), 0, 100, dtype=jnp.int32)
    frames = jax.random.normal(fkey, (B, N_FRAMES, FRAME_DIM), jnp.float32)

    out = simnet_forward(text_ids, frames, params)
    jax.block_until_ready(out)
    assert out.shape == (B, EMB_DIM) and out.dtype == jnp.float32
    print("KERNEL_OK")
</pallas_src>

<mosaic_0001>
module attributes {stable_mosaic.version = 11 : i64} {
  func.func @simnet_head_kernel(%arg0: i32, %arg1: memref<8x1536xf32, #tpu.memory_space<vmem>>, %arg2: memref<1x1536xf32, #tpu.memory_space<vmem>>, %arg3: memref<1x1536xf32, #tpu.memory_space<vmem>>, %arg4: memref<1536x256xbf16, #tpu.memory_space<vmem>>, %arg5: memref<1x256xf32, #tpu.memory_space<vmem>>, %arg6: memref<256x1536xbf16, #tpu.memory_space<vmem>>, %arg7: memref<1x1536xf32, #tpu.memory_space<vmem>>, %arg8: memref<1536x256xbf16, #tpu.memory_space<vmem>>, %arg9: memref<1x256xf32, #tpu.memory_space<vmem>>, %arg10: memref<8x256xf32, #tpu.memory_space<vmem>>) attributes {dimension_semantics = [#tpu.dimension_semantics<parallel>], iteration_bounds = array<i64: 1>, scalar_prefetch = 0 : i64, scratch_operands = 0 : i64, tpu.core_type = #tpu.core_type<tc>, window_params = [{transform_indices = @transform_0, window_bounds = array<i64: 8, 1536>}, {pipeline_mode = #tpu.pipeline_mode<synchronous>, transform_indices = @transform_1, window_bounds = array<i64: 1, 1536>}, {pipeline_mode = #tpu.pipeline_mode<synchronous>, transform_indices = @transform_2, window_bounds = array<i64: 1, 1536>}, {pipeline_mode = #tpu.pipeline_mode<synchronous>, transform_indices = @transform_3, window_bounds = array<i64: 1536, 256>}, {pipeline_mode = #tpu.pipeline_mode<synchronous>, transform_indices = @transform_4, window_bounds = array<i64: 1, 256>}, {pipeline_mode = #tpu.pipeline_mode<synchronous>, transform_indices = @transform_5, window_bounds = array<i64: 256, 1536>}, {pipeline_mode = #tpu.pipeline_mode<synchronous>, transform_indices = @transform_6, window_bounds = array<i64: 1, 1536>}, {pipeline_mode = #tpu.pipeline_mode<synchronous>, transform_indices = @transform_7, window_bounds = array<i64: 1536, 256>}, {pipeline_mode = #tpu.pipeline_mode<synchronous>, transform_indices = @transform_8, window_bounds = array<i64: 1, 256>}, {transform_indices = @transform_9, window_bounds = array<i64: 8, 256>}]} {
    %c0 = arith.constant 0 : index
    %c0_0 = arith.constant 0 : index
    %0 = vector.load %arg1[%c0, %c0_0] : memref<8x1536xf32, #tpu.memory_space<vmem>>, vector<8x1536xf32>
    %c0_1 = arith.constant 0 : index
    %c0_2 = arith.constant 0 : index
    %1 = vector.load %arg2[%c0_1, %c0_2] : memref<1x1536xf32, #tpu.memory_space<vmem>>, vector<1x1536xf32>
    %2 = vector.broadcast %1 : vector<1x1536xf32> to vector<8x1536xf32>
    %3 = arith.mulf %0, %2 : vector<8x1536xf32>
    %c0_3 = arith.constant 0 : index
    %c0_4 = arith.constant 0 : index
    %4 = vector.load %arg3[%c0_3, %c0_4] : memref<1x1536xf32, #tpu.memory_space<vmem>>, vector<1x1536xf32>
    %5 = vector.broadcast %4 : vector<1x1536xf32> to vector<8x1536xf32>
    %6 = arith.addf %3, %5 : vector<8x1536xf32>
    %7 = arith.truncf %6 : vector<8x1536xf32> to vector<8x1536xbf16>
    %c0_5 = arith.constant 0 : index
    %c0_6 = arith.constant 0 : index
    %8 = vector.load %arg4[%c0_5, %c0_6] : memref<1536x256xbf16, #tpu.memory_space<vmem>>, vector<1536x256xbf16>
    %cst = arith.constant dense<0.000000e+00> : vector<8x256xf32>
    %9 = tpu.matmul %7, %8, %cst {dimension_numbers = #tpu.dot_dimension_numbers<[1], [0], [0], [1], [0, 0, 1, 1], [], []>} : vector<8x1536xbf16>, vector<1536x256xbf16>, vector<8x256xf32> -> vector<8x256xf32>
    %c0_7 = arith.constant 0 : index
    %c0_8 = arith.constant 0 : index
    %10 = vector.load %arg5[%c0_7, %c0_8] : memref<1x256xf32, #tpu.memory_space<vmem>>, vector<1x256xf32>
    %11 = vector.broadcast %10 : vector<1x256xf32> to vector<8x256xf32>
    %12 = arith.addf %9, %11 : vector<8x256xf32>
    %cst_9 = arith.constant 0.000000e+00 : f32
    %13 = vector.broadcast %cst_9 : f32 to vector<8x256xf32>
    %14 = arith.maximumf %12, %13 : vector<8x256xf32>
    %15 = arith.truncf %14 : vector<8x256xf32> to vector<8x256xbf16>
    %c0_10 = arith.constant 0 : index
    %c0_11 = arith.constant 0 : index
    %16 = vector.load %arg6[%c0_10, %c0_11] : memref<256x1536xbf16, #tpu.memory_space<vmem>>, vector<256x1536xbf16>
    %cst_12 = arith.constant dense<0.000000e+00> : vector<8x1536xf32>
    %17 = tpu.matmul %15, %16, %cst_12 {dimension_numbers = #tpu.dot_dimension_numbers<[1], [0], [0], [1], [0, 0, 1, 1], [], []>} : vector<8x256xbf16>, vector<256x1536xbf16>, vector<8x1536xf32> -> vector<8x1536xf32>
    %c0_13 = arith.constant 0 : index
    %c0_14 = arith.constant 0 : index
    %18 = vector.load %arg7[%c0_13, %c0_14] : memref<1x1536xf32, #tpu.memory_space<vmem>>, vector<1x1536xf32>
    %19 = vector.broadcast %18 : vector<1x1536xf32> to vector<8x1536xf32>
    %20 = arith.addf %17, %19 : vector<8x1536xf32>
    %21 = arith.negf %20 : vector<8x1536xf32>
    %22 = math.exp %21 : vector<8x1536xf32>
    %cst_15 = arith.constant 1.000000e+00 : f32
    %23 = vector.broadcast %cst_15 : f32 to vector<8x1536xf32>
    %24 = arith.addf %23, %22 : vector<8x1536xf32>
    %25 = arith.divf %23, %24 : vector<8x1536xf32>
    %26 = arith.mulf %6, %25 : vector<8x1536xf32>
    %27 = arith.truncf %26 : vector<8x1536xf32> to vector<8x1536xbf16>
    %c0_16 = arith.constant 0 : index
    %c0_17 = arith.constant 0 : index
    %28 = vector.load %arg8[%c0_16, %c0_17] : memref<1536x256xbf16, #tpu.memory_space<vmem>>, vector<1536x256xbf16>
    %cst_18 = arith.constant dense<0.000000e+00> : vector<8x256xf32>
    %29 = tpu.matmul %27, %28, %cst_18 {dimension_numbers = #tpu.dot_dimension_numbers<[1], [0], [0], [1], [0, 0, 1, 1], [], []>} : vector<8x1536xbf16>, vector<1536x256xbf16>, vector<8x256xf32> -> vector<8x256xf32>
    %c0_19 = arith.constant 0 : index
    %c0_20 = arith.constant 0 : index
    %30 = vector.load %arg9[%c0_19, %c0_20] : memref<1x256xf32, #tpu.memory_space<vmem>>, vector<1x256xf32>
    %31 = vector.broadcast %30 : vector<1x256xf32> to vector<8x256xf32>
    %32 = arith.addf %29, %31 : vector<8x256xf32>
    %c0_21 = arith.constant 0 : index
    %c0_22 = arith.constant 0 : index
    %33 = vector.load %arg10[%c0_21, %c0_22] : memref<8x256xf32, #tpu.memory_space<vmem>>, vector<8x256xf32>
    tpu.vector_store %arg10[%c0_21, %c0_22], %32 {strides = array<i32>} : memref<8x256xf32, #tpu.memory_space<vmem>>, vector<8x256xf32>,
    return
  }
  func.func @transform_0(%arg0: i32) -> (i32, i32) {
    %c0_i32 = arith.constant 0 : i32
    %c0_i32_0 = arith.constant 0 : i32
    return %arg0, %c0_i32 : i32, i32
  }
  func.func @transform_1(%arg0: i32) -> (i32, i32) {
    %c0_i32 = arith.constant 0 : i32
    %c0_i32_0 = arith.constant 0 : i32
    %c0_i32_1 = arith.constant 0 : i32
    return %c0_i32, %c0_i32_0 : i32, i32
  }
  func.func @transform_2(%arg0: i32) -> (i32, i32) {
    %c0_i32 = arith.constant 0 : i32
    %c0_i32_0 = arith.constant 0 : i32
    %c0_i32_1 = arith.constant 0 : i32
    return %c0_i32, %c0_i32_0 : i32, i32
  }
  func.func @transform_3(%arg0: i32) -> (i32, i32) {
    %c0_i32 = arith.constant 0 : i32
    %c0_i32_0 = arith.constant 0 : i32
    %c0_i32_1 = arith.constant 0 : i32
    return %c0_i32, %c0_i32_0 : i32, i32
  }
  func.func @transform_4(%arg0: i32) -> (i32, i32) {
    %c0_i32 = arith.constant 0 : i32
    %c0_i32_0 = arith.constant 0 : i32
    %c0_i32_1 = arith.constant 0 : i32
    return %c0_i32, %c0_i32_0 : i32, i32
  }
  func.func @transform_5(%arg0: i32) -> (i32, i32) {
    %c0_i32 = arith.constant 0 : i32
    %c0_i32_0 = arith.constant 0 : i32
    %c0_i32_1 = arith.constant 0 : i32
    return %c0_i32, %c0_i32_0 : i32, i32
  }
  func.func @transform_6(%arg0: i32) -> (i32, i32) {
    %c0_i32 = arith.constant 0 : i32
    %c0_i32_0 = arith.constant 0 : i32
    %c0_i32_1 = arith.constant 0 : i32
    return %c0_i32, %c0_i32_0 : i32, i32
  }
  func.func @transform_7(%arg0: i32) -> (i32, i32) {
    %c0_i32 = arith.constant 0 : i32
    %c0_i32_0 = arith.constant 0 : i32
    %c0_i32_1 = arith.constant 0 : i32
    return %c0_i32, %c0_i32_0 : i32, i32
  }
  func.func @transform_8(%arg0: i32) -> (i32, i32) {
    %c0_i32 = arith.constant 0 : i32
    %c0_i32_0 = arith.constant 0 : i32
    %c0_i32_1 = arith.constant 0 : i32
    return %c0_i32, %c0_i32_0 : i32, i32
  }
  func.func @transform_9(%arg0: i32) -> (i32, i32) {
    %c0_i32 = arith.constant 0 : i32
    %c0_i32_0 = arith.constant 0 : i32
    return %arg0, %c0_i32 : i32, i32
  }
}

</mosaic_0001>

<llo_original>
// kernel: tpu_custom_call.1
$region0: #{tpu_custom_call.1}
  #allocation0 [shape = 'u32[]', space=smem, size = 0x4, offset = 0x4, fixed_abs, tag = 'smem constant byte address 0x4 - core index']
  #allocation1 [shape = 'u32[144,128]{1,0:T(1,128)}', space=vmem, size = 0x12000, scoped, tag = 'internal scratch']
  %s0 = inlined_call_operand.hbm [shape: f32[8,1536], index: 0, kind: input, shape index: {}]
  %s1 = inlined_call_operand.hbm [shape: f32[1,1536], index: 1, kind: input, shape index: {}]
  %s2 = inlined_call_operand.hbm [shape: f32[1,1536], index: 2, kind: input, shape index: {}]
  %s3 = inlined_call_operand.hbm [shape: bf16[1536,256], index: 3, kind: input, shape index: {}]
  %s4 = inlined_call_operand.vmem [shape: f32[1,256], index: 4, kind: input, shape index: {}]
  %s5 = inlined_call_operand.hbm [shape: bf16[256,1536], index: 5, kind: input, shape index: {}]
  %s6 = inlined_call_operand.vmem [shape: f32[1,1536], index: 6, kind: input, shape index: {}]
  %s7 = inlined_call_operand.hbm [shape: bf16[1536,256], index: 7, kind: input, shape index: {}]
  %s8 = inlined_call_operand.vmem [shape: f32[1,256], index: 8, kind: input, shape index: {}]
  %s9 = inlined_call_operand.hbm [shape: f32[8,256], index: 9, kind: output, shape index: {}]
  %s10 = sld [smem:[#allocation0]]
  $region70: #{tpu_custom_call.1} parent=0
    _
  %s12 = ssub.s32 1, %s10
  %s13 = scalar_select 0, %s12, %s10
  $region1: #{tpu_custom_call.1} parent=0
    #allocation2 [shape = 'u8[49152]{0}', space=vmem, size = 0xc000, scoped, tag = 'input window, operand 0, single buffered']
    #allocation3 [shape = 's32[1]{0}', space=sflag, size = 0x4, scoped, tag = 'scoped memory for tpu_custom_call.1']
    #allocation4 [shape = 's32[1]{0}', space=sflag, size = 0x4, scoped, tag = 'scoped memory for tpu_custom_call.1']
    #allocation5 [shape = 'u8[6144]{0}', space=vmem, size = 0x1800, scoped, tag = 'input window, operand 1, single buffered']
    #allocation6 [shape = 's32[1]{0}', space=sflag, size = 0x4, scoped, tag = 'scoped memory for tpu_custom_call.1']
    #allocation7 [shape = 'u8[6144]{0}', space=vmem, size = 0x1800, scoped, tag = 'input window, operand 2, single buffered']
    #allocation8 [shape = 'u8[786432]{0}', space=vmem, size = 0xc0000, scoped, tag = 'input window, operand 3, single buffered']
    #allocation9 [shape = 's32[1]{0}', space=sflag, size = 0x4, scoped, tag = 'scoped memory for tpu_custom_call.1']
    #allocation10 [shape = 'u8[786432]{0}', space=vmem, size = 0xc0000, scoped, tag = 'input window, operand 5, single buffered']
    #allocation11 [shape = 'u8[786432]{0}', space=vmem, size = 0xc0000, scoped, tag = 'input window, operand 7, single buffered']
    #allocation12 [shape = 's32[1]{0}', space=sflag, size = 0x4, scoped, tag = 'scoped memory for tpu_custom_call.1']
    #allocation13 [shape = 'u8[8192]{0}', space=vmem, size = 0x2000, scoped, tag = 'output window, operand 0, single buffered']
    %14 = vsyncpa [#allocation3], 0
    %15 = vsyncpa [#allocation6], 0
    %16 = vsyncpa [#allocation9], 0
    %17 = vsyncpa [#allocation12], 0
    %18 = vsyncpa [#allocation4], 0
    // Predicated region
    $region2: #{tpu_custom_call.1} parent=1 // pred_check
      _
    $region3: #{tpu_custom_call.1} parent=1 // pred_check_branch
      %20 = sbr.rel (0) target = $region5
    $region4: #{tpu_custom_call.1} parent=1 // pred_region
      %s22 = ssub.s32 1536, 1536
      %23 = vsyncadd [#allocation3], %s22
      %s25 = sshll.u32 [#allocation2], 4
      %s26 = int_to_ptr.vmem [resolvable:$true] %s25
      %28 = dma.hbm_to_vmem [thread:$0]  %s0, 1536, %s26, [#allocation3]
    $region5: #{tpu_custom_call.1} parent=1 // pred_fallthru
      _
    // Predicated region
    $region6: #{tpu_custom_call.1} parent=1 // pred_check
      _
    $region7: #{tpu_custom_call.1} parent=1 // pred_check_branch
      %30 = sbr.rel (0) target = $region9
    $region8: #{tpu_custom_call.1} parent=1 // pred_region
      %s32 = ssub.s32 192, 192
      %33 = vsyncadd [#allocation6], %s32
      %s35 = sshll.u32 [#allocation5], 4
      %s36 = int_to_ptr.vmem [resolvable:$true] %s35
      %38 = dma.hbm_to_vmem [thread:$0]  %s1, 192, %s36, [#allocation6]
    $region9: #{tpu_custom_call.1} parent=1 // pred_fallthru
      _
    // Predicated region
    $region10: #{tpu_custom_call.1} parent=1 // pred_check
      _
    $region11: #{tpu_custom_call.1} parent=1 // pred_check_branch
      %40 = sbr.rel (0) target = $region13
    $region12: #{tpu_custom_call.1} parent=1 // pred_region
      %s42 = ssub.s32 192, 192
      %43 = vsyncadd [#allocation6], %s42
      %s45 = sshll.u32 [#allocation7], 4
      %s46 = int_to_ptr.vmem [resolvable:$true] %s45
      %48 = dma.hbm_to_vmem [thread:$0]  %s2, 192, %s46, [#allocation6]
    $region13: #{tpu_custom_call.1} parent=1 // pred_fallthru
      _
    // Predicated region
    $region14: #{tpu_custom_call.1} parent=1 // pred_check
      _
    $region15: #{tpu_custom_call.1} parent=1 // pred_check_branch
      %50 = sbr.rel (0) target = $region17
    $region16: #{tpu_custom_call.1} parent=1 // pred_region
      %s52 = ssub.s32 24576, 24576
      %53 = vsyncadd [#allocation9], %s52
      %s54 = sshll.u32 [#allocation8], 4
      %s55 = int_to_ptr.vmem [resolvable:$true] %s54
      %60 = dma.hbm_to_vmem [thread:$0]  %s3, 24576, %s55, [#allocation9], 128, 128, 8
    $region17: #{tpu_custom_call.1} parent=1 // pred_fallthru
      _
    // Predicated region
    $region18: #{tpu_custom_call.1} parent=1 // pred_check
      _
    $region19: #{tpu_custom_call.1} parent=1 // pred_check_branch
      %62 = sbr.rel (0) target = $region21
    $region20: #{tpu_custom_call.1} parent=1 // pred_region
      _
    $region21: #{tpu_custom_call.1} parent=1 // pred_fallthru
      _
    // Predicated region
    $region22: #{tpu_custom_call.1} parent=1 // pred_check
      _
    $region23: #{tpu_custom_call.1} parent=1 // pred_check_branch
      %64 = sbr.rel (0) target = $region25
    $region24: #{tpu_custom_call.1} parent=1 // pred_region
      %s66 = ssub.s32 24576, 24576
      %67 = vsyncadd [#allocation9], %s66
      %s68 = sshll.u32 [#allocation10], 4
      %s69 = int_to_ptr.vmem [resolvable:$true] %s68
      %74 = dma.hbm_to_vmem [thread:$0]  %s5, 24576, %s69, [#allocation9], 768, 768, 48
    $region25: #{tpu_custom_call.1} parent=1 // pred_fallthru
      _
    // Predicated region
    $region26: #{tpu_custom_call.1} parent=1 // pred_check
      _
    $region27: #{tpu_custom_call.1} parent=1 // pred_check_branch
      %76 = sbr.rel (0) target = $region29
    $region28: #{tpu_custom_call.1} parent=1 // pred_region
      _
    $region29: #{tpu_custom_call.1} parent=1 // pred_fallthru
      _
    // Predicated region
    $region30: #{tpu_custom_call.1} parent=1 // pred_check
      _
    $region31: #{tpu_custom_call.1} parent=1 // pred_check_branch
      %78 = sbr.rel (0) target = $region33
    $region32: #{tpu_custom_call.1} parent=1 // pred_region
      %s80 = ssub.s32 24576, 24576
      %81 = vsyncadd [#allocation12], %s80
      %s82 = sshll.u32 [#allocation11], 4
      %s83 = int_to_ptr.vmem [resolvable:$true] %s82
      %88 = dma.hbm_to_vmem [thread:$0]  %s7, 24576, %s83, [#allocation12], 128, 128, 8
    $region33: #{tpu_custom_call.1} parent=1 // pred_fallthru
      _
    // Predicated region
    $region34: #{tpu_custom_call.1} parent=1 // pred_check
      _
    $region35: #{tpu_custom_call.1} parent=1 // pred_check_branch
      %90 = sbr.rel (0) target = $region37
    $region36: #{tpu_custom_call.1} parent=1 // pred_region
      _
    $region37: #{tpu_custom_call.1} parent=1 // pred_fallthru
      _
    // Predicated region
    $region38: #{tpu_custom_call.1} parent=1 // pred_check
      _
    $region39: #{tpu_custom_call.1} parent=1 // pred_check_branch
      %92 = sbr.rel (0) target = $region41
    $region40: #{tpu_custom_call.1} parent=1 // pred_region
      %93 = dma.done [#allocation3], 1536
    $region41: #{tpu_custom_call.1} parent=1 // pred_fallthru
      _
    // Predicated region
    $region42: #{tpu_custom_call.1} parent=1 // pred_check
      _
    $region43: #{tpu_custom_call.1} parent=1 // pred_check_branch
      %95 = sbr.rel (0) target = $region45
    $region44: #{tpu_custom_call.1} parent=1 // pred_region
      %96 = dma.done [#allocation6], 192
    $region45: #{tpu_custom_call.1} parent=1 // pred_fallthru
      _
    // Predicated region
    $region46: #{tpu_custom_call.1} parent=1 // pred_check
      _
    $region47: #{tpu_custom_call.1} parent=1 // pred_check_branch
      %98 = sbr.rel (0) target = $region49
    $region48: #{tpu_custom_call.1} parent=1 // pred_region
      %99 = dma.done [#allocation6], 192
    $region49: #{tpu_custom_call.1} parent=1 // pred_fallthru
      _
    // Predicated region
    $region50: #{tpu_custom_call.1} parent=1 // pred_check
      _
    $region51: #{tpu_custom_call.1} parent=1 // pred_check_branch
      %101 = sbr.rel (0) target = $region53
    $region52: #{tpu_custom_call.1} parent=1 // pred_region
      %102 = dma.done [#allocation9], 24576
    $region53: #{tpu_custom_call.1} parent=1 // pred_fallthru
      _
    // Predicated region
    $region54: #{tpu_custom_call.1} parent=1 // pred_check
      _
    $region55: #{tpu_custom_call.1} parent=1 // pred_check_branch
      %104 = sbr.rel (0) target = $region57
    $region56: #{tpu_custom_call.1} parent=1 // pred_region
      %105 = dma.done [#allocation9], 24576
    $region57: #{tpu_custom_call.1} parent=1 // pred_fallthru
      _
    // Predicated region
    $region58: #{tpu_custom_call.1} parent=1 // pred_check
      _
    $region59: #{tpu_custom_call.1} parent=1 // pred_check_branch
      %107 = sbr.rel (0) target = $region61
    $region60: #{tpu_custom_call.1} parent=1 // pred_region
      %108 = dma.done [#allocation12], 24576
    $region61: #{tpu_custom_call.1} parent=1 // pred_fallthru
      _
    %v109 = vld [vmem:[#allocation2] sm:$0xff]
    %v110 = vld [vmem:[#allocation2 + $0x8] sm:$0xff]
    %v111 = vld [vmem:[#allocation2 + $0x10] sm:$0xff]
    %v112 = vld [vmem:[#allocation2 + $0x18] sm:$0xff]
    %v113 = vld [vmem:[#allocation2 + $0x20] sm:$0xff]
    %v114 = vld [vmem:[#allocation2 + $0x28] sm:$0xff]
    %v115 = vld [vmem:[#allocation2 + $0x30] sm:$0xff]
    %v116 = vld [vmem:[#allocation2 + $0x38] sm:$0xff]
    %v117 = vld [vmem:[#allocation2 + $0x40] sm:$0xff]
    %v118 = vld [vmem:[#allocation2 + $0x48] sm:$0xff]
    %v119 = vld [vmem:[#allocation2 + $0x50] sm:$0xff]
    %v120 = vld [vmem:[#allocation2 + $0x58] sm:$0xff]
    %v121 = vld [vmem:[#allocation5] sm:$0xff]
    %v122 = vld [vmem:[#allocation5 + $0x8] sm:$0xf]
    %v125 = vlaneseq
    %v126 = vshrl.u32 %v125, 7
    %v127 = vsub.s32 0, %v126
    %v128 = vrot.slane %v121, %v127
    %v129 = vlaneseq
    %v130 = vshrl.u32 %v129, 7
    %v131 = vsub.s32 1, %v130
    %v132 = vrot.slane %v121, %v131
    %v133 = vlaneseq
    %v134 = vshrl.u32 %v133, 7
    %v135 = vsub.s32 2, %v134
    %v136 = vrot.slane %v121, %v135
    %v137 = vlaneseq
    %v138 = vshrl.u32 %v137, 7
    %v139 = vsub.s32 3, %v138
    %v140 = vrot.slane %v121, %v139
    %v141 = vlaneseq
    %v142 = vshrl.u32 %v141, 7
    %v143 = vsub.s32 4, %v142
    %v144 = vrot.slane %v121, %v143
    %v145 = vlaneseq
    %v146 = vshrl.u32 %v145, 7
    %v147 = vsub.s32 5, %v146
    %v148 = vrot.slane %v121, %v147
    %v149 = vlaneseq
    %v150 = vshrl.u32 %v149, 7
    %v151 = vsub.s32 6, %v150
    %v152 = vrot.slane %v121, %v151
    %v153 = vlaneseq
    %v154 = vshrl.u32 %v153, 7
    %v155 = vsub.s32 7, %v154
    %v156 = vrot.slane %v121, %v155
    %v157 = vlaneseq
    %v158 = vshrl.u32 %v157, 7
    %v159 = vsub.s32 0, %v158
    %v160 = vrot.slane %v122, %v159
    %v161 = vlaneseq
    %v162 = vshrl.u32 %v161, 7
    %v163 = vsub.s32 1, %v162
    %v164 = vrot.slane %v122, %v163
    %v165 = vlaneseq
    %v166 = vshrl.u32 %v165, 7
    %v167 = vsub.s32 2, %v166
    %v168 = vrot.slane %v122, %v167
    %v169 = vlaneseq
    %v170 = vshrl.u32 %v169, 7
    %v171 = vsub.s32 3, %v170
    %v172 = vrot.slane %v122, %v171
    %v185 = vmul.f32 %v109, %v128
    %v186 = vmul.f32 %v110, %v132
    %v187 = vmul.f32 %v111, %v136
    %v188 = vmul.f32 %v112, %v140
    %v189 = vmul.f32 %v113, %v144
    %v190 = vmul.f32 %v114, %v148
    %v191 = vmul.f32 %v115, %v152
    %v192 = vmul.f32 %v116, %v156
    %v193 = vmul.f32 %v117, %v160
    %v194 = vmul.f32 %v118, %v164
    %v195 = vmul.f32 %v119, %v168
    %v196 = vmul.f32 %v120, %v172
    %v197 = vld [vmem:[#allocation7] sm:$0xff]
    %v198 = vld [vmem:[#allocation7 + $0x8] sm:$0xf]
    %v201 = vlaneseq
    %v202 = vshrl.u32 %v201, 7
    %v203 = vsub.s32 0, %v202
    %v204 = vrot.slane %v197, %v203
    %v205 = vlaneseq
    %v206 = vshrl.u32 %v205, 7
    %v207 = vsub.s32 1, %v206
    %v208 = vrot.slane %v197, %v207
    %v209 = vlaneseq
    %v210 = vshrl.u32 %v209, 7
    %v211 = vsub.s32 2, %v210
    %v212 = vrot.slane %v197, %v211
    %v213 = vlaneseq
    %v214 = vshrl.u32 %v213, 7
    %v215 = vsub.s32 3, %v214
    %v216 = vrot.slane %v197, %v215
    %v217 = vlaneseq
    %v218 = vshrl.u32 %v217, 7
    %v219 = vsub.s32 4, %v218
    %v220 = vrot.slane %v197, %v219
    %v221 = vlaneseq
    %v222 = vshrl.u32 %v221, 7
    %v223 = vsub.s32 5, %v222
    %v224 = vrot.slane %v197, %v223
    %v225 = vlaneseq
    %v226 = vshrl.u32 %v225, 7
    %v227 = vsub.s32 6, %v226
    %v228 = vrot.slane %v197, %v227
    %v229 = vlaneseq
    %v230 = vshrl.u32 %v229, 7
    %v231 = vsub.s32 7, %v230
    %v232 = vrot.slane %v197, %v231
    %v233 = vlaneseq
    %v234 = vshrl.u32 %v233, 7
    %v235 = vsub.s32 0, %v234
    %v236 = vrot.slane %v198, %v235
    %v237 = vlaneseq
    %v238 = vshrl.u32 %v237, 7
    %v239 = vsub.s32 1, %v238
    %v240 = vrot.slane %v198, %v239
    %v241 = vlaneseq
    %v242 = vshrl.u32 %v241, 7
    %v243 = vsub.s32 2, %v242
    %v244 = vrot.slane %v198, %v243
    %v245 = vlaneseq
    %v246 = vshrl.u32 %v245, 7
    %v247 = vsub.s32 3, %v246
    %v248 = vrot.slane %v198, %v247
    %v261 = vadd.f32 %v185, %v204
    %v262 = vadd.f32 %v186, %v208
    %v263 = vadd.f32 %v187, %v212
    %v264 = vadd.f32 %v188, %v216
    %v265 = vadd.f32 %v189, %v220
    %v266 = vadd.f32 %v190, %v224
    %v267 = vadd.f32 %v191, %v228
    %v268 = vadd.f32 %v192, %v232
    %v269 = vadd.f32 %v193, %v236
    %v270 = vadd.f32 %v194, %v240
    %v271 = vadd.f32 %v195, %v244
    %v272 = vadd.f32 %v196, %v248
    %v273 = vpack.c.bf16 %v261, %v261
    %v274 = vpack.c.bf16 %v262, %v262
    %v275 = vpack.c.bf16 %v263, %v263
    %v276 = vpack.c.bf16 %v264, %v264
    %v277 = vpack.c.bf16 %v265, %v265
    %v278 = vpack.c.bf16 %v266, %v266
    %v279 = vpack.c.bf16 %v267, %v267
    %v280 = vpack.c.bf16 %v268, %v268
    %v281 = vpack.c.bf16 %v269, %v269
    %v282 = vpack.c.bf16 %v270, %v270
    %v283 = vpack.c.bf16 %v271, %v271
    %v284 = vpack.c.bf16 %v272, %v272
    %v285 = vld [vmem:[#allocation8] sm:$0xff]
    %v286 = vld [vmem:[#allocation8 + $0x8] sm:$0xff]
    %v287 = vld [vmem:[#allocation8 + $0x10] sm:$0xff]
    %v288 = vld [vmem:[#allocation8 + $0x18] sm:$0xff]
    %v289 = vld [vmem:[#allocation8 + $0x20] sm:$0xff]
    %v290 = vld [vmem:[#allocation8 + $0x28] sm:$0xff]
    %v291 = vld [vmem:[#allocation8 + $0x30] sm:$0xff]
    %v292 = vld [vmem:[#allocation8 + $0x38] sm:$0xff]
    %v293 = vld [vmem:[#allocation8 + $0x40] sm:$0xff]
    %v294 = vld [vmem:[#allocation8 + $0x48] sm:$0xff]
    %v295 = vld [vmem:[#allocation8 + $0x50] sm:$0xff]
    %v296 = vld [vmem:[#allocation8 + $0x58] sm:$0xff]
    %v297 = vld [vmem:[#allocation8 + $0x60] sm:$0xff]
    %v298 = vld [vmem:[#allocation8 + $0x68] sm:$0xff]
    %v299 = vld [vmem:[#allocation8 + $0x70] sm:$0xff]
    %v300 = vld [vmem:[#allocation8 + $0x78] sm:$0xff]
    %v301 = vld [vmem:[#allocation8 + $0x80] sm:$0xff]
    %v302 = vld [vmem:[#allocation8 + $0x88] sm:$0xff]
    %v303 = vld [vmem:[#allocation8 + $0x90] sm:$0xff]
    %v304 = vld [vmem:[#allocation8 + $0x98] sm:$0xff]
    %v305 = vld [vmem:[#allocation8 + $0xa0] sm:$0xff]
    %v306 = vld [vmem:[#allocation8 + $0xa8] sm:$0xff]
    %v307 = vld [vmem:[#allocation8 + $0xb0] sm:$0xff]
    %v308 = vld [vmem:[#allocation8 + $0xb8] sm:$0xff]
    %v309 = vld [vmem:[#allocation8 + $0xc0] sm:$0xff]
    %v310 = vld [vmem:[#allocation8 + $0xc8] sm:$0xff]
    %v311 = vld [vmem:[#allocation8 + $0xd0] sm:$0xff]
    %v312 = vld [vmem:[#allocation8 + $0xd8] sm:$0xff]
    %v313 = vld [vmem:[#allocation8 + $0xe0] sm:$0xff]
    %v314 = vld [vmem:[#allocation8 + $0xe8] sm:$0xff]
    %v315 = vld [vmem:[#allocation8 + $0xf0] sm:$0xff]
    %v316 = vld [vmem:[#allocation8 + $0xf8] sm:$0xff]
    %v317 = vld [vmem:[#allocation8 + $0x100] sm:$0xff]
    %v318 = vld [vmem:[#allocation8 + $0x108] sm:$0xff]
    %v319 = vld [vmem:[#allocation8 + $0x110] sm:$0xff]
    %v320 = vld [vmem:[#allocation8 + $0x118] sm:$0xff]
    %v321 = vld [vmem:[#allocation8 + $0x120] sm:$0xff]
    %v322 = vld [vmem:[#allocation8 + $0x128] sm:$0xff]
    %v323 = vld [vmem:[#allocation8 + $0x130] sm:$0xff]
    %v324 = vld [vmem:[#allocation8 + $0x138] sm:$0xff]
    %v325 = vld [vmem:[#allocation8 + $0x140] sm:$0xff]
    %v326 = vld [vmem:[#allocation8 + $0x148] sm:$0xff]
    %v327 = vld [vmem:[#allocation8 + $0x150] sm:$0xff]
    %v328 = vld [vmem:[#allocation8 + $0x158] sm:$0xff]
    %v329 = vld [vmem:[#allocation8 + $0x160] sm:$0xff]
    %v330 = vld [vmem:[#allocation8 + $0x168] sm:$0xff]
    %v331 = vld [vmem:[#allocation8 + $0x170] sm:$0xff]
    %v332 = vld [vmem:[#allocation8 + $0x178] sm:$0xff]
    %v333 = vld [vmem:[#allocation8 + $0x180] sm:$0xff]
    %v334 = vld [vmem:[#allocation8 + $0x188] sm:$0xff]
    %v335 = vld [vmem:[#allocation8 + $0x190] sm:$0xff]
    %v336 = vld [vmem:[#allocation8 + $0x198] sm:$0xff]
    %v337 = vld [vmem:[#allocation8 + $0x1a0] sm:$0xff]
    %v338 = vld [vmem:[#allocation8 + $0x1a8] sm:$0xff]
    %v339 = vld [vmem:[#allocation8 + $0x1b0] sm:$0xff]
    %v340 = vld [vmem:[#allocation8 + $0x1b8] sm:$0xff]
    %v341 = vld [vmem:[#allocation8 + $0x1c0] sm:$0xff]
    %v342 = vld [vmem:[#allocation8 + $0x1c8] sm:$0xff]
    %v343 = vld [vmem:[#allocation8 + $0x1d0] sm:$0xff]
    %v344 = vld [vmem:[#allocation8 + $0x1d8] sm:$0xff]
    %v345 = vld [vmem:[#allocation8 + $0x1e0] sm:$0xff]
    %v346 = vld [vmem:[#allocation8 + $0x1e8] sm:$0xff]
    %v347 = vld [vmem:[#allocation8 + $0x1f0] sm:$0xff]
    %v348 = vld [vmem:[#allocation8 + $0x1f8] sm:$0xff]
    %v349 = vld [vmem:[#allocation8 + $0x200] sm:$0xff]
    %v350 = vld [vmem:[#allocation8 + $0x208] sm:$0xff]
    %v351 = vld [vmem:[#allocation8 + $0x210] sm:$0xff]
    %v352 = vld [vmem:[#allocation8 + $0x218] sm:$0xff]
    %v353 = vld [vmem:[#allocation8 + $0x220] sm:$0xff]
    %v354 = vld [vmem:[#allocation8 + $0x228] sm:$0xff]
    %v355 = vld [vmem:[#allocation8 + $0x230] sm:$0xff]
    %v356 = vld [vmem:[#allocation8 + $0x238] sm:$0xff]
    %v357 = vld [vmem:[#allocation8 + $0x240] sm:$0xff]
    %v358 = vld [vmem:[#allocation8 + $0x248] sm:$0xff]
    %v359 = vld [vmem:[#allocation8 + $0x250] sm:$0xff]
    %v360 = vld [vmem:[#allocation8 + $0x258] sm:$0xff]
    %v361 = vld [vmem:[#allocation8 + $0x260] sm:$0xff]
    %v362 = vld [vmem:[#allocation8 + $0x268] sm:$0xff]
    %v363 = vld [vmem:[#allocation8 + $0x270] sm:$0xff]
    %v364 = vld [vmem:[#allocation8 + $0x278] sm:$0xff]
    %v365 = vld [vmem:[#allocation8 + $0x280] sm:$0xff]
    %v366 = vld [vmem:[#allocation8 + $0x288] sm:$0xff]
    %v367 = vld [vmem:[#allocation8 + $0x290] sm:$0xff]
    %v368 = vld [vmem:[#allocation8 + $0x298] sm:$0xff]
    %v369 = vld [vmem:[#allocation8 + $0x2a0] sm:$0xff]
    %v370 = vld [vmem:[#allocation8 + $0x2a8] sm:$0xff]
    %v371 = vld [vmem:[#allocation8 + $0x2b0] sm:$0xff]
    %v372 = vld [vmem:[#allocation8 + $0x2b8] sm:$0xff]
    %v373 = vld [vmem:[#allocation8 + $0x2c0] sm:$0xff]
    %v374 = vld [vmem:[#allocation8 + $0x2c8] sm:$0xff]
    %v375 = vld [vmem:[#allocation8 + $0x2d0] sm:$0xff]
    %v376 = vld [vmem:[#allocation8 + $0x2d8] sm:$0xff]
    %v377 = vld [vmem:[#allocation8 + $0x2e0] sm:$0xff]
    %v378 = vld [vmem:[#allocation8 + $0x2e8] sm:$0xff]
    %v379 = vld [vmem:[#allocation8 + $0x2f0] sm:$0xff]
    %v380 = vld [vmem:[#allocation8 + $0x2f8] sm:$0xff]
    %v381 = vld [vmem:[#allocation8 + $0x300] sm:$0xff]
    %v382 = vld [vmem:[#allocation8 + $0x308] sm:$0xff]
    %v383 = vld [vmem:[#allocation8 + $0x310] sm:$0xff]
    %v384 = vld [vmem:[#allocation8 + $0x318] sm:$0xff]
    %v385 = vld [vmem:[#allocation8 + $0x320] sm:$0xff]
    %v386 = vld [vmem:[#allocation8 + $0x328] sm:$0xff]
    %v387 = vld [vmem:[#allocation8 + $0x330] sm:$0xff]
    %v388 = vld [vmem:[#allocation8 + $0x338] sm:$0xff]
    %v389 = vld [vmem:[#allocation8 + $0x340] sm:$0xff]
    %v390 = vld [vmem:[#allocation8 + $0x348] sm:$0xff]
    %v391 = vld [vmem:[#allocation8 + $0x350] sm:$0xff]
    %v392 = vld [vmem:[#allocation8 + $0x358] sm:$0xff]
    %v393 = vld [vmem:[#allocation8 + $0x360] sm:$0xff]
    %v394 = vld [vmem:[#allocation8 + $0x368] sm:$0xff]
    %v395 = vld [vmem:[#allocation8 + $0x370] sm:$0xff]
    %v396 = vld [vmem:[#allocation8 + $0x378] sm:$0xff]
    %v397 = vld [vmem:[#allocation8 + $0x380] sm:$0xff]
    %v398 = vld [vmem:[#allocation8 + $0x388] sm:$0xff]
    %v399 = vld [vmem:[#allocation8 + $0x390] sm:$0xff]
    %v400 = vld [vmem:[#allocation8 + $0x398] sm:$0xff]
    %v401 = vld [vmem:[#allocation8 + $0x3a0] sm:$0xff]
    %v402 = vld [vmem:[#allocation8 + $0x3a8] sm:$0xff]
    %v403 = vld [vmem:[#allocation8 + $0x3b0] sm:$0xff]
    %v404 = vld [vmem:[#allocation8 + $0x3b8] sm:$0xff]
    %v405 = vld [vmem:[#allocation8 + $0x3c0] sm:$0xff]
    %v406 = vld [vmem:[#allocation8 + $0x3c8] sm:$0xff]
    %v407 = vld [vmem:[#allocation8 + $0x3d0] sm:$0xff]
    %v408 = vld [vmem:[#allocation8 + $0x3d8] sm:$0xff]
    %v409 = vld [vmem:[#allocation8 + $0x3e0] sm:$0xff]
    %v410 = vld [vmem:[#allocation8 + $0x3e8] sm:$0xff]
    %v411 = vld [vmem:[#allocation8 + $0x3f0] sm:$0xff]
    %v412 = vld [vmem:[#allocation8 + $0x3f8] sm:$0xff]
    %v413 = vld [vmem:[#allocation8 + $0x400] sm:$0xff]
    %v414 = vld [vmem:[#allocation8 + $0x408] sm:$0xff]
    %v415 = vld [vmem:[#allocation8 + $0x410] sm:$0xff]
    %v416 = vld [vmem:[#allocation8 + $0x418] sm:$0xff]
    %v417 = vld [vmem:[#allocation8 + $0x420] sm:$0xff]
    %v418 = vld [vmem:[#allocation8 + $0x428] sm:$0xff]
    %v419 = vld [vmem:[#allocation8 + $0x430] sm:$0xff]
    %v420 = vld [vmem:[#allocation8 + $0x438] sm:$0xff]
    %v421 = vld [vmem:[#allocation8 + $0x440] sm:$0xff]
    %v422 = vld [vmem:[#allocation8 + $0x448] sm:$0xff]
    %v423 = vld [vmem:[#allocation8 + $0x450] sm:$0xff]
    %v424 = vld [vmem:[#allocation8 + $0x458] sm:$0xff]
    %v425 = vld [vmem:[#allocation8 + $0x460] sm:$0xff]
    %v426 = vld [vmem:[#allocation8 + $0x468] sm:$0xff]
    %v427 = vld [vmem:[#allocation8 + $0x470] sm:$0xff]
    %v428 = vld [vmem:[#allocation8 + $0x478] sm:$0xff]
    %v429 = vld [vmem:[#allocation8 + $0x480] sm:$0xff]
    %v430 = vld [vmem:[#allocation8 + $0x488] sm:$0xff]
    %v431 = vld [vmem:[#allocation8 + $0x490] sm:$0xff]
    %v432 = vld [vmem:[#allocation8 + $0x498] sm:$0xff]
    %v433 = vld [vmem:[#allocation8 + $0x4a0] sm:$0xff]
    %v434 = vld [vmem:[#allocation8 + $0x4a8] sm:$0xff]
    %v435 = vld [vmem:[#allocation8 + $0x4b0] sm:$0xff]
    %v436 = vld [vmem:[#allocation8 + $0x4b8] sm:$0xff]
    %v437 = vld [vmem:[#allocation8 + $0x4c0] sm:$0xff]
    %v438 = vld [vmem:[#allocation8 + $0x4c8] sm:$0xff]
    %v439 = vld [vmem:[#allocation8 + $0x4d0] sm:$0xff]
    %v440 = vld [vmem:[#allocation8 + $0x4d8] sm:$0xff]
    %v441 = vld [vmem:[#allocation8 + $0x4e0] sm:$0xff]
    %v442 = vld [vmem:[#allocation8 + $0x4e8] sm:$0xff]
    %v443 = vld [vmem:[#allocation8 + $0x4f0] sm:$0xff]
    %v444 = vld [vmem:[#allocation8 + $0x4f8] sm:$0xff]
    %v445 = vld [vmem:[#allocation8 + $0x500] sm:$0xff]
    %v446 = vld [vmem:[#allocation8 + $0x508] sm:$0xff]
    %v447 = vld [vmem:[#allocation8 + $0x510] sm:$0xff]
    %v448 = vld [vmem:[#allocation8 + $0x518] sm:$0xff]
    %v449 = vld [vmem:[#allocation8 + $0x520] sm:$0xff]
    %v450 = vld [vmem:[#allocation8 + $0x528] sm:$0xff]
    %v451 = vld [vmem:[#allocation8 + $0x530] sm:$0xff]
    %v452 = vld [vmem:[#allocation8 + $0x538] sm:$0xff]
    %v453 = vld [vmem:[#allocation8 + $0x540] sm:$0xff]
    %v454 = vld [vmem:[#allocation8 + $0x548] sm:$0xff]
    %v455 = vld [vmem:[#allocation8 + $0x550] sm:$0xff]
    %v456 = vld [vmem:[#allocation8 + $0x558] sm:$0xff]
    %v457 = vld [vmem:[#allocation8 + $0x560] sm:$0xff]
    %v458 = vld [vmem:[#allocation8 + $0x568] sm:$0xff]
    %v459 = vld [vmem:[#allocation8 + $0x570] sm:$0xff]
    %v460 = vld [vmem:[#allocation8 + $0x578] sm:$0xff]
    %v461 = vld [vmem:[#allocation8 + $0x580] sm:$0xff]
    %v462 = vld [vmem:[#allocation8 + $0x588] sm:$0xff]
    %v463 = vld [vmem:[#allocation8 + $0x590] sm:$0xff]
    %v464 = vld [vmem:[#allocation8 + $0x598] sm:$0xff]
    %v465 = vld [vmem:[#allocation8 + $0x5a0] sm:$0xff]
    %v466 = vld [vmem:[#allocation8 + $0x5a8] sm:$0xff]
    %v467 = vld [vmem:[#allocation8 + $0x5b0] sm:$0xff]
    %v468 = vld [vmem:[#allocation8 + $0x5b8] sm:$0xff]
    %v469 = vld [vmem:[#allocation8 + $0x5c0] sm:$0xff]
    %v470 = vld [vmem:[#allocation8 + $0x5c8] sm:$0xff]
    %v471 = vld [vmem:[#allocation8 + $0x5d0] sm:$0xff]
    %v472 = vld [vmem:[#allocation8 + $0x5d8] sm:$0xff]
    %v473 = vld [vmem:[#allocation8 + $0x5e0] sm:$0xff]
    %v474 = vld [vmem:[#allocation8 + $0x5e8] sm:$0xff]
    %v475 = vld [vmem:[#allocation8 + $0x5f0] sm:$0xff]
    %v476 = vld [vmem:[#allocation8 + $0x5f8] sm:$0xff]
    %v477 = vld [vmem:[%s4] sm:$0x3]
    %v479 = vlaneseq
    %v480 = vshrl.u32 %v479, 7
    %v481 = vsub.s32 0, %v480
    %v482 = vrot.slane %v477, %v481
    %v483 = vlaneseq
    %v484 = vshrl.u32 %v483, 7
    %v485 = vsub.s32 1, %v484
    %v486 = vrot.slane %v477, %v485
    %v681 = vunpack.c.l.b16 %v285
    %v682 = vunpack.c.h.b16 %v285
    %v683 = vunpack.c.l.b16 %v286
    %v684 = vunpack.c.h.b16 %v286
    %v685 = vunpack.c.l.b16 %v287
    %v686 = vunpack.c.h.b16 %v287
    %v687 = vunpack.c.l.b16 %v288
    %v688 = vunpack.c.h.b16 %v288
    %v689 = vunpack.c.l.b16 %v289
    %v690 = vunpack.c.h.b16 %v289
    %v691 = vunpack.c.l.b16 %v290
    %v692 = vunpack.c.h.b16 %v290
    %v693 = vunpack.c.l.b16 %v291
    %v694 = vunpack.c.h.b16 %v291
    %v695 = vunpack.c.l.b16 %v292
    %v696 = vunpack.c.h.b16 %v292
    %v697 = vunpack.c.l.b16 %v293
    %v698 = vunpack.c.h.b16 %v293
    %v699 = vunpack.c.l.b16 %v294
    %v700 = vunpack.c.h.b16 %v294
    %v701 = vunpack.c.l.b16 %v295
    %v702 = vunpack.c.h.b16 %v295
    %v703 = vunpack.c.l.b16 %v296
    %v704 = vunpack.c.h.b16 %v296
    %v705 = vunpack.c.l.b16 %v297
    %v706 = vunpack.c.h.b16 %v297
    %v707 = vunpack.c.l.b16 %v298
    %v708 = vunpack.c.h.b16 %v298
    %v709 = vunpack.c.l.b16 %v299
    %v710 = vunpack.c.h.b16 %v299
    %v711 = vunpack.c.l.b16 %v300
    %v712 = vunpack.c.h.b16 %v300
    %v713 = vunpack.c.l.b16 %v301
    %v714 = vunpack.c.h.b16 %v301
    %v715 = vunpack.c.l.b16 %v302
    %v716 = vunpack.c.h.b16 %v302
    %v717 = vunpack.c.l.b16 %v303
    %v718 = vunpack.c.h.b16 %v303
    %v719 = vunpack.c.l.b16 %v304
    %v720 = vunpack.c.h.b16 %v304
    %v721 = vunpack.c.l.b16 %v305
    %v722 = vunpack.c.h.b16 %v305
    %v723 = vunpack.c.l.b16 %v306
    %v724 = vunpack.c.h.b16 %v306
    %v725 = vunpack.c.l.b16 %v307
    %v726 = vunpack.c.h.b16 %v307
    %v727 = vunpack.c.l.b16 %v308
    %v728 = vunpack.c.h.b16 %v308
    %v729 = vunpack.c.l.b16 %v309
    %v730 = vunpack.c.h.b16 %v309
    %v731 = vunpack.c.l.b16 %v310
    %v732 = vunpack.c.h.b16 %v310
    %v733 = vunpack.c.l.b16 %v311
    %v734 = vunpack.c.h.b16 %v311
    %v735 = vunpack.c.l.b16 %v312
    %v736 = vunpack.c.h.b16 %v312
    %v737 = vunpack.c.l.b16 %v313
    %v738 = vunpack.c.h.b16 %v313
    %v739 = vunpack.c.l.b16 %v314
    %v740 = vunpack.c.h.b16 %v314
    %v741 = vunpack.c.l.b16 %v315
    %v742 = vunpack.c.h.b16 %v315
    %v743 = vunpack.c.l.b16 %v316
    %v744 = vunpack.c.h.b16 %v316
    %v745 = vunpack.c.l.b16 %v317
    %v746 = vunpack.c.h.b16 %v317
    %v747 = vunpack.c.l.b16 %v318
    %v748 = vunpack.c.h.b16 %v318
    %v749 = vunpack.c.l.b16 %v319
    %v750 = vunpack.c.h.b16 %v319
    %v751 = vunpack.c.l.b16 %v320
    %v752 = vunpack.c.h.b16 %v320
    %v753 = vunpack.c.l.b16 %v321
    %v754 = vunpack.c.h.b16 %v321
    %v755 = vunpack.c.l.b16 %v322
    %v756 = vunpack.c.h.b16 %v322
    %v757 = vunpack.c.l.b16 %v323
    %v758 = vunpack.c.h.b16 %v323
    %v759 = vunpack.c.l.b16 %v324
    %v760 = vunpack.c.h.b16 %v324
    %v761 = vunpack.c.l.b16 %v325
    %v762 = vunpack.c.h.b16 %v325
    %v763 = vunpack.c.l.b16 %v326
    %v764 = vunpack.c.h.b16 %v326
    %v765 = vunpack.c.l.b16 %v327
    %v766 = vunpack.c.h.b16 %v327
    %v767 = vunpack.c.l.b16 %v328
    %v768 = vunpack.c.h.b16 %v328
    %v769 = vunpack.c.l.b16 %v329
    %v770 = vunpack.c.h.b16 %v329
    %v771 = vunpack.c.l.b16 %v330
    %v772 = vunpack.c.h.b16 %v330
    %v773 = vunpack.c.l.b16 %v331
    %v774 = vunpack.c.h.b16 %v331
    %v775 = vunpack.c.l.b16 %v332
    %v776 = vunpack.c.h.b16 %v332
    %v777 = vunpack.c.l.b16 %v333
    %v778 = vunpack.c.h.b16 %v333
    %v779 = vunpack.c.l.b16 %v334
    %v780 = vunpack.c.h.b16 %v334
    %v781 = vunpack.c.l.b16 %v335
    %v782 = vunpack.c.h.b16 %v335
    %v783 = vunpack.c.l.b16 %v336
    %v784 = vunpack.c.h.b16 %v336
    %v785 = vunpack.c.l.b16 %v337
    %v786 = vunpack.c.h.b16 %v337
    %v787 = vunpack.c.l.b16 %v338
    %v788 = vunpack.c.h.b16 %v338
    %v789 = vunpack.c.l.b16 %v339
    %v790 = vunpack.c.h.b16 %v339
    %v791 = vunpack.c.l.b16 %v340
    %v792 = vunpack.c.h.b16 %v340
    %v793 = vunpack.c.l.b16 %v341
    %v794 = vunpack.c.h.b16 %v341
    %v795 = vunpack.c.l.b16 %v342
    %v796 = vunpack.c.h.b16 %v342
    %v797 = vunpack.c.l.b16 %v343
    %v798 = vunpack.c.h.b16 %v343
    %v799 = vunpack.c.l.b16 %v344
    %v800 = vunpack.c.h.b16 %v344
    %v801 = vunpack.c.l.b16 %v345
    %v802 = vunpack.c.h.b16 %v345
    %v803 = vunpack.c.l.b16 %v346
    %v804 = vunpack.c.h.b16 %v346
    %v805 = vunpack.c.l.b16 %v347
    %v806 = vunpack.c.h.b16 %v347
    %v807 = vunpack.c.l.b16 %v348
    %v808 = vunpack.c.h.b16 %v348
    %v809 = vunpack.c.l.b16 %v349
    %v810 = vunpack.c.h.b16 %v349
    %v811 = vunpack.c.l.b16 %v350
    %v812 = vunpack.c.h.b16 %v350
    %v813 = vunpack.c.l.b16 %v351
    %v814 = vunpack.c.h.b16 %v351
    %v815 = vunpack.c.l.b16 %v352
    %v816 = vunpack.c.h.b16 %v352
    %v817 = vunpack.c.l.b16 %v353
    %v818 = vunpack.c.h.b16 %v353
    %v819 = vunpack.c.l.b16 %v354
    %v820 = vunpack.c.h.b16 %v354
    %v821 = vunpack.c.l.b16 %v355
    %v822 = vunpack.c.h.b16 %v355
    %v823 = vunpack.c.l.b16 %v356
    %v824 = vunpack.c.h.b16 %v356
    %v825 = vunpack.c.l.b16 %v357
    %v826 = vunpack.c.h.b16 %v357
    %v827 = vunpack.c.l.b16 %v358
    %v828 = vunpack.c.h.b16 %v358
    %v829 = vunpack.c.l.b16 %v359
    %v830 = vunpack.c.h.b16 %v359
    %v831 = vunpack.c.l.b16 %v360
    %v832 = vunpack.c.h.b16 %v360
    %v833 = vunpack.c.l.b16 %v361
    %v834 = vunpack.c.h.b16 %v361
    %v835 = vunpack.c.l.b16 %v362
    %v836 = vunpack.c.h.b16 %v362
    %v837 = vunpack.c.l.b16 %v363
    %v838 = vunpack.c.h.b16 %v363
    %v839 = vunpack.c.l.b16 %v364
    %v840 = vunpack.c.h.b16 %v364
    %v841 = vunpack.c.l.b16 %v365
    %v842 = vunpack.c.h.b16 %v365
    %v843 = vunpack.c.l.b16 %v366
    %v844 = vunpack.c.h.b16 %v366
    %v845 = vunpack.c.l.b16 %v367
    %v846 = vunpack.c.h.b16 %v367
    %v847 = vunpack.c.l.b16 %v368
    %v848 = vunpack.c.h.b16 %v368
    %v849 = vunpack.c.l.b16 %v369
    %v850 = vunpack.c.h.b16 %v369
    %v851 = vunpack.c.l.b16 %v370
    %v852 = vunpack.c.h.b16 %v370
    %v853 = vunpack.c.l.b16 %v371
    %v854 = vunpack.c.h.b16 %v371
    %v855 = vunpack.c.l.b16 %v372
    %v856 = vunpack.c.h.b16 %v372
    %v857 = vunpack.c.l.b16 %v373
    %v858 = vunpack.c.h.b16 %v373
    %v859 = vunpack.c.l.b16 %v374
    %v860 = vunpack.c.h.b16 %v374
    %v861 = vunpack.c.l.b16 %v375
    %v862 = vunpack.c.h.b16 %v375
    %v863 = vunpack.c.l.b16 %v376
    %v864 = vunpack.c.h.b16 %v376
    %v865 = vunpack.c.l.b16 %v377
    %v866 = vunpack.c.h.b16 %v377
    %v867 = vunpack.c.l.b16 %v378
    %v868 = vunpack.c.h.b16 %v378
    %v869 = vunpack.c.l.b16 %v379
    %v870 = vunpack.c.h.b16 %v379
    %v871 = vunpack.c.l.b16 %v380
    %v872 = vunpack.c.h.b16 %v380
    %v873 = vunpack.c.l.b16 %v381
    %v874 = vunpack.c.h.b16 %v381
    %v875 = vunpack.c.l.b16 %v382
    %v876 = vunpack.c.h.b16 %v382
    %v877 = vunpack.c.l.b16 %v383
    %v878 = vunpack.c.h.b16 %v383
    %v879 = vunpack.c.l.b16 %v384
    %v880 = vunpack.c.h.b16 %v384
    %v881 = vunpack.c.l.b16 %v385
    %v882 = vunpack.c.h.b16 %v385
    %v883 = vunpack.c.l.b16 %v386
    %v884 = vunpack.c.h.b16 %v386
    %v885 = vunpack.c.l.b16 %v387
    %v886 = vunpack.c.h.b16 %v387
    %v887 = vunpack.c.l.b16 %v388
    %v888 = vunpack.c.h.b16 %v388
    %v889 = vunpack.c.l.b16 %v389
    %v890 = vunpack.c.h.b16 %v389
    %v891 = vunpack.c.l.b16 %v390
    %v892 = vunpack.c.h.b16 %v390
    %v893 = vunpack.c.l.b16 %v391
    %v894 = vunpack.c.h.b16 %v391
    %v895 = vunpack.c.l.b16 %v392
    %v896 = vunpack.c.h.b16 %v392
    %v897 = vunpack.c.l.b16 %v393
    %v898 = vunpack.c.h.b16 %v393
    %v899 = vunpack.c.l.b16 %v394
    %v900 = vunpack.c.h.b16 %v394
    %v901 = vunpack.c.l.b16 %v395
    %v902 = vunpack.c.h.b16 %v395
    %v903 = vunpack.c.l.b16 %v396
    %v904 = vunpack.c.h.b16 %v396
    %v905 = vunpack.c.l.b16 %v397
    %v906 = vunpack.c.h.b16 %v397
    %v907 = vunpack.c.l.b16 %v398
    %v908 = vunpack.c.h.b16 %v398
    %v909 = vunpack.c.l.b16 %v399
    %v910 = vunpack.c.h.b16 %v399
    %v911 = vunpack.c.l.b16 %v400
    %v912 = vunpack.c.h.b16 %v400
    %v913 = vunpack.c.l.b16 %v401
    %v914 = vunpack.c.h.b16 %v401
    %v915 = vunpack.c.l.b16 %v402
    %v916 = vunpack.c.h.b16 %v402
    %v917 = vunpack.c.l.b16 %v403
    %v918 = vunpack.c.h.b16 %v403
    %v919 = vunpack.c.l.b16 %v404
    %v920 = vunpack.c.h.b16 %v404
    %v921 = vunpack.c.l.b16 %v405
    %v922 = vunpack.c.h.b16 %v405
    %v923 = vunpack.c.l.b16 %v406
    %v924 = vunpack.c.h.b16 %v406
    %v925 = vunpack.c.l.b16 %v407
    %v926 = vunpack.c.h.b16 %v407
    %v927 = vunpack.c.l.b16 %v408
    %v928 = vunpack.c.h.b16 %v408
    %v929 = vunpack.c.l.b16 %v409
    %v930 = vunpack.c.h.b16 %v409
    %v931 = vunpack.c.l.b16 %v410
    %v932 = vunpack.c.h.b16 %v410
    %v933 = vunpack.c.l.b16 %v411
    %v934 = vunpack.c.h.b16 %v411
    %v935 = vunpack.c.l.b16 %v412
    %v936 = vunpack.c.h.b16 %v412
    %v937 = vunpack.c.l.b16 %v413
    %v938 = vunpack.c.h.b16 %v413
    %v939 = vunpack.c.l.b16 %v414
    %v940 = vunpack.c.h.b16 %v414
    %v941 = vunpack.c.l.b16 %v415
    %v942 = vunpack.c.h.b16 %v415
    %v943 = vunpack.c.l.b16 %v416
    %v944 = vunpack.c.h.b16 %v416
    %v945 = vunpack.c.l.b16 %v417
    %v946 = vunpack.c.h.b16 %v417
    %v947 = vunpack.c.l.b16 %v418
    %v948 = vunpack.c.h.b16 %v418
    %v949 = vunpack.c.l.b16 %v419
    %v950 = vunpack.c.h.b16 %v419
    %v951 = vunpack.c.l.b16 %v420
    %v952 = vunpack.c.h.b16 %v420
    %v953 = vunpack.c.l.b16 %v421
    %v954 = vunpack.c.h.b16 %v421
    %v955 = vunpack.c.l.b16 %v422
    %v956 = vunpack.c.h.b16 %v422
    %v957 = vunpack.c.l.b16 %v423
    %v958 = vunpack.c.h.b16 %v423
    %v959 = vunpack.c.l.b16 %v424
    %v960 = vunpack.c.h.b16 %v424
    %v961 = vunpack.c.l.b16 %v425
    %v962 = vunpack.c.h.b16 %v425
    %v963 = vunpack.c.l.b16 %v426
    %v964 = vunpack.c.h.b16 %v426
    %v965 = vunpack.c.l.b16 %v427
    %v966 = vunpack.c.h.b16 %v427
    %v967 = vunpack.c.l.b16 %v428
    %v968 = vunpack.c.h.b16 %v428
    %v969 = vunpack.c.l.b16 %v429
    %v970 = vunpack.c.h.b16 %v429
    %v971 = vunpack.c.l.b16 %v430
    %v972 = vunpack.c.h.b16 %v430
    %v973 = vunpack.c.l.b16 %v431
    %v974 = vunpack.c.h.b16 %v431
    %v975 = vunpack.c.l.b16 %v432
    %v976 = vunpack.c.h.b16 %v432
    %v977 = vunpack.c.l.b16 %v433
    %v978 = vunpack.c.h.b16 %v433
    %v979 = vunpack.c.l.b16 %v434
    %v980 = vunpack.c.h.b16 %v434
    %v981 = vunpack.c.l.b16 %v435
    %v982 = vunpack.c.h.b16 %v435
    %v983 = vunpack.c.l.b16 %v436
    %v984 = vunpack.c.h.b16 %v436
    %v985 = vunpack.c.l.b16 %v437
    %v986 = vunpack.c.h.b16 %v437
    %v987 = vunpack.c.l.b16 %v438
    %v988 = vunpack.c.h.b16 %v438
    %v989 = vunpack.c.l.b16 %v439
    %v990 = vunpack.c.h.b16 %v439
    %v991 = vunpack.c.l.b16 %v440
    %v992 = vunpack.c.h.b16 %v440
    %v993 = vunpack.c.l.b16 %v441
    %v994 = vunpack.c.h.b16 %v441
    %v995 = vunpack.c.l.b16 %v442
    %v996 = vunpack.c.h.b16 %v442
    %v997 = vunpack.c.l.b16 %v443
    %v998 = vunpack.c.h.b16 %v443
    %v999 = vunpack.c.l.b16 %v444
    %v1000 = vunpack.c.h.b16 %v444
    %v1001 = vunpack.c.l.b16 %v445
    %v1002 = vunpack.c.h.b16 %v445
    %v1003 = vunpack.c.l.b16 %v446
    %v1004 = vunpack.c.h.b16 %v446
    %v1005 = vunpack.c.l.b16 %v447
    %v1006 = vunpack.c.h.b16 %v447
    %v1007 = vunpack.c.l.b16 %v448
    %v1008 = vunpack.c.h.b16 %v448
    %v1009 = vunpack.c.l.b16 %v449
    %v1010 = vunpack.c.h.b16 %v449
    %v1011 = vunpack.c.l.b16 %v450
    %v1012 = vunpack.c.h.b16 %v450
    %v1013 = vunpack.c.l.b16 %v451
    %v1014 = vunpack.c.h.b16 %v451
    %v1015 = vunpack.c.l.b16 %v452
    %v1016 = vunpack.c.h.b16 %v452
    %v1017 = vunpack.c.l.b16 %v453
    %v1018 = vunpack.c.h.b16 %v453
    %v1019 = vunpack.c.l.b16 %v454
    %v1020 = vunpack.c.h.b16 %v454
    %v1021 = vunpack.c.l.b16 %v455
    %v1022 = vunpack.c.h.b16 %v455
    %v1023 = vunpack.c.l.b16 %v456
    %v1024 = vunpack.c.h.b16 %v456
    %v1025 = vunpack.c.l.b16 %v457
    %v1026 = vunpack.c.h.b16 %v457
    %v1027 = vunpack.c.l.b16 %v458
    %v1028 = vunpack.c.h.b16 %v458
    %v1029 = vunpack.c.l.b16 %v459
    %v1030 = vunpack.c.h.b16 %v459
    %v1031 = vunpack.c.l.b16 %v460
    %v1032 = vunpack.c.h.b16 %v460
    %v1033 = vunpack.c.l.b16 %v461
    %v1034 = vunpack.c.h.b16 %v461
    %v1035 = vunpack.c.l.b16 %v462
    %v1036 = vunpack.c.h.b16 %v462
    %v1037 = vunpack.c.l.b16 %v463
    %v1038 = vunpack.c.h.b16 %v463
    %v1039 = vunpack.c.l.b16 %v464
    %v1040 = vunpack.c.h.b16 %v464
    %v1041 = vunpack.c.l.b16 %v465
    %v1042 = vunpack.c.h.b16 %v465
    %v1043 = vunpack.c.l.b16 %v466
    %v1044 = vunpack.c.h.b16 %v466
    %v1045 = vunpack.c.l.b16 %v467
    %v1046 = vunpack.c.h.b16 %v467
    %v1047 = vunpack.c.l.b16 %v468
    %v1048 = vunpack.c.h.b16 %v468
    %v1049 = vunpack.c.l.b16 %v469
    %v1050 = vunpack.c.h.b16 %v469
    %v1051 = vunpack.c.l.b16 %v470
    %v1052 = vunpack.c.h.b16 %v470
    %v1053 = vunpack.c.l.b16 %v471
    %v1054 = vunpack.c.h.b16 %v471
    %v1055 = vunpack.c.l.b16 %v472
    %v1056 = vunpack.c.h.b16 %v472
    %v1057 = vunpack.c.l.b16 %v473
    %v1058 = vunpack.c.h.b16 %v473
    %v1059 = vunpack.c.l.b16 %v474
    %v1060 = vunpack.c.h.b16 %v474
    %v1061 = vunpack.c.l.b16 %v475
    %v1062 = vunpack.c.h.b16 %v475
    %v1063 = vunpack.c.l.b16 %v476
    %v1064 = vunpack.c.h.b16 %v476
    %v1065 = vpack.c.b16 %v683, %v681
    %v1066 = vpack.c.b16 %v684, %v682
    %v1067 = vpack.c.b16 %v687, %v685
    %v1068 = vpack.c.b16 %v688, %v686
    %v1069 = vpack.c.b16 %v691, %v689
    %v1070 = vpack.c.b16 %v692, %v690
    %v1071 = vpack.c.b16 %v695, %v693
    %v1072 = vpack.c.b16 %v696, %v694
    %v1073 = vpack.c.b16 %v699, %v697
    %v1074 = vpack.c.b16 %v700, %v698
    %v1075 = vpack.c.b16 %v703, %v701
    %v1076 = vpack.c.b16 %v704, %v702
    %v1077 = vpack.c.b16 %v707, %v705
    %v1078 = vpack.c.b16 %v708, %v706
    %v1079 = vpack.c.b16 %v711, %v709
    %v1080 = vpack.c.b16 %v712, %v710
    %v1081 = vpack.c.b16 %v715, %v713
    %v1082 = vpack.c.b16 %v716, %v714
    %v1083 = vpack.c.b16 %v719, %v717
    %v1084 = vpack.c.b16 %v720, %v718
    %v1085 = vpack.c.b16 %v723, %v721
    %v1086 = vpack.c.b16 %v724, %v722
    %v1087 = vpack.c.b16 %v727, %v725
    %v1088 = vpack.c.b16 %v728, %v726
    %v1089 = vpack.c.b16 %v731, %v729
    %v1090 = vpack.c.b16 %v732, %v730
    %v1091 = vpack.c.b16 %v735, %v733
    %v1092 = vpack.c.b16 %v736, %v734
    %v1093 = vpack.c.b16 %v739, %v737
    %v1094 = vpack.c.b16 %v740, %v738
    %v1095 = vpack.c.b16 %v743, %v741
    %v1096 = vpack.c.b16 %v744, %v742
    %v1097 = vpack.c.b16 %v747, %v745
    %v1098 = vpack.c.b16 %v748, %v746
    %v1099 = vpack.c.b16 %v751, %v749
    %v1100 = vpack.c.b16 %v752, %v750
    %v1101 = vpack.c.b16 %v755, %v753
    %v1102 = vpack.c.b16 %v756, %v754
    %v1103 = vpack.c.b16 %v759, %v757
    %v1104 = vpack.c.b16 %v760, %v758
    %v1105 = vpack.c.b16 %v763, %v761
    %v1106 = vpack.c.b16 %v764, %v762
    %v1107 = vpack.c.b16 %v767, %v765
    %v1108 = vpack.c.b16 %v768, %v766
    %v1109 = vpack.c.b16 %v771, %v769
    %v1110 = vpack.c.b16 %v772, %v770
    %v1111 = vpack.c.b16 %v775, %v773
    %v1112 = vpack.c.b16 %v776, %v774
    %v1113 = vpack.c.b16 %v779, %v777
    %v1114 = vpack.c.b16 %v780, %v778
    %v1115 = vpack.c.b16 %v783, %v781
    %v1116 = vpack.c.b16 %v784, %v782
    %v1117 = vpack.c.b16 %v787, %v785
    %v1118 = vpack.c.b16 %v788, %v786
    %v1119 = vpack.c.b16 %v791, %v789
    %v1120 = vpack.c.b16 %v792, %v790
    %v1121 = vpack.c.b16 %v795, %v793
    %v1122 = vpack.c.b16 %v796, %v794
    %v1123 = vpack.c.b16 %v799, %v797
    %v1124 = vpack.c.b16 %v800, %v798
    %v1125 = vpack.c.b16 %v803, %v801
    %v1126 = vpack.c.b16 %v804, %v802
    %v1127 = vpack.c.b16 %v807, %v805
    %v1128 = vpack.c.b16 %v808, %v806
    %v1129 = vpack.c.b16 %v811, %v809
    %v1130 = vpack.c.b16 %v812, %v810
    %v1131 = vpack.c.b16 %v815, %v813
    %v1132 = vpack.c.b16 %v816, %v814
    %v1133 = vpack.c.b16 %v819, %v817
    %v1134 = vpack.c.b16 %v820, %v818
    %v1135 = vpack.c.b16 %v823, %v821
    %v1136 = vpack.c.b16 %v824, %v822
    %v1137 = vpack.c.b16 %v827, %v825
    %v1138 = vpack.c.b16 %v828, %v826
    %v1139 = vpack.c.b16 %v831, %v829
    %v1140 = vpack.c.b16 %v832, %v830
    %v1141 = vpack.c.b16 %v835, %v833
    %v1142 = vpack.c.b16 %v836, %v834
    %v1143 = vpack.c.b16 %v839, %v837
    %v1144 = vpack.c.b16 %v840, %v838
    %v1145 = vpack.c.b16 %v843, %v841
    %v1146 = vpack.c.b16 %v844, %v842
    %v1147 = vpack.c.b16 %v847, %v845
    %v1148 = vpack.c.b16 %v848, %v846
    %v1149 = vpack.c.b16 %v851, %v849
    %v1150 = vpack.c.b16 %v852, %v850
    %v1151 = vpack.c.b16 %v855, %v853
    %v1152 = vpack.c.b16 %v856, %v854
    %v1153 = vpack.c.b16 %v859, %v857
    %v1154 = vpack.c.b16 %v860, %v858
    %v1155 = vpack.c.b16 %v863, %v861
    %v1156 = vpack.c.b16 %v864, %v862
    %v1157 = vpack.c.b16 %v867, %v865
    %v1158 = vpack.c.b16 %v868, %v866
    %v1159 = vpack.c.b16 %v871, %v869
    %v1160 = vpack.c.b16 %v872, %v870
    %v1161 = vpack.c.b16 %v875, %v873
    %v1162 = vpack.c.b16 %v876, %v874
    %v1163 = vpack.c.b16 %v879, %v877
    %v1164 = vpack.c.b16 %v880, %v878
    %v1165 = vpack.c.b16 %v883, %v881
    %v1166 = vpack.c.b16 %v884, %v882
    %v1167 = vpack.c.b16 %v887, %v885
    %v1168 = vpack.c.b16 %v888, %v886
    %v1169 = vpack.c.b16 %v891, %v889
    %v1170 = vpack.c.b16 %v892, %v890
    %v1171 = vpack.c.b16 %v895, %v893
    %v1172 = vpack.c.b16 %v896, %v894
    %v1173 = vpack.c.b16 %v899, %v897
    %v1174 = vpack.c.b16 %v900, %v898
    %v1175 = vpack.c.b16 %v903, %v901
    %v1176 = vpack.c.b16 %v904, %v902
    %v1177 = vpack.c.b16 %v907, %v905
    %v1178 = vpack.c.b16 %v908, %v906
    %v1179 = vpack.c.b16 %v911, %v909
    %v1180 = vpack.c.b16 %v912, %v910
    %v1181 = vpack.c.b16 %v915, %v913
    %v1182 = vpack.c.b16 %v916, %v914
    %v1183 = vpack.c.b16 %v919, %v917
    %v1184 = vpack.c.b16 %v920, %v918
    %v1185 = vpack.c.b16 %v923, %v921
    %v1186 = vpack.c.b16 %v924, %v922
    %v1187 = vpack.c.b16 %v927, %v925
    %v1188 = vpack.c.b16 %v928, %v926
    %v1189 = vpack.c.b16 %v931, %v929
    %v1190 = vpack.c.b16 %v932, %v930
    %v1191 = vpack.c.b16 %v935, %v933
    %v1192 = vpack.c.b16 %v936, %v934
    %v1193 = vpack.c.b16 %v939, %v937
    %v1194 = vpack.c.b16 %v940, %v938
    %v1195 = vpack.c.b16 %v943, %v941
    %v1196 = vpack.c.b16 %v944, %v942
    %v1197 = vpack.c.b16 %v947, %v945
    %v1198 = vpack.c.b16 %v948, %v946
    %v1199 = vpack.c.b16 %v951, %v949
    %v1200 = vpack.c.b16 %v952, %v950
    %v1201 = vpack.c.b16 %v955, %v953
    %v1202 = vpack.c.b16 %v956, %v954
    %v1203 = vpack.c.b16 %v959, %v957
    %v1204 = vpack.c.b16 %v960, %v958
    %v1205 = vpack.c.b16 %v963, %v961
    %v1206 = vpack.c.b16 %v964, %v962
    %v1207 = vpack.c.b16 %v967, %v965
    %v1208 = vpack.c.b16 %v968, %v966
    %v1209 = vpack.c.b16 %v971, %v969
    %v1210 = vpack.c.b16 %v972, %v970
    %v1211 = vpack.c.b16 %v975, %v973
    %v1212 = vpack.c.b16 %v976, %v974
    %v1213 = vpack.c.b16 %v979, %v977
    %v1214 = vpack.c.b16 %v980, %v978
    %v1215 = vpack.c.b16 %v983, %v981
    %v1216 = vpack.c.b16 %v984, %v982
    %v1217 = vpack.c.b16 %v987, %v985
    %v1218 = vpack.c.b16 %v988, %v986
    %v1219 = vpack.c.b16 %v991, %v989
    %v1220 = vpack.c.b16 %v992, %v990
    %v1221 = vpack.c.b16 %v995, %v993
    %v1222 = vpack.c.b16 %v996, %v994
    %v1223 = vpack.c.b16 %v999, %v997
    %v1224 = vpack.c.b16 %v1000, %v998
    %v1225 = vpack.c.b16 %v1003, %v1001
    %v1226 = vpack.c.b16 %v1004, %v1002
    %v1227 = vpack.c.b16 %v1007, %v1005
    %v1228 = vpack.c.b16 %v1008, %v1006
    %v1229 = vpack.c.b16 %v1011, %v1009
    %v1230 = vpack.c.b16 %v1012, %v1010
    %v1231 = vpack.c.b16 %v1015, %v1013
    %v1232 = vpack.c.b16 %v1016, %v1014
    %v1233 = vpack.c.b16 %v1019, %v1017
    %v1234 = vpack.c.b16 %v1020, %v1018
    %v1235 = vpack.c.b16 %v1023, %v1021
    %v1236 = vpack.c.b16 %v1024, %v1022
    %v1237 = vpack.c.b16 %v1027, %v1025
    %v1238 = vpack.c.b16 %v1028, %v1026
    %v1239 = vpack.c.b16 %v1031, %v1029
    %v1240 = vpack.c.b16 %v1032, %v1030
    %v1241 = vpack.c.b16 %v1035, %v1033
    %v1242 = vpack.c.b16 %v1036, %v1034
    %v1243 = vpack.c.b16 %v1039, %v1037
    %v1244 = vpack.c.b16 %v1040, %v1038
    %v1245 = vpack.c.b16 %v1043, %v1041
    %v1246 = vpack.c.b16 %v1044, %v1042
    %v1247 = vpack.c.b16 %v1047, %v1045
    %v1248 = vpack.c.b16 %v1048, %v1046
    %v1249 = vpack.c.b16 %v1051, %v1049
    %v1250 = vpack.c.b16 %v1052, %v1050
    %v1251 = vpack.c.b16 %v1055, %v1053
    %v1252 = vpack.c.b16 %v1056, %v1054
    %v1253 = vpack.c.b16 %v1059, %v1057
    %v1254 = vpack.c.b16 %v1060, %v1058
    %v1255 = vpack.c.b16 %v1063, %v1061
    %v1256 = vpack.c.b16 %v1064, %v1062
    %1449 = vmatprep.subr.bf16.mxu0 %v1066
    %1450 = vmatpush1.bf16.msra.mxu0 %v1065
    %1451 = vmatprep.subr.bf16.mxu0 %v1068
    %1452 = vmatpush1.bf16.msra.mxu0 %v1067
    %1453 = vmatprep.subr.bf16.mxu0 %v1070
    %1454 = vmatpush1.bf16.msra.mxu0 %v1069
    %1455 = vmatprep.subr.bf16.mxu0 %v1072
    %1456 = vmatpush1.bf16.msra.mxu0 %v1071
    %1457 = vmatprep.subr.bf16.mxu0 %v1074
    %1458 = vmatpush1.bf16.msra.mxu0 %v1073
    %1459 = vmatprep.subr.bf16.mxu0 %v1076
    %1460 = vmatpush1.bf16.msra.mxu0 %v1075
    %1461 = vmatprep.subr.bf16.mxu0 %v1078
    %1462 = vmatpush1.bf16.msra.mxu0 %v1077
    %1463 = vmatprep.subr.bf16.mxu0 %v1080
    %1464 = vmatpush1.bf16.msra.mxu0 %v1079
    %1465 = vmatprep.subr.bf16.mxu0 %v1082
    %1466 = vmatpush1.bf16.msra.mxu0 %v1081
    %1467 = vmatprep.subr.bf16.mxu0 %v1084
    %1468 = vmatpush1.bf16.msra.mxu0 %v1083
    %1469 = vmatprep.subr.bf16.mxu0 %v1086
    %1470 = vmatpush1.bf16.msra.mxu0 %v1085
    %1471 = vmatprep.subr.bf16.mxu0 %v1088
    %1472 = vmatpush1.bf16.msra.mxu0 %v1087
    %1473 = vmatprep.subr.bf16.mxu0 %v1090
    %1474 = vmatpush1.bf16.msra.mxu0 %v1089
    %1475 = vmatprep.subr.bf16.mxu0 %v1092
    %1476 = vmatpush1.bf16.msra.mxu0 %v1091
    %1477 = vmatprep.subr.bf16.mxu0 %v1094
    %1478 = vmatpush1.bf16.msra.mxu0 %v1093
    %1479 = vmatprep.subr.bf16.mxu0 %v1096
    %1480 = vmatpush1.bf16.msra.mxu0 %v1095
    %1481 = vmatprep.mubr.bf16.mxu0 %v274
    %1482 = vmatmul.mubr.bf16.gmra.mrb[0].mxu0 %v273
    %v1483 = vpop.f32.mrb[0].mxu0
    %v1484 = vadd.f32 %v482, %v1483
    %v1485 = vpop.f32.mrb[0].mxu0
    %v1486 = vadd.f32 %v486, %v1485
    %v1487 = vpop.f32.mrb[0].mxu0
    %v1488 = vpop.f32.mrb[0].mxu0
    %1489 = vdwg.mxu0
    %1490 = vmatprep.subr.bf16.mxu0 %v1098
    %1491 = vmatpush1.bf16.msra.mxu0 %v1097
    %1492 = vmatprep.subr.bf16.mxu0 %v1100
    %1493 = vmatpush1.bf16.msra.mxu0 %v1099
    %1494 = vmatprep.subr.bf16.mxu0 %v1102
    %1495 = vmatpush1.bf16.msra.mxu0 %v1101
    %1496 = vmatprep.subr.bf16.mxu0 %v1104
    %1497 = vmatpush1.bf16.msra.mxu0 %v1103
    %1498 = vmatprep.subr.bf16.mxu0 %v1106
    %1499 = vmatpush1.bf16.msra.mxu0 %v1105
    %1500 = vmatprep.subr.bf16.mxu0 %v1108
    %1501 = vmatpush1.bf16.msra.mxu0 %v1107
    %1502 = vmatprep.subr.bf16.mxu0 %v1110
    %1503 = vmatpush1.bf16.msra.mxu0 %v1109
    %1504 = vmatprep.subr.bf16.mxu0 %v1112
    %1505 = vmatpush1.bf16.msra.mxu0 %v1111
    %1506 = vmatprep.subr.bf16.mxu0 %v1114
    %1507 = vmatpush1.bf16.msra.mxu0 %v1113
    %1508 = vmatprep.subr.bf16.mxu0 %v1116
    %1509 = vmatpush1.bf16.msra.mxu0 %v1115
    %1510 = vmatprep.subr.bf16.mxu0 %v1118
    %1511 = vmatpush1.bf16.msra.mxu0 %v1117
    %1512 = vmatprep.subr.bf16.mxu0 %v1120
    %1513 = vmatpush1.bf16.msra.mxu0 %v1119
    %1514 = vmatprep.subr.bf16.mxu0 %v1122
    %1515 = vmatpush1.bf16.msra.mxu0 %v1121
    %1516 = vmatprep.subr.bf16.mxu0 %v1124
    %1517 = vmatpush1.bf16.msra.mxu0 %v1123
    %1518 = vmatprep.subr.bf16.mxu0 %v1126
    %1519 = vmatpush1.bf16.msra.mxu0 %v1125
    %1520 = vmatprep.subr.bf16.mxu0 %v1128
    %1521 = vmatpush1.bf16.msra.mxu0 %v1127
    %1522 = vmatprep.mubr.bf16.mxu0 %v276
    %1523 = vmatmul.mubr.bf16.gmra.mrb[0].mxu0 %v275
    %v1524 = vpop.f32.mrb[0].mxu0
    %v1525 = vadd.f32 %v1484, %v1524
    %v1526 = vpop.f32.mrb[0].mxu0
    %v1527 = vadd.f32 %v1486, %v1526
    %v1528 = vpop.f32.mrb[0].mxu0
    %v1529 = vpop.f32.mrb[0].mxu0
    %1530 = vdwg.mxu0
    %1531 = vmatprep.subr.bf16.mxu0 %v1130
    %1532 = vmatpush1.bf16.msra.mxu0 %v1129
    %1533 = vmatprep.subr.bf16.mxu0 %v1132
    %1534 = vmatpush1.bf16.msra.mxu0 %v1131
    %1535 = vmatprep.subr.bf16.mxu0 %v1134
    %1536 = vmatpush1.bf16.msra.mxu0 %v1133
    %1537 = vmatprep.subr.bf16.mxu0 %v1136
    %1538 = vmatpush1.bf16.msra.mxu0 %v1135
    %1539 = vmatprep.subr.bf16.mxu0 %v1138
    %1540 = vmatpush1.bf16.msra.mxu0 %v1137
    %1541 = vmatprep.subr.bf16.mxu0 %v1140
    %1542 = vmatpush1.bf16.msra.mxu0 %v1139
    %1543 = vmatprep.subr.bf16.mxu0 %v1142
    %1544 = vmatpush1.bf16.msra.mxu0 %v1141
    %1545 = vmatprep.subr.bf16.mxu0 %v1144
    %1546 = vmatpush1.bf16.msra.mxu0 %v1143
    %1547 = vmatprep.subr.bf16.mxu0 %v1146
    %1548 = vmatpush1.bf16.msra.mxu0 %v1145
    %1549 = vmatprep.subr.bf16.mxu0 %v1148
    %1550 = vmatpush1.bf16.msra.mxu0 %v1147
    %1551 = vmatprep.subr.bf16.mxu0 %v1150
    %1552 = vmatpush1.bf16.msra.mxu0 %v1149
    %1553 = vmatprep.subr.bf16.mxu0 %v1152
    %1554 = vmatpush1.bf16.msra.mxu0 %v1151
    %1555 = vmatprep.subr.bf16.mxu0 %v1154
    %1556 = vmatpush1.bf16.msra.mxu0 %v1153
    %1557 = vmatprep.subr.bf16.mxu0 %v1156
    %1558 = vmatpush1.bf16.msra.mxu0 %v1155
    %1559 = vmatprep.subr.bf16.mxu0 %v1158
    %1560 = vmatpush1.bf16.msra.mxu0 %v1157
    %1561 = vmatprep.subr.bf16.mxu0 %v1160
    %1562 = vmatpush1.bf16.msra.mxu0 %v1159
    %1563 = vmatprep.mubr.bf16.mxu0 %v278
    %1564 = vmatmul.mubr.bf16.gmra.mrb[0].mxu0 %v277
    %v1565 = vpop.f32.mrb[0].mxu0
    %v1566 = vadd.f32 %v1525, %v1565
    %v1567 = vpop.f32.mrb[0].mxu0
    %v1568 = vadd.f32 %v1527, %v1567
    %v1569 = vpop.f32.mrb[0].mxu0
    %v1570 = vpop.f32.mrb[0].mxu0
    %1571 = vdwg.mxu0
    %1572 = vmatprep.subr.bf16.mxu0 %v1162
    %1573 = vmatpush1.bf16.msra.mxu0 %v1161
    %1574 = vmatprep.subr.bf16.mxu0 %v1164
    %1575 = vmatpush1.bf16.msra.mxu0 %v1163
    %1576 = vmatprep.subr.bf16.mxu0 %v1166
    %1577 = vmatpush1.bf16.msra.mxu0 %v1165
    %1578 = vmatprep.subr.bf16.mxu0 %v1168
    %1579 = vmatpush1.bf16.msra.mxu0 %v1167
    %1580 = vmatprep.subr.bf16.mxu0 %v1170
    %1581 = vmatpush1.bf16.msra.mxu0 %v1169
    %1582 = vmatprep.subr.bf16.mxu0 %v1172
    %1583 = vmatpush1.bf16.msra.mxu0 %v1171
    %1584 = vmatprep.subr.bf16.mxu0 %v1174
    %1585 = vmatpush1.bf16.msra.mxu0 %v1173
    %1586 = vmatprep.subr.bf16.mxu0 %v1176
    %1587 = vmatpush1.bf16.msra.mxu0 %v1175
    %1588 = vmatprep.subr.bf16.mxu0 %v1178
    %1589 = vmatpush1.bf16.msra.mxu0 %v1177
    %1590 = vmatprep.subr.bf16.mxu0 %v1180
    %1591 = vmatpush1.bf16.msra.mxu0 %v1179
    %1592 = vmatprep.subr.bf16.mxu0 %v1182
    %1593 = vmatpush1.bf16.msra.mxu0 %v1181
    %1594 = vmatprep.subr.bf16.mxu0 %v1184
    %1595 = vmatpush1.bf16.msra.mxu0 %v1183
    %1596 = vmatprep.subr.bf16.mxu0 %v1186
    %1597 = vmatpush1.bf16.msra.mxu0 %v1185
    %1598 = vmatprep.subr.bf16.mxu0 %v1188
    %1599 = vmatpush1.bf16.msra.mxu0 %v1187
    %1600 = vmatprep.subr.bf16.mxu0 %v1190
    %1601 = vmatpush1.bf16.msra.mxu0 %v1189
    %1602 = vmatprep.subr.bf16.mxu0 %v1192
    %1603 = vmatpush1.bf16.msra.mxu0 %v1191
    %1604 = vmatprep.mubr.bf16.mxu0 %v280
    %1605 = vmatmul.mubr.bf16.gmra.mrb[0].mxu0 %v279
    %v1606 = vpop.f32.mrb[0].mxu0
    %v1607 = vadd.f32 %v1566, %v1606
    %v1608 = vpop.f32.mrb[0].mxu0
    %v1609 = vadd.f32 %v1568, %v1608
    %v1610 = vpop.f32.mrb[0].mxu0
    %v1611 = vpop.f32.mrb[0].mxu0
    %1612 = vdwg.mxu0
    %1613 = vmatprep.subr.bf16.mxu0 %v1194
    %1614 = vmatpush1.bf16.msra.mxu0 %v1193
    %1615 = vmatprep.subr.bf16.mxu0 %v1196
    %1616 = vmatpush1.bf16.msra.mxu0 %v1195
    %1617 = vmatprep.subr.bf16.mxu0 %v1198
    %1618 = vmatpush1.bf16.msra.mxu0 %v1197
    %1619 = vmatprep.subr.bf16.mxu0 %v1200
    %1620 = vmatpush1.bf16.msra.mxu0 %v1199
    %1621 = vmatprep.subr.bf16.mxu0 %v1202
    %1622 = vmatpush1.bf16.msra.mxu0 %v1201
    %1623 = vmatprep.subr.bf16.mxu0 %v1204
    %1624 = vmatpush1.bf16.msra.mxu0 %v1203
    %1625 = vmatprep.subr.bf16.mxu0 %v1206
    %1626 = vmatpush1.bf16.msra.mxu0 %v1205
    %1627 = vmatprep.subr.bf16.mxu0 %v1208
    %1628 = vmatpush1.bf16.msra.mxu0 %v1207
    %1629 = vmatprep.subr.bf16.mxu0 %v1210
    %1630 = vmatpush1.bf16.msra.mxu0 %v1209
    %1631 = vmatprep.subr.bf16.mxu0 %v1212
    %1632 = vmatpush1.bf16.msra.mxu0 %v1211
    %1633 = vmatprep.subr.bf16.mxu0 %v1214
    %1634 = vmatpush1.bf16.msra.mxu0 %v1213
    %1635 = vmatprep.subr.bf16.mxu0 %v1216
    %1636 = vmatpush1.bf16.msra.mxu0 %v1215
    %1637 = vmatprep.subr.bf16.mxu0 %v1218
    %1638 = vmatpush1.bf16.msra.mxu0 %v1217
    %1639 = vmatprep.subr.bf16.mxu0 %v1220
    %1640 = vmatpush1.bf16.msra.mxu0 %v1219
    %1641 = vmatprep.subr.bf16.mxu0 %v1222
    %1642 = vmatpush1.bf16.msra.mxu0 %v1221
    %1643 = vmatprep.subr.bf16.mxu0 %v1224
    %1644 = vmatpush1.bf16.msra.mxu0 %v1223
    %1645 = vmatprep.mubr.bf16.mxu0 %v282
    %1646 = vmatmul.mubr.bf16.gmra.mrb[0].mxu0 %v281
    %v1647 = vpop.f32.mrb[0].mxu0
    %v1648 = vadd.f32 %v1607, %v1647
    %v1649 = vpop.f32.mrb[0].mxu0
    %v1650 = vadd.f32 %v1609, %v1649
    %v1651 = vpop.f32.mrb[0].mxu0
    %v1652 = vpop.f32.mrb[0].mxu0
    %1653 = vdwg.mxu0
    %1654 = vmatprep.subr.bf16.mxu0 %v1226
    %1655 = vmatpush1.bf16.msra.mxu0 %v1225
    %1656 = vmatprep.subr.bf16.mxu0 %v1228
    %1657 = vmatpush1.bf16.msra.mxu0 %v1227
    %1658 = vmatprep.subr.bf16.mxu0 %v1230
    %1659 = vmatpush1.bf16.msra.mxu0 %v1229
    %1660 = vmatprep.subr.bf16.mxu0 %v1232
    %1661 = vmatpush1.bf16.msra.mxu0 %v1231
    %1662 = vmatprep.subr.bf16.mxu0 %v1234
    %1663 = vmatpush1.bf16.msra.mxu0 %v1233
    %1664 = vmatprep.subr.bf16.mxu0 %v1236
    %1665 = vmatpush1.bf16.msra.mxu0 %v1235
    %1666 = vmatprep.subr.bf16.mxu0 %v1238
    %1667 = vmatpush1.bf16.msra.mxu0 %v1237
    %1668 = vmatprep.subr.bf16.mxu0 %v1240
    %1669 = vmatpush1.bf16.msra.mxu0 %v1239
    %1670 = vmatprep.subr.bf16.mxu0 %v1242
    %1671 = vmatpush1.bf16.msra.mxu0 %v1241
    %1672 = vmatprep.subr.bf16.mxu0 %v1244
    %1673 = vmatpush1.bf16.msra.mxu0 %v1243
    %1674 = vmatprep.subr.bf16.mxu0 %v1246
    %1675 = vmatpush1.bf16.msra.mxu0 %v1245
    %1676 = vmatprep.subr.bf16.mxu0 %v1248
    %1677 = vmatpush1.bf16.msra.mxu0 %v1247
    %1678 = vmatprep.subr.bf16.mxu0 %v1250
    %1679 = vmatpush1.bf16.msra.mxu0 %v1249
    %1680 = vmatprep.subr.bf16.mxu0 %v1252
    %1681 = vmatpush1.bf16.msra.mxu0 %v1251
    %1682 = vmatprep.subr.bf16.mxu0 %v1254
    %1683 = vmatpush1.bf16.msra.mxu0 %v1253
    %1684 = vmatprep.subr.bf16.mxu0 %v1256
    %1685 = vmatpush1.bf16.msra.mxu0 %v1255
    %1686 = vmatprep.mubr.bf16.mxu0 %v284
    %1687 = vmatmul.mubr.bf16.gmra.mrb[0].mxu0 %v283
    %v1688 = vpop.f32.mrb[0].mxu0
    %v1689 = vadd.f32 %v1648, %v1688
    %v1690 = vpop.f32.mrb[0].mxu0
    %v1691 = vadd.f32 %v1650, %v1690
    %v1692 = vpop.f32.mrb[0].mxu0
    %v1693 = vpop.f32.mrb[0].mxu0
    %1694 = vdwg.mxu0
    %v1695 = vmax.f32 %v1689, 0.0
    %v1696 = vmax.f32 %v1691, 0.0
    %v1697 = vpack.c.bf16 %v1695, %v1695
    %v1698 = vpack.c.bf16 %v1696, %v1696
    %v1699 = vld [vmem:[#allocation10] sm:$0xff]
    %v1700 = vld [vmem:[#allocation10 + $0x8] sm:$0xff]
    %v1701 = vld [vmem:[#allocation10 + $0x10] sm:$0xff]
    %v1702 = vld [vmem:[#allocation10 + $0x18] sm:$0xff]
    %v1703 = vld [vmem:[#allocation10 + $0x20] sm:$0xff]
    %v1704 = vld [vmem:[#allocation10 + $0x28] sm:$0xff]
    %v1705 = vld [vmem:[#allocation10 + $0x30] sm:$0xff]
    %v1706 = vld [vmem:[#allocation10 + $0x38] sm:$0xff]
    %v1707 = vld [vmem:[#allocation10 + $0x40] sm:$0xff]
    %v1708 = vld [vmem:[#allocation10 + $0x48] sm:$0xff]
    %v1709 = vld [vmem:[#allocation10 + $0x50] sm:$0xff]
    %v1710 = vld [vmem:[#allocation10 + $0x58] sm:$0xff]
    %v1711 = vld [vmem:[#allocation10 + $0x60] sm:$0xff]
    %v1712 = vld [vmem:[#allocation10 + $0x68] sm:$0xff]
    %v1713 = vld [vmem:[#allocation10 + $0x70] sm:$0xff]
    %v1714 = vld [vmem:[#allocation10 + $0x78] sm:$0xff]
    %v1715 = vld [vmem:[#allocation10 + $0x80] sm:$0xff]
    %v1716 = vld [vmem:[#allocation10 + $0x88] sm:$0xff]
    %v1717 = vld [vmem:[#allocation10 + $0x90] sm:$0xff]
    %v1718 = vld [vmem:[#allocation10 + $0x98] sm:$0xff]
    %v1719 = vld [vmem:[#allocation10 + $0xa0] sm:$0xff]
    %v1720 = vld [vmem:[#allocation10 + $0xa8] sm:$0xff]
    %v1721 = vld [vmem:[#allocation10 + $0xb0] sm:$0xff]
    %v1722 = vld [vmem:[#allocation10 + $0xb8] sm:$0xff]
    %v1723 = vld [vmem:[#allocation10 + $0xc0] sm:$0xff]
    %v1724 = vld [vmem:[#allocation10 + $0xc8] sm:$0xff]
    %v1725 = vld [vmem:[#allocation10 + $0xd0] sm:$0xff]
    %v1726 = vld [vmem:[#allocation10 + $0xd8] sm:$0xff]
    %v1727 = vld [vmem:[#allocation10 + $0xe0] sm:$0xff]
    %v1728 = vld [vmem:[#allocation10 + $0xe8] sm:$0xff]
    %v1729 = vld [vmem:[#allocation10 + $0xf0] sm:$0xff]
    %v1730 = vld [vmem:[#allocation10 + $0xf8] sm:$0xff]
    %v1731 = vld [vmem:[#allocation10 + $0x100] sm:$0xff]
    %v1732 = vld [vmem:[#allocation10 + $0x108] sm:$0xff]
    %v1733 = vld [vmem:[#allocation10 + $0x110] sm:$0xff]
    %v1734 = vld [vmem:[#allocation10 + $0x118] sm:$0xff]
    %v1735 = vld [vmem:[#allocation10 + $0x120] sm:$0xff]
    %v1736 = vld [vmem:[#allocation10 + $0x128] sm:$0xff]
    %v1737 = vld [vmem:[#allocation10 + $0x130] sm:$0xff]
    %v1738 = vld [vmem:[#allocation10 + $0x138] sm:$0xff]
    %v1739 = vld [vmem:[#allocation10 + $0x140] sm:$0xff]
    %v1740 = vld [vmem:[#allocation10 + $0x148] sm:$0xff]
    %v1741 = vld [vmem:[#allocation10 + $0x150] sm:$0xff]
    %v1742 = vld [vmem:[#allocation10 + $0x158] sm:$0xff]
    %v1743 = vld [vmem:[#allocation10 + $0x160] sm:$0xff]
    %v1744 = vld [vmem:[#allocation10 + $0x168] sm:$0xff]
    %v1745 = vld [vmem:[#allocation10 + $0x170] sm:$0xff]
    %v1746 = vld [vmem:[#allocation10 + $0x178] sm:$0xff]
    %v1747 = vld [vmem:[#allocation10 + $0x180] sm:$0xff]
    %v1748 = vld [vmem:[#allocation10 + $0x188] sm:$0xff]
    %v1749 = vld [vmem:[#allocation10 + $0x190] sm:$0xff]
    %v1750 = vld [vmem:[#allocation10 + $0x198] sm:$0xff]
    %v1751 = vld [vmem:[#allocation10 + $0x1a0] sm:$0xff]
    %v1752 = vld [vmem:[#allocation10 + $0x1a8] sm:$0xff]
    %v1753 = vld [vmem:[#allocation10 + $0x1b0] sm:$0xff]
    %v1754 = vld [vmem:[#allocation10 + $0x1b8] sm:$0xff]
    %v1755 = vld [vmem:[#allocation10 + $0x1c0] sm:$0xff]
    %v1756 = vld [vmem:[#allocation10 + $0x1c8] sm:$0xff]
    %v1757 = vld [vmem:[#allocation10 + $0x1d0] sm:$0xff]
    %v1758 = vld [vmem:[#allocation10 + $0x1d8] sm:$0xff]
    %v1759 = vld [vmem:[#allocation10 + $0x1e0] sm:$0xff]
    %v1760 = vld [vmem:[#allocation10 + $0x1e8] sm:$0xff]
    %v1761 = vld [vmem:[#allocation10 + $0x1f0] sm:$0xff]
    %v1762 = vld [vmem:[#allocation10 + $0x1f8] sm:$0xff]
    %v1763 = vld [vmem:[#allocation10 + $0x200] sm:$0xff]
    %v1764 = vld [vmem:[#allocation10 + $0x208] sm:$0xff]
    %v1765 = vld [vmem:[#allocation10 + $0x210] sm:$0xff]
    %v1766 = vld [vmem:[#allocation10 + $0x218] sm:$0xff]
    %v1767 = vld [vmem:[#allocation10 + $0x220] sm:$0xff]
    %v1768 = vld [vmem:[#allocation10 + $0x228] sm:$0xff]
    %v1769 = vld [vmem:[#allocation10 + $0x230] sm:$0xff]
    %v1770 = vld [vmem:[#allocation10 + $0x238] sm:$0xff]
    %v1771 = vld [vmem:[#allocation10 + $0x240] sm:$0xff]
    %v1772 = vld [vmem:[#allocation10 + $0x248] sm:$0xff]
    %v1773 = vld [vmem:[#allocation10 + $0x250] sm:$0xff]
    %v1774 = vld [vmem:[#allocation10 + $0x258] sm:$0xff]
    %v1775 = vld [vmem:[#allocation10 + $0x260] sm:$0xff]
    %v1776 = vld [vmem:[#allocation10 + $0x268] sm:$0xff]
    %v1777 = vld [vmem:[#allocation10 + $0x270] sm:$0xff]
    %v1778 = vld [vmem:[#allocation10 + $0x278] sm:$0xff]
    %v1779 = vld [vmem:[#allocation10 + $0x280] sm:$0xff]
    %v1780 = vld [vmem:[#allocation10 + $0x288] sm:$0xff]
    %v1781 = vld [vmem:[#allocation10 + $0x290] sm:$0xff]
    %v1782 = vld [vmem:[#allocation10 + $0x298] sm:$0xff]
    %v1783 = vld [vmem:[#allocation10 + $0x2a0] sm:$0xff]
    %v1784 = vld [vmem:[#allocation10 + $0x2a8] sm:$0xff]
    %v1785 = vld [vmem:[#allocation10 + $0x2b0] sm:$0xff]
    %v1786 = vld [vmem:[#allocation10 + $0x2b8] sm:$0xff]
    %v1787 = vld [vmem:[#allocation10 + $0x2c0] sm:$0xff]
    %v1788 = vld [vmem:[#allocation10 + $0x2c8] sm:$0xff]
    %v1789 = vld [vmem:[#allocation10 + $0x2d0] sm:$0xff]
    %v1790 = vld [vmem:[#allocation10 + $0x2d8] sm:$0xff]
    %v1791 = vld [vmem:[#allocation10 + $0x2e0] sm:$0xff]
    %v1792 = vld [vmem:[#allocation10 + $0x2e8] sm:$0xff]
    %v1793 = vld [vmem:[#allocation10 + $0x2f0] sm:$0xff]
    %v1794 = vld [vmem:[#allocation10 + $0x2f8] sm:$0xff]
    %v1795 = vld [vmem:[#allocation10 + $0x300] sm:$0xff]
    %v1796 = vld [vmem:[#allocation10 + $0x308] sm:$0xff]
    %v1797 = vld [vmem:[#allocation10 + $0x310] sm:$0xff]
    %v1798 = vld [vmem:[#allocation10 + $0x318] sm:$0xff]
    %v1799 = vld [vmem:[#allocation10 + $0x320] sm:$0xff]
    %v1800 = vld [vmem:[#allocation10 + $0x328] sm:$0xff]
    %v1801 = vld [vmem:[#allocation10 + $0x330] sm:$0xff]
    %v1802 = vld [vmem:[#allocation10 + $0x338] sm:$0xff]
    %v1803 = vld [vmem:[#allocation10 + $0x340] sm:$0xff]
    %v1804 = vld [vmem:[#allocation10 + $0x348] sm:$0xff]
    %v1805 = vld [vmem:[#allocation10 + $0x350] sm:$0xff]
    %v1806 = vld [vmem:[#allocation10 + $0x358] sm:$0xff]
    %v1807 = vld [vmem:[#allocation10 + $0x360] sm:$0xff]
    %v1808 = vld [vmem:[#allocation10 + $0x368] sm:$0xff]
    %v1809 = vld [vmem:[#allocation10 + $0x370] sm:$0xff]
    %v1810 = vld [vmem:[#allocation10 + $0x378] sm:$0xff]
    %v1811 = vld [vmem:[#allocation10 + $0x380] sm:$0xff]
    %v1812 = vld [vmem:[#allocation10 + $0x388] sm:$0xff]
    %v1813 = vld [vmem:[#allocation10 + $0x390] sm:$0xff]
    %v1814 = vld [vmem:[#allocation10 + $0x398] sm:$0xff]
    %v1815 = vld [vmem:[#allocation10 + $0x3a0] sm:$0xff]
    %v1816 = vld [vmem:[#allocation10 + $0x3a8] sm:$0xff]
    %v1817 = vld [vmem:[#allocation10 + $0x3b0] sm:$0xff]
    %v1818 = vld [vmem:[#allocation10 + $0x3b8] sm:$0xff]
    %v1819 = vld [vmem:[#allocation10 + $0x3c0] sm:$0xff]
    %v1820 = vld [vmem:[#allocation10 + $0x3c8] sm:$0xff]
    %v1821 = vld [vmem:[#allocation10 + $0x3d0] sm:$0xff]
    %v1822 = vld [vmem:[#allocation10 + $0x3d8] sm:$0xff]
    %v1823 = vld [vmem:[#allocation10 + $0x3e0] sm:$0xff]
    %v1824 = vld [vmem:[#allocation10 + $0x3e8] sm:$0xff]
    %v1825 = vld [vmem:[#allocation10 + $0x3f0] sm:$0xff]
    %v1826 = vld [vmem:[#allocation10 + $0x3f8] sm:$0xff]
    %v1827 = vld [vmem:[#allocation10 + $0x400] sm:$0xff]
    %v1828 = vld [vmem:[#allocation10 + $0x408] sm:$0xff]
    %v1829 = vld [vmem:[#allocation10 + $0x410] sm:$0xff]
    %v1830 = vld [vmem:[#allocation10 + $0x418] sm:$0xff]
    %v1831 = vld [vmem:[#allocation10 + $0x420] sm:$0xff]
    %v1832 = vld [vmem:[#allocation10 + $0x428] sm:$0xff]
    %v1833 = vld [vmem:[#allocation10 + $0x430] sm:$0xff]
    %v1834 = vld [vmem:[#allocation10 + $0x438] sm:$0xff]
    %v1835 = vld [vmem:[#allocation10 + $0x440] sm:$0xff]
    %v1836 = vld [vmem:[#allocation10 + $0x448] sm:$0xff]
    %v1837 = vld [vmem:[#allocation10 + $0x450] sm:$0xff]
    %v1838 = vld [vmem:[#allocation10 + $0x458] sm:$0xff]
    %v1839 = vld [vmem:[#allocation10 + $0x460] sm:$0xff]
    %v1840 = vld [vmem:[#allocation10 + $0x468] sm:$0xff]
    %v1841 = vld [vmem:[#allocation10 + $0x470] sm:$0xff]
    %v1842 = vld [vmem:[#allocation10 + $0x478] sm:$0xff]
    %v1843 = vld [vmem:[#allocation10 + $0x480] sm:$0xff]
    %v1844 = vld [vmem:[#allocation10 + $0x488] sm:$0xff]
    %v1845 = vld [vmem:[#allocation10 + $0x490] sm:$0xff]
    %v1846 = vld [vmem:[#allocation10 + $0x498] sm:$0xff]
    %v1847 = vld [vmem:[#allocation10 + $0x4a0] sm:$0xff]
    %v1848 = vld [vmem:[#allocation10 + $0x4a8] sm:$0xff]
    %v1849 = vld [vmem:[#allocation10 + $0x4b0] sm:$0xff]
    %v1850 = vld [vmem:[#allocation10 + $0x4b8] sm:$0xff]
    %v1851 = vld [vmem:[#allocation10 + $0x4c0] sm:$0xff]
    %v1852 = vld [vmem:[#allocation10 + $0x4c8] sm:$0xff]
    %v1853 = vld [vmem:[#allocation10 + $0x4d0] sm:$0xff]
    %v1854 = vld [vmem:[#allocation10 + $0x4d8] sm:$0xff]
    %v1855 = vld [vmem:[#allocation10 + $0x4e0] sm:$0xff]
    %v1856 = vld [vmem:[#allocation10 + $0x4e8] sm:$0xff]
    %v1857 = vld [vmem:[#allocation10 + $0x4f0] sm:$0xff]
    %v1858 = vld [vmem:[#allocation10 + $0x4f8] sm:$0xff]
    %v1859 = vld [vmem:[#allocation10 + $0x500] sm:$0xff]
    %v1860 = vld [vmem:[#allocation10 + $0x508] sm:$0xff]
    %v1861 = vld [vmem:[#allocation10 + $0x510] sm:$0xff]
    %v1862 = vld [vmem:[#allocation10 + $0x518] sm:$0xff]
    %v1863 = vld [vmem:[#allocation10 + $0x520] sm:$0xff]
    %v1864 = vld [vmem:[#allocation10 + $0x528] sm:$0xff]
    %v1865 = vld [vmem:[#allocation10 + $0x530] sm:$0xff]
    %v1866 = vld [vmem:[#allocation10 + $0x538] sm:$0xff]
    %v1867 = vld [vmem:[#allocation10 + $0x540] sm:$0xff]
    %v1868 = vld [vmem:[#allocation10 + $0x548] sm:$0xff]
    %v1869 = vld [vmem:[#allocation10 + $0x550] sm:$0xff]
    %v1870 = vld [vmem:[#allocation10 + $0x558] sm:$0xff]
    %v1871 = vld [vmem:[#allocation10 + $0x560] sm:$0xff]
    %v1872 = vld [vmem:[#allocation10 + $0x568] sm:$0xff]
    %v1873 = vld [vmem:[#allocation10 + $0x570] sm:$0xff]
    %v1874 = vld [vmem:[#allocation10 + $0x578] sm:$0xff]
    %v1875 = vld [vmem:[#allocation10 + $0x580] sm:$0xff]
    %v1876 = vld [vmem:[#allocation10 + $0x588] sm:$0xff]
    %v1877 = vld [vmem:[#allocation10 + $0x590] sm:$0xff]
    %v1878 = vld [vmem:[#allocation10 + $0x598] sm:$0xff]
    %v1879 = vld [vmem:[#allocation10 + $0x5a0] sm:$0xff]
    %v1880 = vld [vmem:[#allocation10 + $0x5a8] sm:$0xff]
    %v1881 = vld [vmem:[#allocation10 + $0x5b0] sm:$0xff]
    %v1882 = vld [vmem:[#allocation10 + $0x5b8] sm:$0xff]
    %v1883 = vld [vmem:[#allocation10 + $0x5c0] sm:$0xff]
    %v1884 = vld [vmem:[#allocation10 + $0x5c8] sm:$0xff]
    %v1885 = vld [vmem:[#allocation10 + $0x5d0] sm:$0xff]
    %v1886 = vld [vmem:[#allocation10 + $0x5d8] sm:$0xff]
    %v1887 = vld [vmem:[#allocation10 + $0x5e0] sm:$0xff]
    %v1888 = vld [vmem:[#allocation10 + $0x5e8] sm:$0xff]
    %v1889 = vld [vmem:[#allocation10 + $0x5f0] sm:$0xff]
    %v1890 = vld [vmem:[#allocation10 + $0x5f8] sm:$0xff]
    %v1891 = vld [vmem:[%s6] sm:$0xff]
    %v1892 = vld [vmem:[%s6 + $0x8] sm:$0xf]
    %v1895 = vlaneseq
    %v1896 = vshrl.u32 %v1895, 7
    %v1897 = vsub.s32 0, %v1896
    %v1898 = vrot.slane %v1891, %v1897
    %v1899 = vlaneseq
    %v1900 = vshrl.u32 %v1899, 7
    %v1901 = vsub.s32 1, %v1900
    %v1902 = vrot.slane %v1891, %v1901
    %v1903 = vlaneseq
    %v1904 = vshrl.u32 %v1903, 7
    %v1905 = vsub.s32 2, %v1904
    %v1906 = vrot.slane %v1891, %v1905
    %v1907 = vlaneseq
    %v1908 = vshrl.u32 %v1907, 7
    %v1909 = vsub.s32 3, %v1908
    %v1910 = vrot.slane %v1891, %v1909
    %v1911 = vlaneseq
    %v1912 = vshrl.u32 %v1911, 7
    %v1913 = vsub.s32 4, %v1912
    %v1914 = vrot.slane %v1891, %v1913
    %v1915 = vlaneseq
    %v1916 = vshrl.u32 %v1915, 7
    %v1917 = vsub.s32 5, %v1916
    %v1918 = vrot.slane %v1891, %v1917
    %v1919 = vlaneseq
    %v1920 = vshrl.u32 %v1919, 7
    %v1921 = vsub.s32 6, %v1920
    %v1922 = vrot.slane %v1891, %v1921
    %v1923 = vlaneseq
    %v1924 = vshrl.u32 %v1923, 7
    %v1925 = vsub.s32 7, %v1924
    %v1926 = vrot.slane %v1891, %v1925
    %v1927 = vlaneseq
    %v1928 = vshrl.u32 %v1927, 7
    %v1929 = vsub.s32 0, %v1928
    %v1930 = vrot.slane %v1892, %v1929
    %v1931 = vlaneseq
    %v1932 = vshrl.u32 %v1931, 7
    %v1933 = vsub.s32 1, %v1932
    %v1934 = vrot.slane %v1892, %v1933
    %v1935 = vlaneseq
    %v1936 = vshrl.u32 %v1935, 7
    %v1937 = vsub.s32 2, %v1936
    %v1938 = vrot.slane %v1892, %v1937
    %v1939 = vlaneseq
    %v1940 = vshrl.u32 %v1939, 7
    %v1941 = vsub.s32 3, %v1940
    %v1942 = vrot.slane %v1892, %v1941
    %v2147 = vunpack.c.l.b16 %v1699
    %v2148 = vunpack.c.h.b16 %v1699
    %v2149 = vunpack.c.l.b16 %v1700
    %v2150 = vunpack.c.h.b16 %v1700
    %v2151 = vunpack.c.l.b16 %v1701
    %v2152 = vunpack.c.h.b16 %v1701
    %v2153 = vunpack.c.l.b16 %v1702
    %v2154 = vunpack.c.h.b16 %v1702
    %v2155 = vunpack.c.l.b16 %v1703
    %v2156 = vunpack.c.h.b16 %v1703
    %v2157 = vunpack.c.l.b16 %v1704
    %v2158 = vunpack.c.h.b16 %v1704
    %v2159 = vunpack.c.l.b16 %v1705
    %v2160 = vunpack.c.h.b16 %v1705
    %v2161 = vunpack.c.l.b16 %v1706
    %v2162 = vunpack.c.h.b16 %v1706
    %v2163 = vunpack.c.l.b16 %v1707
    %v2164 = vunpack.c.h.b16 %v1707
    %v2165 = vunpack.c.l.b16 %v1708
    %v2166 = vunpack.c.h.b16 %v1708
    %v2167 = vunpack.c.l.b16 %v1709
    %v2168 = vunpack.c.h.b16 %v1709
    %v2169 = vunpack.c.l.b16 %v1710
    %v2170 = vunpack.c.h.b16 %v1710
    %v2171 = vunpack.c.l.b16 %v1711
    %v2172 = vunpack.c.h.b16 %v1711
    %v2173 = vunpack.c.l.b16 %v1712
    %v2174 = vunpack.c.h.b16 %v1712
    %v2175 = vunpack.c.l.b16 %v1713
    %v2176 = vunpack.c.h.b16 %v1713
    %v2177 = vunpack.c.l.b16 %v1714
    %v2178 = vunpack.c.h.b16 %v1714
    %v2179 = vunpack.c.l.b16 %v1715
    %v2180 = vunpack.c.h.b16 %v1715
    %v2181 = vunpack.c.l.b16 %v1716
    %v2182 = vunpack.c.h.b16 %v1716
    %v2183 = vunpack.c.l.b16 %v1717
    %v2184 = vunpack.c.h.b16 %v1717
    %v2185 = vunpack.c.l.b16 %v1718
    %v2186 = vunpack.c.h.b16 %v1718
    %v2187 = vunpack.c.l.b16 %v1719
    %v2188 = vunpack.c.h.b16 %v1719
    %v2189 = vunpack.c.l.b16 %v1720
    %v2190 = vunpack.c.h.b16 %v1720
    %v2191 = vunpack.c.l.b16 %v1721
    %v2192 = vunpack.c.h.b16 %v1721
    %v2193 = vunpack.c.l.b16 %v1722
    %v2194 = vunpack.c.h.b16 %v1722
    %v2195 = vunpack.c.l.b16 %v1723
    %v2196 = vunpack.c.h.b16 %v1723
    %v2197 = vunpack.c.l.b16 %v1724
    %v2198 = vunpack.c.h.b16 %v1724
    %v2199 = vunpack.c.l.b16 %v1725
    %v2200 = vunpack.c.h.b16 %v1725
    %v2201 = vunpack.c.l.b16 %v1726
    %v2202 = vunpack.c.h.b16 %v1726
    %v2203 = vunpack.c.l.b16 %v1727
    %v2204 = vunpack.c.h.b16 %v1727
    %v2205 = vunpack.c.l.b16 %v1728
    %v2206 = vunpack.c.h.b16 %v1728
    %v2207 = vunpack.c.l.b16 %v1729
    %v2208 = vunpack.c.h.b16 %v1729
    %v2209 = vunpack.c.l.b16 %v1730
    %v2210 = vunpack.c.h.b16 %v1730
    %v2211 = vunpack.c.l.b16 %v1731
    %v2212 = vunpack.c.h.b16 %v1731
    %v2213 = vunpack.c.l.b16 %v1732
    %v2214 = vunpack.c.h.b16 %v1732
    %v2215 = vunpack.c.l.b16 %v1733
    %v2216 = vunpack.c.h.b16 %v1733
    %v2217 = vunpack.c.l.b16 %v1734
    %v2218 = vunpack.c.h.b16 %v1734
    %v2219 = vunpack.c.l.b16 %v1735
    %v2220 = vunpack.c.h.b16 %v1735
    %v2221 = vunpack.c.l.b16 %v1736
    %v2222 = vunpack.c.h.b16 %v1736
    %v2223 = vunpack.c.l.b16 %v1737
    %v2224 = vunpack.c.h.b16 %v1737
    %v2225 = vunpack.c.l.b16 %v1738
    %v2226 = vunpack.c.h.b16 %v1738
    %v2227 = vunpack.c.l.b16 %v1739
    %v2228 = vunpack.c.h.b16 %v1739
    %v2229 = vunpack.c.l.b16 %v1740
    %v2230 = vunpack.c.h.b16 %v1740
    %v2231 = vunpack.c.l.b16 %v1741
    %v2232 = vunpack.c.h.b16 %v1741
    %v2233 = vunpack.c.l.b16 %v1742
    %v2234 = vunpack.c.h.b16 %v1742
    %v2235 = vunpack.c.l.b16 %v1743
    %v2236 = vunpack.c.h.b16 %v1743
    %v2237 = vunpack.c.l.b16 %v1744
    %v2238 = vunpack.c.h.b16 %v1744
    %v2239 = vunpack.c.l.b16 %v1745
    %v2240 = vunpack.c.h.b16 %v1745
    %v2241 = vunpack.c.l.b16 %v1746
    %v2242 = vunpack.c.h.b16 %v1746
    %v2243 = vunpack.c.l.b16 %v1747
    %v2244 = vunpack.c.h.b16 %v1747
    %v2245 = vunpack.c.l.b16 %v1748
    %v2246 = vunpack.c.h.b16 %v1748
    %v2247 = vunpack.c.l.b16 %v1749
    %v2248 = vunpack.c.h.b16 %v1749
    %v2249 = vunpack.c.l.b16 %v1750
    %v2250 = vunpack.c.h.b16 %v1750
    %v2251 = vunpack.c.l.b16 %v1751
    %v2252 = vunpack.c.h.b16 %v1751
    %v2253 = vunpack.c.l.b16 %v1752
    %v2254 = vunpack.c.h.b16 %v1752
    %v2255 = vunpack.c.l.b16 %v1753
    %v2256 = vunpack.c.h.b16 %v1753
    %v2257 = vunpack.c.l.b16 %v1754
    %v2258 = vunpack.c.h.b16 %v1754
    %v2259 = vunpack.c.l.b16 %v1755
    %v2260 = vunpack.c.h.b16 %v1755
    %v2261 = vunpack.c.l.b16 %v1756
    %v2262 = vunpack.c.h.b16 %v1756
    %v2263 = vunpack.c.l.b16 %v1757
    %v2264 = vunpack.c.h.b16 %v1757
    %v2265 = vunpack.c.l.b16 %v1758
    %v2266 = vunpack.c.h.b16 %v1758
    %v2267 = vunpack.c.l.b16 %v1759
    %v2268 = vunpack.c.h.b16 %v1759
    %v2269 = vunpack.c.l.b16 %v1760
    %v2270 = vunpack.c.h.b16 %v1760
    %v2271 = vunpack.c.l.b16 %v1761
    %v2272 = vunpack.c.h.b16 %v1761
    %v2273 = vunpack.c.l.b16 %v1762
    %v2274 = vunpack.c.h.b16 %v1762
    %v2275 = vunpack.c.l.b16 %v1763
    %v2276 = vunpack.c.h.b16 %v1763
    %v2277 = vunpack.c.l.b16 %v1764
    %v2278 = vunpack.c.h.b16 %v1764
    %v2279 = vunpack.c.l.b16 %v1765
    %v2280 = vunpack.c.h.b16 %v1765
    %v2281 = vunpack.c.l.b16 %v1766
    %v2282 = vunpack.c.h.b16 %v1766
    %v2283 = vunpack.c.l.b16 %v1767
    %v2284 = vunpack.c.h.b16 %v1767
    %v2285 = vunpack.c.l.b16 %v1768
    %v2286 = vunpack.c.h.b16 %v1768
    %v2287 = vunpack.c.l.b16 %v1769
    %v2288 = vunpack.c.h.b16 %v1769
    %v2289 = vunpack.c.l.b16 %v1770
    %v2290 = vunpack.c.h.b16 %v1770
    %v2291 = vunpack.c.l.b16 %v1771
    %v2292 = vunpack.c.h.b16 %v1771
    %v2293 = vunpack.c.l.b16 %v1772
    %v2294 = vunpack.c.h.b16 %v1772
    %v2295 = vunpack.c.l.b16 %v1773
    %v2296 = vunpack.c.h.b16 %v1773
    %v2297 = vunpack.c.l.b16 %v1774
    %v2298 = vunpack.c.h.b16 %v1774
    %v2299 = vunpack.c.l.b16 %v1775
    %v2300 = vunpack.c.h.b16 %v1775
    %v2301 = vunpack.c.l.b16 %v1776
    %v2302 = vunpack.c.h.b16 %v1776
    %v2303 = vunpack.c.l.b16 %v1777
    %v2304 = vunpack.c.h.b16 %v1777
    %v2305 = vunpack.c.l.b16 %v1778
    %v2306 = vunpack.c.h.b16 %v1778
    %v2307 = vunpack.c.l.b16 %v1779
    %v2308 = vunpack.c.h.b16 %v1779
    %v2309 = vunpack.c.l.b16 %v1780
    %v2310 = vunpack.c.h.b16 %v1780
    %v2311 = vunpack.c.l.b16 %v1781
    %v2312 = vunpack.c.h.b16 %v1781
    %v2313 = vunpack.c.l.b16 %v1782
    %v2314 = vunpack.c.h.b16 %v1782
    %v2315 = vunpack.c.l.b16 %v1783
    %v2316 = vunpack.c.h.b16 %v1783
    %v2317 = vunpack.c.l.b16 %v1784
    %v2318 = vunpack.c.h.b16 %v1784
    %v2319 = vunpack.c.l.b16 %v1785
    %v2320 = vunpack.c.h.b16 %v1785
    %v2321 = vunpack.c.l.b16 %v1786
    %v2322 = vunpack.c.h.b16 %v1786
    %v2323 = vunpack.c.l.b16 %v1787
    %v2324 = vunpack.c.h.b16 %v1787
    %v2325 = vunpack.c.l.b16 %v1788
    %v2326 = vunpack.c.h.b16 %v1788
    %v2327 = vunpack.c.l.b16 %v1789
    %v2328 = vunpack.c.h.b16 %v1789
    %v2329 = vunpack.c.l.b16 %v1790
    %v2330 = vunpack.c.h.b16 %v1790
    %v2331 = vunpack.c.l.b16 %v1791
    %v2332 = vunpack.c.h.b16 %v1791
    %v2333 = vunpack.c.l.b16 %v1792
    %v2334 = vunpack.c.h.b16 %v1792
    %v2335 = vunpack.c.l.b16 %v1793
    %v2336 = vunpack.c.h.b16 %v1793
    %v2337 = vunpack.c.l.b16 %v1794
    %v2338 = vunpack.c.h.b16 %v1794
    %v2339 = vunpack.c.l.b16 %v1795
    %v2340 = vunpack.c.h.b16 %v1795
    %v2341 = vunpack.c.l.b16 %v1796
    %v2342 = vunpack.c.h.b16 %v1796
    %v2343 = vunpack.c.l.b16 %v1797
    %v2344 = vunpack.c.h.b16 %v1797
    %v2345 = vunpack.c.l.b16 %v1798
    %v2346 = vunpack.c.h.b16 %v1798
    %v2347 = vunpack.c.l.b16 %v1799
    %v2348 = vunpack.c.h.b16 %v1799
    %v2349 = vunpack.c.l.b16 %v1800
    %v2350 = vunpack.c.h.b16 %v1800
    %v2351 = vunpack.c.l.b16 %v1801
    %v2352 = vunpack.c.h.b16 %v1801
    %v2353 = vunpack.c.l.b16 %v1802
    %v2354 = vunpack.c.h.b16 %v1802
    %v2355 = vunpack.c.l.b16 %v1803
    %v2356 = vunpack.c.h.b16 %v1803
    %v2357 = vunpack.c.l.b16 %v1804
    %v2358 = vunpack.c.h.b16 %v1804
    %v2359 = vunpack.c.l.b16 %v1805
    %v2360 = vunpack.c.h.b16 %v1805
    %v2361 = vunpack.c.l.b16 %v1806
    %v2362 = vunpack.c.h.b16 %v1806
    %v2363 = vunpack.c.l.b16 %v1807
    %v2364 = vunpack.c.h.b16 %v1807
    %v2365 = vunpack.c.l.b16 %v1808
    %v2366 = vunpack.c.h.b16 %v1808
    %v2367 = vunpack.c.l.b16 %v1809
    %v2368 = vunpack.c.h.b16 %v1809
    %v2369 = vunpack.c.l.b16 %v1810
    %v2370 = vunpack.c.h.b16 %v1810
    %v2371 = vunpack.c.l.b16 %v1811
    %v2372 = vunpack.c.h.b16 %v1811
    %v2373 = vunpack.c.l.b16 %v1812
    %v2374 = vunpack.c.h.b16 %v1812
    %v2375 = vunpack.c.l.b16 %v1813
    %v2376 = vunpack.c.h.b16 %v1813
    %v2377 = vunpack.c.l.b16 %v1814
    %v2378 = vunpack.c.h.b16 %v1814
    %v2379 = vunpack.c.l.b16 %v1815
    %v2380 = vunpack.c.h.b16 %v1815
    %v2381 = vunpack.c.l.b16 %v1816
    %v2382 = vunpack.c.h.b16 %v1816
    %v2383 = vunpack.c.l.b16 %v1817
    %v2384 = vunpack.c.h.b16 %v1817
    %v2385 = vunpack.c.l.b16 %v1818
    %v2386 = vunpack.c.h.b16 %v1818
    %v2387 = vunpack.c.l.b16 %v1819
    %v2388 = vunpack.c.h.b16 %v1819
    %v2389 = vunpack.c.l.b16 %v1820
    %v2390 = vunpack.c.h.b16 %v1820
    %v2391 = vunpack.c.l.b16 %v1821
    %v2392 = vunpack.c.h.b16 %v1821
    %v2393 = vunpack.c.l.b16 %v1822
    %v2394 = vunpack.c.h.b16 %v1822
    %v2395 = vunpack.c.l.b16 %v1823
    %v2396 = vunpack.c.h.b16 %v1823
    %v2397 = vunpack.c.l.b16 %v1824
    %v2398 = vunpack.c.h.b16 %v1824
    %v2399 = vunpack.c.l.b16 %v1825
    %v2400 = vunpack.c.h.b16 %v1825
    %v2401 = vunpack.c.l.b16 %v1826
    %v2402 = vunpack.c.h.b16 %v1826
    %v2403 = vunpack.c.l.b16 %v1827
    %v2404 = vunpack.c.h.b16 %v1827
    %v2405 = vunpack.c.l.b16 %v1828
    %v2406 = vunpack.c.h.b16 %v1828
    %v2407 = vunpack.c.l.b16 %v1829
    %v2408 = vunpack.c.h.b16 %v1829
    %v2409 = vunpack.c.l.b16 %v1830
    %v2410 = vunpack.c.h.b16 %v1830
    %v2411 = vunpack.c.l.b16 %v1831
    %v2412 = vunpack.c.h.b16 %v1831
    %v2413 = vunpack.c.l.b16 %v1832
    %v2414 = vunpack.c.h.b16 %v1832
    %v2415 = vunpack.c.l.b16 %v1833
    %v2416 = vunpack.c.h.b16 %v1833
    %v2417 = vunpack.c.l.b16 %v1834
    %v2418 = vunpack.c.h.b16 %v1834
    %v2419 = vunpack.c.l.b16 %v1835
    %v2420 = vunpack.c.h.b16 %v1835
    %v2421 = vunpack.c.l.b16 %v1836
    %v2422 = vunpack.c.h.b16 %v1836
    %v2423 = vunpack.c.l.b16 %v1837
    %v2424 = vunpack.c.h.b16 %v1837
    %v2425 = vunpack.c.l.b16 %v1838
    %v2426 = vunpack.c.h.b16 %v1838
    %v2427 = vunpack.c.l.b16 %v1839
    %v2428 = vunpack.c.h.b16 %v1839
    %v2429 = vunpack.c.l.b16 %v1840
    %v2430 = vunpack.c.h.b16 %v1840
    %v2431 = vunpack.c.l.b16 %v1841
    %v2432 = vunpack.c.h.b16 %v1841
    %v2433 = vunpack.c.l.b16 %v1842
    %v2434 = vunpack.c.h.b16 %v1842
    %v2435 = vunpack.c.l.b16 %v1843
    %v2436 = vunpack.c.h.b16 %v1843
    %v2437 = vunpack.c.l.b16 %v1844
    %v2438 = vunpack.c.h.b16 %v1844
    %v2439 = vunpack.c.l.b16 %v1845
    %v2440 = vunpack.c.h.b16 %v1845
    %v2441 = vunpack.c.l.b16 %v1846
    %v2442 = vunpack.c.h.b16 %v1846
    %v2443 = vunpack.c.l.b16 %v1847
    %v2444 = vunpack.c.h.b16 %v1847
    %v2445 = vunpack.c.l.b16 %v1848
    %v2446 = vunpack.c.h.b16 %v1848
    %v2447 = vunpack.c.l.b16 %v1849
    %v2448 = vunpack.c.h.b16 %v1849
    %v2449 = vunpack.c.l.b16 %v1850
    %v2450 = vunpack.c.h.b16 %v1850
    %v2451 = vunpack.c.l.b16 %v1851
    %v2452 = vunpack.c.h.b16 %v1851
    %v2453 = vunpack.c.l.b16 %v1852
    %v2454 = vunpack.c.h.b16 %v1852
    %v2455 = vunpack.c.l.b16 %v1853
    %v2456 = vunpack.c.h.b16 %v1853
    %v2457 = vunpack.c.l.b16 %v1854
    %v2458 = vunpack.c.h.b16 %v1854
    %v2459 = vunpack.c.l.b16 %v1855
    %v2460 = vunpack.c.h.b16 %v1855
    %v2461 = vunpack.c.l.b16 %v1856
    %v2462 = vunpack.c.h.b16 %v1856
    %v2463 = vunpack.c.l.b16 %v1857
    %v2464 = vunpack.c.h.b16 %v1857
    %v2465 = vunpack.c.l.b16 %v1858
    %v2466 = vunpack.c.h.b16 %v1858
    %v2467 = vunpack.c.l.b16 %v1859
    %v2468 = vunpack.c.h.b16 %v1859
    %v2469 = vunpack.c.l.b16 %v1860
    %v2470 = vunpack.c.h.b16 %v1860
    %v2471 = vunpack.c.l.b16 %v1861
    %v2472 = vunpack.c.h.b16 %v1861
    %v2473 = vunpack.c.l.b16 %v1862
    %v2474 = vunpack.c.h.b16 %v1862
    %v2475 = vunpack.c.l.b16 %v1863
    %v2476 = vunpack.c.h.b16 %v1863
    %v2477 = vunpack.c.l.b16 %v1864
    %v2478 = vunpack.c.h.b16 %v1864
    %v2479 = vunpack.c.l.b16 %v1865
    %v2480 = vunpack.c.h.b16 %v1865
    %v2481 = vunpack.c.l.b16 %v1866
    %v2482 = vunpack.c.h.b16 %v1866
    %v2483 = vunpack.c.l.b16 %v1867
    %v2484 = vunpack.c.h.b16 %v1867
    %v2485 = vunpack.c.l.b16 %v1868
    %v2486 = vunpack.c.h.b16 %v1868
    %v2487 = vunpack.c.l.b16 %v1869
    %v2488 = vunpack.c.h.b16 %v1869
    %v2489 = vunpack.c.l.b16 %v1870
    %v2490 = vunpack.c.h.b16 %v1870
    %v2491 = vunpack.c.l.b16 %v1871
    %v2492 = vunpack.c.h.b16 %v1871
    %v2493 = vunpack.c.l.b16 %v1872
    %v2494 = vunpack.c.h.b16 %v1872
    %v2495 = vunpack.c.l.b16 %v1873
    %v2496 = vunpack.c.h.b16 %v1873
    %v2497 = vunpack.c.l.b16 %v1874
    %v2498 = vunpack.c.h.b16 %v1874
    %v2499 = vunpack.c.l.b16 %v1875
    %v2500 = vunpack.c.h.b16 %v1875
    %v2501 = vunpack.c.l.b16 %v1876
    %v2502 = vunpack.c.h.b16 %v1876
    %v2503 = vunpack.c.l.b16 %v1877
    %v2504 = vunpack.c.h.b16 %v1877
    %v2505 = vunpack.c.l.b16 %v1878
    %v2506 = vunpack.c.h.b16 %v1878
    %v2507 = vunpack.c.l.b16 %v1879
    %v2508 = vunpack.c.h.b16 %v1879
    %v2509 = vunpack.c.l.b16 %v1880
    %v2510 = vunpack.c.h.b16 %v1880
    %v2511 = vunpack.c.l.b16 %v1881
    %v2512 = vunpack.c.h.b16 %v1881
    %v2513 = vunpack.c.l.b16 %v1882
    %v2514 = vunpack.c.h.b16 %v1882
    %v2515 = vunpack.c.l.b16 %v1883
    %v2516 = vunpack.c.h.b16 %v1883
    %v2517 = vunpack.c.l.b16 %v1884
    %v2518 = vunpack.c.h.b16 %v1884
    %v2519 = vunpack.c.l.b16 %v1885
    %v2520 = vunpack.c.h.b16 %v1885
    %v2521 = vunpack.c.l.b16 %v1886
    %v2522 = vunpack.c.h.b16 %v1886
    %v2523 = vunpack.c.l.b16 %v1887
    %v2524 = vunpack.c.h.b16 %v1887
    %v2525 = vunpack.c.l.b16 %v1888
    %v2526 = vunpack.c.h.b16 %v1888
    %v2527 = vunpack.c.l.b16 %v1889
    %v2528 = vunpack.c.h.b16 %v1889
    %v2529 = vunpack.c.l.b16 %v1890
    %v2530 = vunpack.c.h.b16 %v1890
    %v2531 = vpack.c.b16 %v2159, %v2147
    %v2532 = vpack.c.b16 %v2160, %v2148
    %v2533 = vpack.c.b16 %v2161, %v2149
    %v2534 = vpack.c.b16 %v2162, %v2150
    %v2535 = vpack.c.b16 %v2163, %v2151
    %v2536 = vpack.c.b16 %v2164, %v2152
    %v2537 = vpack.c.b16 %v2165, %v2153
    %v2538 = vpack.c.b16 %v2166, %v2154
    %v2539 = vpack.c.b16 %v2167, %v2155
    %v2540 = vpack.c.b16 %v2168, %v2156
    %v2541 = vpack.c.b16 %v2169, %v2157
    %v2542 = vpack.c.b16 %v2170, %v2158
    %v2543 = vpack.c.b16 %v2183, %v2171
    %v2544 = vpack.c.b16 %v2184, %v2172
    %v2545 = vpack.c.b16 %v2185, %v2173
    %v2546 = vpack.c.b16 %v2186, %v2174
    %v2547 = vpack.c.b16 %v2187, %v2175
    %v2548 = vpack.c.b16 %v2188, %v2176
    %v2549 = vpack.c.b16 %v2189, %v2177
    %v2550 = vpack.c.b16 %v2190, %v2178
    %v2551 = vpack.c.b16 %v2191, %v2179
    %v2552 = vpack.c.b16 %v2192, %v2180
    %v2553 = vpack.c.b16 %v2193, %v2181
    %v2554 = vpack.c.b16 %v2194, %v2182
    %v2555 = vpack.c.b16 %v2207, %v2195
    %v2556 = vpack.c.b16 %v2208, %v2196
    %v2557 = vpack.c.b16 %v2209, %v2197
    %v2558 = vpack.c.b16 %v2210, %v2198
    %v2559 = vpack.c.b16 %v2211, %v2199
    %v2560 = vpack.c.b16 %v2212, %v2200
    %v2561 = vpack.c.b16 %v2213, %v2201
    %v2562 = vpack.c.b16 %v2214, %v2202
    %v2563 = vpack.c.b16 %v2215, %v2203
    %v2564 = vpack.c.b16 %v2216, %v2204
    %v2565 = vpack.c.b16 %v2217, %v2205
    %v2566 = vpack.c.b16 %v2218, %v2206
    %v2567 = vpack.c.b16 %v2231, %v2219
    %v2568 = vpack.c.b16 %v2232, %v2220
    %v2569 = vpack.c.b16 %v2233, %v2221
    %v2570 = vpack.c.b16 %v2234, %v2222
    %v2571 = vpack.c.b16 %v2235, %v2223
    %v2572 = vpack.c.b16 %v2236, %v2224
    %v2573 = vpack.c.b16 %v2237, %v2225
    %v2574 = vpack.c.b16 %v2238, %v2226
    %v2575 = vpack.c.b16 %v2239, %v2227
    %v2576 = vpack.c.b16 %v2240, %v2228
    %v2577 = vpack.c.b16 %v2241, %v2229
    %v2578 = vpack.c.b16 %v2242, %v2230
    %v2579 = vpack.c.b16 %v2255, %v2243
    %v2580 = vpack.c.b16 %v2256, %v2244
    %v2581 = vpack.c.b16 %v2257, %v2245
    %v2582 = vpack.c.b16 %v2258, %v2246
    %v2583 = vpack.c.b16 %v2259, %v2247
    %v2584 = vpack.c.b16 %v2260, %v2248
    %v2585 = vpack.c.b16 %v2261, %v2249
    %v2586 = vpack.c.b16 %v2262, %v2250
    %v2587 = vpack.c.b16 %v2263, %v2251
    %v2588 = vpack.c.b16 %v2264, %v2252
    %v2589 = vpack.c.b16 %v2265, %v2253
    %v2590 = vpack.c.b16 %v2266, %v2254
    %v2591 = vpack.c.b16 %v2279, %v2267
    %v2592 = vpack.c.b16 %v2280, %v2268
    %v2593 = vpack.c.b16 %v2281, %v2269
    %v2594 = vpack.c.b16 %v2282, %v2270
    %v2595 = vpack.c.b16 %v2283, %v2271
    %v2596 = vpack.c.b16 %v2284, %v2272
    %v2597 = vpack.c.b16 %v2285, %v2273
    %v2598 = vpack.c.b16 %v2286, %v2274
    %v2599 = vpack.c.b16 %v2287, %v2275
    %v2600 = vpack.c.b16 %v2288, %v2276
    %v2601 = vpack.c.b16 %v2289, %v2277
    %v2602 = vpack.c.b16 %v2290, %v2278
    %v2603 = vpack.c.b16 %v2303, %v2291
    %v2604 = vpack.c.b16 %v2304, %v2292
    %v2605 = vpack.c.b16 %v2305, %v2293
    %v2606 = vpack.c.b16 %v2306, %v2294
    %v2607 = vpack.c.b16 %v2307, %v2295
    %v2608 = vpack.c.b16 %v2308, %v2296
    %v2609 = vpack.c.b16 %v2309, %v2297
    %v2610 = vpack.c.b16 %v2310, %v2298
    %v2611 = vpack.c.b16 %v2311, %v2299
    %v2612 = vpack.c.b16 %v2312, %v2300
    %v2613 = vpack.c.b16 %v2313, %v2301
    %v2614 = vpack.c.b16 %v2314, %v2302
    %v2615 = vpack.c.b16 %v2327, %v2315
    %v2616 = vpack.c.b16 %v2328, %v2316
    %v2617 = vpack.c.b16 %v2329, %v2317
    %v2618 = vpack.c.b16 %v2330, %v2318
    %v2619 = vpack.c.b16 %v2331, %v2319
    %v2620 = vpack.c.b16 %v2332, %v2320
    %v2621 = vpack.c.b16 %v2333, %v2321
    %v2622 = vpack.c.b16 %v2334, %v2322
    %v2623 = vpack.c.b16 %v2335, %v2323
    %v2624 = vpack.c.b16 %v2336, %v2324
    %v2625 = vpack.c.b16 %v2337, %v2325
    %v2626 = vpack.c.b16 %v2338, %v2326
    %v2627 = vpack.c.b16 %v2351, %v2339
    %v2628 = vpack.c.b16 %v2352, %v2340
    %v2629 = vpack.c.b16 %v2353, %v2341
    %v2630 = vpack.c.b16 %v2354, %v2342
    %v2631 = vpack.c.b16 %v2355, %v2343
    %v2632 = vpack.c.b16 %v2356, %v2344
    %v2633 = vpack.c.b16 %v2357, %v2345
    %v2634 = vpack.c.b16 %v2358, %v2346
    %v2635 = vpack.c.b16 %v2359, %v2347
    %v2636 = vpack.c.b16 %v2360, %v2348
    %v2637 = vpack.c.b16 %v2361, %v2349
    %v2638 = vpack.c.b16 %v2362, %v2350
    %v2639 = vpack.c.b16 %v2375, %v2363
    %v2640 = vpack.c.b16 %v2376, %v2364
    %v2641 = vpack.c.b16 %v2377, %v2365
    %v2642 = vpack.c.b16 %v2378, %v2366
    %v2643 = vpack.c.b16 %v2379, %v2367
    %v2644 = vpack.c.b16 %v2380, %v2368
    %v2645 = vpack.c.b16 %v2381, %v2369
    %v2646 = vpack.c.b16 %v2382, %v2370
    %v2647 = vpack.c.b16 %v2383, %v2371
    %v2648 = vpack.c.b16 %v2384, %v2372
    %v2649 = vpack.c.b16 %v2385, %v2373
    %v2650 = vpack.c.b16 %v2386, %v2374
    %v2651 = vpack.c.b16 %v2399, %v2387
    %v2652 = vpack.c.b16 %v2400, %v2388
    %v2653 = vpack.c.b16 %v2401, %v2389
    %v2654 = vpack.c.b16 %v2402, %v2390
    %v2655 = vpack.c.b16 %v2403, %v2391
    %v2656 = vpack.c.b16 %v2404, %v2392
    %v2657 = vpack.c.b16 %v2405, %v2393
    %v2658 = vpack.c.b16 %v2406, %v2394
    %v2659 = vpack.c.b16 %v2407, %v2395
    %v2660 = vpack.c.b16 %v2408, %v2396
    %v2661 = vpack.c.b16 %v2409, %v2397
    %v2662 = vpack.c.b16 %v2410, %v2398
    %v2663 = vpack.c.b16 %v2423, %v2411
    %v2664 = vpack.c.b16 %v2424, %v2412
    %v2665 = vpack.c.b16 %v2425, %v2413
    %v2666 = vpack.c.b16 %v2426, %v2414
    %v2667 = vpack.c.b16 %v2427, %v2415
    %v2668 = vpack.c.b16 %v2428, %v2416
    %v2669 = vpack.c.b16 %v2429, %v2417
    %v2670 = vpack.c.b16 %v2430, %v2418
    %v2671 = vpack.c.b16 %v2431, %v2419
    %v2672 = vpack.c.b16 %v2432, %v2420
    %v2673 = vpack.c.b16 %v2433, %v2421
    %v2674 = vpack.c.b16 %v2434, %v2422
    %v2675 = vpack.c.b16 %v2447, %v2435
    %v2676 = vpack.c.b16 %v2448, %v2436
    %v2677 = vpack.c.b16 %v2449, %v2437
    %v2678 = vpack.c.b16 %v2450, %v2438
    %v2679 = vpack.c.b16 %v2451, %v2439
    %v2680 = vpack.c.b16 %v2452, %v2440
    %v2681 = vpack.c.b16 %v2453, %v2441
    %v2682 = vpack.c.b16 %v2454, %v2442
    %v2683 = vpack.c.b16 %v2455, %v2443
    %v2684 = vpack.c.b16 %v2456, %v2444
    %v2685 = vpack.c.b16 %v2457, %v2445
    %v2686 = vpack.c.b16 %v2458, %v2446
    %v2687 = vpack.c.b16 %v2471, %v2459
    %v2688 = vpack.c.b16 %v2472, %v2460
    %v2689 = vpack.c.b16 %v2473, %v2461
    %v2690 = vpack.c.b16 %v2474, %v2462
    %v2691 = vpack.c.b16 %v2475, %v2463
    %v2692 = vpack.c.b16 %v2476, %v2464
    %v2693 = vpack.c.b16 %v2477, %v2465
    %v2694 = vpack.c.b16 %v2478, %v2466
    %v2695 = vpack.c.b16 %v2479, %v2467
    %v2696 = vpack.c.b16 %v2480, %v2468
    %v2697 = vpack.c.b16 %v2481, %v2469
    %v2698 = vpack.c.b16 %v2482, %v2470
    %v2699 = vpack.c.b16 %v2495, %v2483
    %v2700 = vpack.c.b16 %v2496, %v2484
    %v2701 = vpack.c.b16 %v2497, %v2485
    %v2702 = vpack.c.b16 %v2498, %v2486
    %v2703 = vpack.c.b16 %v2499, %v2487
    %v2704 = vpack.c.b16 %v2500, %v2488
    %v2705 = vpack.c.b16 %v2501, %v2489
    %v2706 = vpack.c.b16 %v2502, %v2490
    %v2707 = vpack.c.b16 %v2503, %v2491
    %v2708 = vpack.c.b16 %v2504, %v2492
    %v2709 = vpack.c.b16 %v2505, %v2493
    %v2710 = vpack.c.b16 %v2506, %v2494
    %v2711 = vpack.c.b16 %v2519, %v2507
    %v2712 = vpack.c.b16 %v2520, %v2508
    %v2713 = vpack.c.b16 %v2521, %v2509
    %v2714 = vpack.c.b16 %v2522, %v2510
    %v2715 = vpack.c.b16 %v2523, %v2511
    %v2716 = vpack.c.b16 %v2524, %v2512
    %v2717 = vpack.c.b16 %v2525, %v2513
    %v2718 = vpack.c.b16 %v2526, %v2514
    %v2719 = vpack.c.b16 %v2527, %v2515
    %v2720 = vpack.c.b16 %v2528, %v2516
    %v2721 = vpack.c.b16 %v2529, %v2517
    %v2722 = vpack.c.b16 %v2530, %v2518
    %2915 = vmatprep.subr.bf16.mxu0 %v2532
    %2916 = vmatpush1.bf16.msra.mxu0 %v2531
    %2917 = vmatprep.subr.bf16.mxu0 %v2544
    %2918 = vmatpush1.bf16.msra.mxu0 %v2543
    %2919 = vmatprep.subr.bf16.mxu0 %v2556
    %2920 = vmatpush1.bf16.msra.mxu0 %v2555
    %2921 = vmatprep.subr.bf16.mxu0 %v2568
    %2922 = vmatpush1.bf16.msra.mxu0 %v2567
    %2923 = vmatprep.subr.bf16.mxu0 %v2580
    %2924 = vmatpush1.bf16.msra.mxu0 %v2579
    %2925 = vmatprep.subr.bf16.mxu0 %v2592
    %2926 = vmatpush1.bf16.msra.mxu0 %v2591
    %2927 = vmatprep.subr.bf16.mxu0 %v2604
    %2928 = vmatpush1.bf16.msra.mxu0 %v2603
    %2929 = vmatprep.subr.bf16.mxu0 %v2616
    %2930 = vmatpush1.bf16.msra.mxu0 %v2615
    %2931 = vmatprep.subr.bf16.mxu0 %v2628
    %2932 = vmatpush1.bf16.msra.mxu0 %v2627
    %2933 = vmatprep.subr.bf16.mxu0 %v2640
    %2934 = vmatpush1.bf16.msra.mxu0 %v2639
    %2935 = vmatprep.subr.bf16.mxu0 %v2652
    %2936 = vmatpush1.bf16.msra.mxu0 %v2651
    %2937 = vmatprep.subr.bf16.mxu0 %v2664
    %2938 = vmatpush1.bf16.msra.mxu0 %v2663
    %2939 = vmatprep.subr.bf16.mxu0 %v2676
    %2940 = vmatpush1.bf16.msra.mxu0 %v2675
    %2941 = vmatprep.subr.bf16.mxu0 %v2688
    %2942 = vmatpush1.bf16.msra.mxu0 %v2687
    %2943 = vmatprep.subr.bf16.mxu0 %v2700
    %2944 = vmatpush1.bf16.msra.mxu0 %v2699
    %2945 = vmatprep.subr.bf16.mxu0 %v2712
    %2946 = vmatpush1.bf16.msra.mxu0 %v2711
    %2947 = vmatprep.mubr.bf16.mxu0 %v1698
    %2948 = vmatmul.mubr.bf16.gmra.mrb[0].mxu0 %v1697
    %v2949 = vpop.f32.mrb[0].mxu0
    %v2950 = vadd.f32 %v1898, %v2949
    %v2951 = vpop.f32.mrb[0].mxu0
    %v2952 = vadd.f32 %v1902, %v2951
    %v2953 = vpop.f32.mrb[0].mxu0
    %v2954 = vpop.f32.mrb[0].mxu0
    %2955 = vdwg.mxu0
    %2956 = vmatprep.subr.bf16.mxu0 %v2534
    %2957 = vmatpush1.bf16.msra.mxu0 %v2533
    %2958 = vmatprep.subr.bf16.mxu0 %v2546
    %2959 = vmatpush1.bf16.msra.mxu0 %v2545
    %2960 = vmatprep.subr.bf16.mxu0 %v2558
    %2961 = vmatpush1.bf16.msra.mxu0 %v2557
    %2962 = vmatprep.subr.bf16.mxu0 %v2570
    %2963 = vmatpush1.bf16.msra.mxu0 %v2569
    %2964 = vmatprep.subr.bf16.mxu0 %v2582
    %2965 = vmatpush1.bf16.msra.mxu0 %v2581
    %2966 = vmatprep.subr.bf16.mxu0 %v2594
    %2967 = vmatpush1.bf16.msra.mxu0 %v2593
    %2968 = vmatprep.subr.bf16.mxu0 %v2606
    %2969 = vmatpush1.bf16.msra.mxu0 %v2605
    %2970 = vmatprep.subr.bf16.mxu0 %v2618
    %2971 = vmatpush1.bf16.msra.mxu0 %v2617
    %2972 = vmatprep.subr.bf16.mxu0 %v2630
    %2973 = vmatpush1.bf16.msra.mxu0 %v2629
    %2974 = vmatprep.subr.bf16.mxu0 %v2642
    %2975 = vmatpush1.bf16.msra.mxu0 %v2641
    %2976 = vmatprep.subr.bf16.mxu0 %v2654
    %2977 = vmatpush1.bf16.msra.mxu0 %v2653
    %2978 = vmatprep.subr.bf16.mxu0 %v2666
    %2979 = vmatpush1.bf16.msra.mxu0 %v2665
    %2980 = vmatprep.subr.bf16.mxu0 %v2678
    %2981 = vmatpush1.bf16.msra.mxu0 %v2677
    %2982 = vmatprep.subr.bf16.mxu0 %v2690
    %2983 = vmatpush1.bf16.msra.mxu0 %v2689
    %2984 = vmatprep.subr.bf16.mxu0 %v2702
    %2985 = vmatpush1.bf16.msra.mxu0 %v2701
    %2986 = vmatprep.subr.bf16.mxu0 %v2714
    %2987 = vmatpush1.bf16.msra.mxu0 %v2713
    %2988 = vmatprep.mubr.bf16.mxu0 %v1698
    %2989 = vmatmul.mubr.bf16.gmra.mrb[0].mxu0 %v1697
    %v2990 = vpop.f32.mrb[0].mxu0
    %v2991 = vadd.f32 %v1906, %v2990
    %v2992 = vpop.f32.mrb[0].mxu0
    %v2993 = vadd.f32 %v1910, %v2992
    %v2994 = vpop.f32.mrb[0].mxu0
    %v2995 = vpop.f32.mrb[0].mxu0
    %2996 = vdwg.mxu0
    %2997 = vmatprep.subr.bf16.mxu0 %v2536
    %2998 = vmatpush1.bf16.msra.mxu0 %v2535
    %2999 = vmatprep.subr.bf16.mxu0 %v2548
    %3000 = vmatpush1.bf16.msra.mxu0 %v2547
    %3001 = vmatprep.subr.bf16.mxu0 %v2560
    %3002 = vmatpush1.bf16.msra.mxu0 %v2559
    %3003 = vmatprep.subr.bf16.mxu0 %v2572
    %3004 = vmatpush1.bf16.msra.mxu0 %v2571
    %3005 = vmatprep.subr.bf16.mxu0 %v2584
    %3006 = vmatpush1.bf16.msra.mxu0 %v2583
    %3007 = vmatprep.subr.bf16.mxu0 %v2596
    %3008 = vmatpush1.bf16.msra.mxu0 %v2595
    %3009 = vmatprep.subr.bf16.mxu0 %v2608
    %3010 = vmatpush1.bf16.msra.mxu0 %v2607
    %3011 = vmatprep.subr.bf16.mxu0 %v2620
    %3012 = vmatpush1.bf16.msra.mxu0 %v2619
    %3013 = vmatprep.subr.bf16.mxu0 %v2632
    %3014 = vmatpush1.bf16.msra.mxu0 %v2631
    %3015 = vmatprep.subr.bf16.mxu0 %v2644
    %3016 = vmatpush1.bf16.msra.mxu0 %v2643
    %3017 = vmatprep.subr.bf16.mxu0 %v2656
    %3018 = vmatpush1.bf16.msra.mxu0 %v2655
    %3019 = vmatprep.subr.bf16.mxu0 %v2668
    %3020 = vmatpush1.bf16.msra.mxu0 %v2667
    %3021 = vmatprep.subr.bf16.mxu0 %v2680
    %3022 = vmatpush1.bf16.msra.mxu0 %v2679
    %3023 = vmatprep.subr.bf16.mxu0 %v2692
    %3024 = vmatpush1.bf16.msra.mxu0 %v2691
    %3025 = vmatprep.subr.bf16.mxu0 %v2704
    %3026 = vmatpush1.bf16.msra.mxu0 %v2703
    %3027 = vmatprep.subr.bf16.mxu0 %v2716
    %3028 = vmatpush1.bf16.msra.mxu0 %v2715
    %3029 = vmatprep.mubr.bf16.mxu0 %v1698
    %3030 = vmatmul.mubr.bf16.gmra.mrb[0].mxu0 %v1697
    %v3031 = vpop.f32.mrb[0].mxu0
    %v3032 = vadd.f32 %v1914, %v3031
    %v3033 = vpop.f32.mrb[0].mxu0
    %v3034 = vadd.f32 %v1918, %v3033
    %v3035 = vpop.f32.mrb[0].mxu0
    %v3036 = vpop.f32.mrb[0].mxu0
    %3037 = vdwg.mxu0
    %3038 = vmatprep.subr.bf16.mxu0 %v2538
    %3039 = vmatpush1.bf16.msra.mxu0 %v2537
    %3040 = vmatprep.subr.bf16.mxu0 %v2550
    %3041 = vmatpush1.bf16.msra.mxu0 %v2549
    %3042 = vmatprep.subr.bf16.mxu0 %v2562
    %3043 = vmatpush1.bf16.msra.mxu0 %v2561
    %3044 = vmatprep.subr.bf16.mxu0 %v2574
    %3045 = vmatpush1.bf16.msra.mxu0 %v2573
    %3046 = vmatprep.subr.bf16.mxu0 %v2586
    %3047 = vmatpush1.bf16.msra.mxu0 %v2585
    %3048 = vmatprep.subr.bf16.mxu0 %v2598
    %3049 = vmatpush1.bf16.msra.mxu0 %v2597
    %3050 = vmatprep.subr.bf16.mxu0 %v2610
    %3051 = vmatpush1.bf16.msra.mxu0 %v2609
    %3052 = vmatprep.subr.bf16.mxu0 %v2622
    %3053 = vmatpush1.bf16.msra.mxu0 %v2621
    %3054 = vmatprep.subr.bf16.mxu0 %v2634
    %3055 = vmatpush1.bf16.msra.mxu0 %v2633
    %3056 = vmatprep.subr.bf16.mxu0 %v2646
    %3057 = vmatpush1.bf16.msra.mxu0 %v2645
    %3058 = vmatprep.subr.bf16.mxu0 %v2658
    %3059 = vmatpush1.bf16.msra.mxu0 %v2657
    %3060 = vmatprep.subr.bf16.mxu0 %v2670
    %3061 = vmatpush1.bf16.msra.mxu0 %v2669
    %3062 = vmatprep.subr.bf16.mxu0 %v2682
    %3063 = vmatpush1.bf16.msra.mxu0 %v2681
    %3064 = vmatprep.subr.bf16.mxu0 %v2694
    %3065 = vmatpush1.bf16.msra.mxu0 %v2693
    %3066 = vmatprep.subr.bf16.mxu0 %v2706
    %3067 = vmatpush1.bf16.msra.mxu0 %v2705
    %3068 = vmatprep.subr.bf16.mxu0 %v2718
    %3069 = vmatpush1.bf16.msra.mxu0 %v2717
    %3070 = vmatprep.mubr.bf16.mxu0 %v1698
    %3071 = vmatmul.mubr.bf16.gmra.mrb[0].mxu0 %v1697
    %v3072 = vpop.f32.mrb[0].mxu0
    %v3073 = vadd.f32 %v1922, %v3072
    %v3074 = vpop.f32.mrb[0].mxu0
    %v3075 = vadd.f32 %v1926, %v3074
    %v3076 = vpop.f32.mrb[0].mxu0
    %v3077 = vpop.f32.mrb[0].mxu0
    %3078 = vdwg.mxu0
    %3079 = vmatprep.subr.bf16.mxu0 %v2540
    %3080 = vmatpush1.bf16.msra.mxu0 %v2539
    %3081 = vmatprep.subr.bf16.mxu0 %v2552
    %3082 = vmatpush1.bf16.msra.mxu0 %v2551
    %3083 = vmatprep.subr.bf16.mxu0 %v2564
    %3084 = vmatpush1.bf16.msra.mxu0 %v2563
    %3085 = vmatprep.subr.bf16.mxu0 %v2576
    %3086 = vmatpush1.bf16.msra.mxu0 %v2575
    %3087 = vmatprep.subr.bf16.mxu0 %v2588
    %3088 = vmatpush1.bf16.msra.mxu0 %v2587
    %3089 = vmatprep.subr.bf16.mxu0 %v2600
    %3090 = vmatpush1.bf16.msra.mxu0 %v2599
    %3091 = vmatprep.subr.bf16.mxu0 %v2612
    %3092 = vmatpush1.bf16.msra.mxu0 %v2611
    %3093 = vmatprep.subr.bf16.mxu0 %v2624
    %3094 = vmatpush1.bf16.msra.mxu0 %v2623
    %3095 = vmatprep.subr.bf16.mxu0 %v2636
    %3096 = vmatpush1.bf16.msra.mxu0 %v2635
    %3097 = vmatprep.subr.bf16.mxu0 %v2648
    %3098 = vmatpush1.bf16.msra.mxu0 %v2647
    %3099 = vmatprep.subr.bf16.mxu0 %v2660
    %3100 = vmatpush1.bf16.msra.mxu0 %v2659
    %3101 = vmatprep.subr.bf16.mxu0 %v2672
    %3102 = vmatpush1.bf16.msra.mxu0 %v2671
    %3103 = vmatprep.subr.bf16.mxu0 %v2684
    %3104 = vmatpush1.bf16.msra.mxu0 %v2683
    %3105 = vmatprep.subr.bf16.mxu0 %v2696
    %3106 = vmatpush1.bf16.msra.mxu0 %v2695
    %3107 = vmatprep.subr.bf16.mxu0 %v2708
    %3108 = vmatpush1.bf16.msra.mxu0 %v2707
    %3109 = vmatprep.subr.bf16.mxu0 %v2720
    %3110 = vmatpush1.bf16.msra.mxu0 %v2719
    %3111 = vmatprep.mubr.bf16.mxu0 %v1698
    %3112 = vmatmul.mubr.bf16.gmra.mrb[0].mxu0 %v1697
    %v3113 = vpop.f32.mrb[0].mxu0
    %v3114 = vadd.f32 %v1930, %v3113
    %v3115 = vpop.f32.mrb[0].mxu0
    %v3116 = vadd.f32 %v1934, %v3115
    %v3117 = vpop.f32.mrb[0].mxu0
    %v3118 = vpop.f32.mrb[0].mxu0
    %3119 = vdwg.mxu0
    %3120 = vmatprep.subr.bf16.mxu0 %v2542
    %3121 = vmatpush1.bf16.msra.mxu0 %v2541
    %3122 = vmatprep.subr.bf16.mxu0 %v2554
    %3123 = vmatpush1.bf16.msra.mxu0 %v2553
    %3124 = vmatprep.subr.bf16.mxu0 %v2566
    %3125 = vmatpush1.bf16.msra.mxu0 %v2565
    %3126 = vmatprep.subr.bf16.mxu0 %v2578
    %3127 = vmatpush1.bf16.msra.mxu0 %v2577
    %3128 = vmatprep.subr.bf16.mxu0 %v2590
    %3129 = vmatpush1.bf16.msra.mxu0 %v2589
    %3130 = vmatprep.subr.bf16.mxu0 %v2602
    %3131 = vmatpush1.bf16.msra.mxu0 %v2601
    %3132 = vmatprep.subr.bf16.mxu0 %v2614
    %3133 = vmatpush1.bf16.msra.mxu0 %v2613
    %3134 = vmatprep.subr.bf16.mxu0 %v2626
    %3135 = vmatpush1.bf16.msra.mxu0 %v2625
    %3136 = vmatprep.subr.bf16.mxu0 %v2638
    %3137 = vmatpush1.bf16.msra.mxu0 %v2637
    %3138 = vmatprep.subr.bf16.mxu0 %v2650
    %3139 = vmatpush1.bf16.msra.mxu0 %v2649
    %3140 = vmatprep.subr.bf16.mxu0 %v2662
    %3141 = vmatpush1.bf16.msra.mxu0 %v2661
    %3142 = vmatprep.subr.bf16.mxu0 %v2674
    %3143 = vmatpush1.bf16.msra.mxu0 %v2673
    %3144 = vmatprep.subr.bf16.mxu0 %v2686
    %3145 = vmatpush1.bf16.msra.mxu0 %v2685
    %3146 = vmatprep.subr.bf16.mxu0 %v2698
    %3147 = vmatpush1.bf16.msra.mxu0 %v2697
    %3148 = vmatprep.subr.bf16.mxu0 %v2710
    %3149 = vmatpush1.bf16.msra.mxu0 %v2709
    %3150 = vmatprep.subr.bf16.mxu0 %v2722
    %3151 = vmatpush1.bf16.msra.mxu0 %v2721
    %3152 = vmatprep.mubr.bf16.mxu0 %v1698
    %3153 = vmatmul.mubr.bf16.gmra.mrb[0].mxu0 %v1697
    %v3154 = vpop.f32.mrb[0].mxu0
    %v3155 = vadd.f32 %v1938, %v3154
    %v3156 = vpop.f32.mrb[0].mxu0
    %v3157 = vadd.f32 %v1942, %v3156
    %v3158 = vpop.f32.mrb[0].mxu0
    %v3159 = vpop.f32.mrb[0].mxu0
    %3160 = vdwg.mxu0
    %v3161 = vxor.u32 %v2950, 2147483648
    %v3162 = vxor.u32 %v2952, 2147483648
    %v3163 = vxor.u32 %v2991, 2147483648
    %v3164 = vxor.u32 %v2993, 2147483648
    %v3165 = vxor.u32 %v3032, 2147483648
    %v3166 = vxor.u32 %v3034, 2147483648
    %v3167 = vxor.u32 %v3073, 2147483648
    %v3168 = vxor.u32 %v3075, 2147483648
    %v3169 = vxor.u32 %v3114, 2147483648
    %v3170 = vxor.u32 %v3116, 2147483648
    %v3171 = vxor.u32 %v3155, 2147483648
    %v3172 = vxor.u32 %v3157, 2147483648
    %v3173 = vmul.f32 %v3161, 1.442695
    %v3174 = vpow.pop %v3173
    %v3175 = vmul.f32 %v3162, 1.442695
    %v3176 = vpow.pop %v3175
    %v3177 = vmul.f32 %v3163, 1.442695
    %v3178 = vpow.pop %v3177
    %v3179 = vmul.f32 %v3164, 1.442695
    %v3180 = vpow.pop %v3179
    %v3181 = vmul.f32 %v3165, 1.442695
    %v3182 = vpow.pop %v3181
    %v3183 = vmul.f32 %v3166, 1.442695
    %v3184 = vpow.pop %v3183
    %v3185 = vmul.f32 %v3167, 1.442695
    %v3186 = vpow.pop %v3185
    %v3187 = vmul.f32 %v3168, 1.442695
    %v3188 = vpow.pop %v3187
    %v3189 = vmul.f32 %v3169, 1.442695
    %v3190 = vpow.pop %v3189
    %v3191 = vmul.f32 %v3170, 1.442695
    %v3192 = vpow.pop %v3191
    %v3193 = vmul.f32 %v3171, 1.442695
    %v3194 = vpow.pop %v3193
    %v3195 = vmul.f32 %v3172, 1.442695
    %v3196 = vpow.pop %v3195
    %v3197 = vadd.f32 %v3174, 1.0
    %v3198 = vadd.f32 %v3176, 1.0
    %v3199 = vadd.f32 %v3178, 1.0
    %v3200 = vadd.f32 %v3180, 1.0
    %v3201 = vadd.f32 %v3182, 1.0
    %v3202 = vadd.f32 %v3184, 1.0
    %v3203 = vadd.f32 %v3186, 1.0
    %v3204 = vadd.f32 %v3188, 1.0
    %v3205 = vadd.f32 %v3190, 1.0
    %v3206 = vadd.f32 %v3192, 1.0
    %v3207 = vadd.f32 %v3194, 1.0
    %v3208 = vadd.f32 %v3196, 1.0
    %v3209 = vrcp.pop %v3197
    %v3210 = vmul.f32 1.0, %v3209
    %v3211 = vrcp.pop %v3198
    %v3212 = vmul.f32 1.0, %v3211
    %v3213 = vrcp.pop %v3199
    %v3214 = vmul.f32 1.0, %v3213
    %v3215 = vrcp.pop %v3200
    %v3216 = vmul.f32 1.0, %v3215
    %v3217 = vrcp.pop %v3201
    %v3218 = vmul.f32 1.0, %v3217
    %v3219 = vrcp.pop %v3202
    %v3220 = vmul.f32 1.0, %v3219
    %v3221 = vrcp.pop %v3203
    %v3222 = vmul.f32 1.0, %v3221
    %v3223 = vrcp.pop %v3204
    %v3224 = vmul.f32 1.0, %v3223
    %v3225 = vrcp.pop %v3205
    %v3226 = vmul.f32 1.0, %v3225
    %v3227 = vrcp.pop %v3206
    %v3228 = vmul.f32 1.0, %v3227
    %v3229 = vrcp.pop %v3207
    %v3230 = vmul.f32 1.0, %v3229
    %v3231 = vrcp.pop %v3208
    %v3232 = vmul.f32 1.0, %v3231
    %v3233 = vmul.f32 %v261, %v3210
    %v3234 = vmul.f32 %v262, %v3212
    %v3235 = vmul.f32 %v263, %v3214
    %v3236 = vmul.f32 %v264, %v3216
    %v3237 = vmul.f32 %v265, %v3218
    %v3238 = vmul.f32 %v266, %v3220
    %v3239 = vmul.f32 %v267, %v3222
    %v3240 = vmul.f32 %v268, %v3224
    %v3241 = vmul.f32 %v269, %v3226
    %v3242 = vmul.f32 %v270, %v3228
    %v3243 = vmul.f32 %v271, %v3230
    %v3244 = vmul.f32 %v272, %v3232
    %v3245 = vpack.c.bf16 %v3233, %v3233
    %v3246 = vpack.c.bf16 %v3234, %v3234
    %v3247 = vpack.c.bf16 %v3235, %v3235
    %v3248 = vpack.c.bf16 %v3236, %v3236
    %v3249 = vpack.c.bf16 %v3237, %v3237
    %v3250 = vpack.c.bf16 %v3238, %v3238
    %v3251 = vpack.c.bf16 %v3239, %v3239
    %v3252 = vpack.c.bf16 %v3240, %v3240
    %v3253 = vpack.c.bf16 %v3241, %v3241
    %v3254 = vpack.c.bf16 %v3242, %v3242
    %v3255 = vpack.c.bf16 %v3243, %v3243
    %v3256 = vpack.c.bf16 %v3244, %v3244
    %v3257 = vld [vmem:[#allocation11] sm:$0xff]
    %v3258 = vld [vmem:[#allocation11 + $0x8] sm:$0xff]
    %v3259 = vld [vmem:[#allocation11 + $0x10] sm:$0xff]
    %v3260 = vld [vmem:[#allocation11 + $0x18] sm:$0xff]
    %v3261 = vld [vmem:[#allocation11 + $0x20] sm:$0xff]
    %v3262 = vld [vmem:[#allocation11 + $0x28] sm:$0xff]
    %v3263 = vld [vmem:[#allocation11 + $0x30] sm:$0xff]
    %v3264 = vld [vmem:[#allocation11 + $0x38] sm:$0xff]
    %v3265 = vld [vmem:[#allocation11 + $0x40] sm:$0xff]
    %v3266 = vld [vmem:[#allocation11 + $0x48] sm:$0xff]
    %v3267 = vld [vmem:[#allocation11 + $0x50] sm:$0xff]
    %v3268 = vld [vmem:[#allocation11 + $0x58] sm:$0xff]
    %v3269 = vld [vmem:[#allocation11 + $0x60] sm:$0xff]
    %v3270 = vld [vmem:[#allocation11 + $0x68] sm:$0xff]
    %v3271 = vld [vmem:[#allocation11 + $0x70] sm:$0xff]
    %v3272 = vld [vmem:[#allocation11 + $0x78] sm:$0xff]
    %v3273 = vld [vmem:[#allocation11 + $0x80] sm:$0xff]
    %v3274 = vld [vmem:[#allocation11 + $0x88] sm:$0xff]
    %v3275 = vld [vmem:[#allocation11 + $0x90] sm:$0xff]
    %v3276 = vld [vmem:[#allocation11 + $0x98] sm:$0xff]
    %v3277 = vld [vmem:[#allocation11 + $0xa0] sm:$0xff]
    %v3278 = vld [vmem:[#allocation11 + $0xa8] sm:$0xff]
    %v3279 = vld [vmem:[#allocation11 + $0xb0] sm:$0xff]
    %v3280 = vld [vmem:[#allocation11 + $0xb8] sm:$0xff]
    %v3281 = vld [vmem:[#allocation11 + $0xc0] sm:$0xff]
    %v3282 = vld [vmem:[#allocation11 + $0xc8] sm:$0xff]
    %v3283 = vld [vmem:[#allocation11 + $0xd0] sm:$0xff]
    %v3284 = vld [vmem:[#allocation11 + $0xd8] sm:$0xff]
    %v3285 = vld [vmem:[#allocation11 + $0xe0] sm:$0xff]
    %v3286 = vld [vmem:[#allocation11 + $0xe8] sm:$0xff]
    %v3287 = vld [vmem:[#allocation11 + $0xf0] sm:$0xff]
    %v3288 = vld [vmem:[#allocation11 + $0xf8] sm:$0xff]
    %v3289 = vld [vmem:[#allocation11 + $0x100] sm:$0xff]
    %v3290 = vld [vmem:[#allocation11 + $0x108] sm:$0xff]
    %v3291 = vld [vmem:[#allocation11 + $0x110] sm:$0xff]
    %v3292 = vld [vmem:[#allocation11 + $0x118] sm:$0xff]
    %v3293 = vld [vmem:[#allocation11 + $0x120] sm:$0xff]
    %v3294 = vld [vmem:[#allocation11 + $0x128] sm:$0xff]
    %v3295 = vld [vmem:[#allocation11 + $0x130] sm:$0xff]
    %v3296 = vld [vmem:[#allocation11 + $0x138] sm:$0xff]
    %v3297 = vld [vmem:[#allocation11 + $0x140] sm:$0xff]
    %v3298 = vld [vmem:[#allocation11 + $0x148] sm:$0xff]
    %v3299 = vld [vmem:[#allocation11 + $0x150] sm:$0xff]
    %v3300 = vld [vmem:[#allocation11 + $0x158] sm:$0xff]
    %v3301 = vld [vmem:[#allocation11 + $0x160] sm:$0xff]
    %v3302 = vld [vmem:[#allocation11 + $0x168] sm:$0xff]
    %v3303 = vld [vmem:[#allocation11 + $0x170] sm:$0xff]
    %v3304 = vld [vmem:[#allocation11 + $0x178] sm:$0xff]
    %v3305 = vld [vmem:[#allocation11 + $0x180] sm:$0xff]
    %v3306 = vld [vmem:[#allocation11 + $0x188] sm:$0xff]
    %v3307 = vld [vmem:[#allocation11 + $0x190] sm:$0xff]
    %v3308 = vld [vmem:[#allocation11 + $0x198] sm:$0xff]
    %v3309 = vld [vmem:[#allocation11 + $0x1a0] sm:$0xff]
    %v3310 = vld [vmem:[#allocation11 + $0x1a8] sm:$0xff]
    %v3311 = vld [vmem:[#allocation11 + $0x1b0] sm:$0xff]
    %v3312 = vld [vmem:[#allocation11 + $0x1b8] sm:$0xff]
    %v3313 = vld [vmem:[#allocation11 + $0x1c0] sm:$0xff]
    %v3314 = vld [vmem:[#allocation11 + $0x1c8] sm:$0xff]
    %v3315 = vld [vmem:[#allocation11 + $0x1d0] sm:$0xff]
    %v3316 = vld [vmem:[#allocation11 + $0x1d8] sm:$0xff]
    %v3317 = vld [vmem:[#allocation11 + $0x1e0] sm:$0xff]
    %v3318 = vld [vmem:[#allocation11 + $0x1e8] sm:$0xff]
    %v3319 = vld [vmem:[#allocation11 + $0x1f0] sm:$0xff]
    %v3320 = vld [vmem:[#allocation11 + $0x1f8] sm:$0xff]
    %v3321 = vld [vmem:[#allocation11 + $0x200] sm:$0xff]
    %v3322 = vld [vmem:[#allocation11 + $0x208] sm:$0xff]
    %v3323 = vld [vmem:[#allocation11 + $0x210] sm:$0xff]
    %v3324 = vld [vmem:[#allocation11 + $0x218] sm:$0xff]
    %v3325 = vld [vmem:[#allocation11 + $0x220] sm:$0xff]
    %v3326 = vld [vmem:[#allocation11 + $0x228] sm:$0xff]
    %v3327 = vld [vmem:[#allocation11 + $0x230] sm:$0xff]
    %v3328 = vld [vmem:[#allocation11 + $0x238] sm:$0xff]
    %v3329 = vld [vmem:[#allocation11 + $0x240] sm:$0xff]
    %v3330 = vld [vmem:[#allocation11 + $0x248] sm:$0xff]
    %v3331 = vld [vmem:[#allocation11 + $0x250] sm:$0xff]
    %v3332 = vld [vmem:[#allocation11 + $0x258] sm:$0xff]
    %v3333 = vld [vmem:[#allocation11 + $0x260] sm:$0xff]
    %v3334 = vld [vmem:[#allocation11 + $0x268] sm:$0xff]
    %v3335 = vld [vmem:[#allocation11 + $0x270] sm:$0xff]
    %v3336 = vld [vmem:[#allocation11 + $0x278] sm:$0xff]
    %v3337 = vld [vmem:[#allocation11 + $0x280] sm:$0xff]
    %v3338 = vld [vmem:[#allocation11 + $0x288] sm:$0xff]
    %v3339 = vld [vmem:[#allocation11 + $0x290] sm:$0xff]
    %v3340 = vld [vmem:[#allocation11 + $0x298] sm:$0xff]
    %v3341 = vld [vmem:[#allocation11 + $0x2a0] sm:$0xff]
    %v3342 = vld [vmem:[#allocation11 + $0x2a8] sm:$0xff]
    %v3343 = vld [vmem:[#allocation11 + $0x2b0] sm:$0xff]
    %v3344 = vld [vmem:[#allocation11 + $0x2b8] sm:$0xff]
    %v3345 = vld [vmem:[#allocation11 + $0x2c0] sm:$0xff]
    %v3346 = vld [vmem:[#allocation11 + $0x2c8] sm:$0xff]
    %v3347 = vld [vmem:[#allocation11 + $0x2d0] sm:$0xff]
    %v3348 = vld [vmem:[#allocation11 + $0x2d8] sm:$0xff]
    %v3349 = vld [vmem:[#allocation11 + $0x2e0] sm:$0xff]
    %v3350 = vld [vmem:[#allocation11 + $0x2e8] sm:$0xff]
    %v3351 = vld [vmem:[#allocation11 + $0x2f0] sm:$0xff]
    %v3352 = vld [vmem:[#allocation11 + $0x2f8] sm:$0xff]
    %v3353 = vld [vmem:[#allocation11 + $0x300] sm:$0xff]
    %v3354 = vld [vmem:[#allocation11 + $0x308] sm:$0xff]
    %v3355 = vld [vmem:[#allocation11 + $0x310] sm:$0xff]
    %v3356 = vld [vmem:[#allocation11 + $0x318] sm:$0xff]
    %v3357 = vld [vmem:[#allocation11 + $0x320] sm:$0xff]
    %v3358 = vld [vmem:[#allocation11 + $0x328] sm:$0xff]
    %v3359 = vld [vmem:[#allocation11 + $0x330] sm:$0xff]
    %v3360 = vld [vmem:[#allocation11 + $0x338] sm:$0xff]
    %v3361 = vld [vmem:[#allocation11 + $0x340] sm:$0xff]
    %v3362 = vld [vmem:[#allocation11 + $0x348] sm:$0xff]
    %v3363 = vld [vmem:[#allocation11 + $0x350] sm:$0xff]
    %v3364 = vld [vmem:[#allocation11 + $0x358] sm:$0xff]
    %v3365 = vld [vmem:[#allocation11 + $0x360] sm:$0xff]
    %v3366 = vld [vmem:[#allocation11 + $0x368] sm:$0xff]
    %v3367 = vld [vmem:[#allocation11 + $0x370] sm:$0xff]
    %v3368 = vld [vmem:[#allocation11 + $0x378] sm:$0xff]
    %v3369 = vld [vmem:[#allocation11 + $0x380] sm:$0xff]
    %v3370 = vld [vmem:[#allocation11 + $0x388] sm:$0xff]
    %v3371 = vld [vmem:[#allocation11 + $0x390] sm:$0xff]
    %v3372 = vld [vmem:[#allocation11 + $0x398] sm:$0xff]
    %v3373 = vld [vmem:[#allocation11 + $0x3a0] sm:$0xff]
    %v3374 = vld [vmem:[#allocation11 + $0x3a8] sm:$0xff]
    %v3375 = vld [vmem:[#allocation11 + $0x3b0] sm:$0xff]
    %v3376 = vld [vmem:[#allocation11 + $0x3b8] sm:$0xff]
    %v3377 = vld [vmem:[#allocation11 + $0x3c0] sm:$0xff]
    %v3378 = vld [vmem:[#allocation11 + $0x3c8] sm:$0xff]
    %v3379 = vld [vmem:[#allocation11 + $0x3d0] sm:$0xff]
    %v3380 = vld [vmem:[#allocation11 + $0x3d8] sm:$0xff]
    %v3381 = vld [vmem:[#allocation11 + $0x3e0] sm:$0xff]
    %v3382 = vld [vmem:[#allocation11 + $0x3e8] sm:$0xff]
    %v3383 = vld [vmem:[#allocation11 + $0x3f0] sm:$0xff]
    %v3384 = vld [vmem:[#allocation11 + $0x3f8] sm:$0xff]
    %v3385 = vld [vmem:[#allocation11 + $0x400] sm:$0xff]
    %v3386 = vld [vmem:[#allocation11 + $0x408] sm:$0xff]
    %v3387 = vld [vmem:[#allocation11 + $0x410] sm:$0xff]
    %v3388 = vld [vmem:[#allocation11 + $0x418] sm:$0xff]
    %v3389 = vld [vmem:[#allocation11 + $0x420] sm:$0xff]
    %v3390 = vld [vmem:[#allocation11 + $0x428] sm:$0xff]
    %v3391 = vld [vmem:[#allocation11 + $0x430] sm:$0xff]
    %v3392 = vld [vmem:[#allocation11 + $0x438] sm:$0xff]
    %v3393 = vld [vmem:[#allocation11 + $0x440] sm:$0xff]
    %v3394 = vld [vmem:[#allocation11 + $0x448] sm:$0xff]
    %v3395 = vld [vmem:[#allocation11 + $0x450] sm:$0xff]
    %v3396 = vld [vmem:[#allocation11 + $0x458] sm:$0xff]
    %v3397 = vld [vmem:[#allocation11 + $0x460] sm:$0xff]
    %v3398 = vld [vmem:[#allocation11 + $0x468] sm:$0xff]
    %v3399 = vld [vmem:[#allocation11 + $0x470] sm:$0xff]
    %v3400 = vld [vmem:[#allocation11 + $0x478] sm:$0xff]
    %v3401 = vld [vmem:[#allocation11 + $0x480] sm:$0xff]
    %v3402 = vld [vmem:[#allocation11 + $0x488] sm:$0xff]
    %v3403 = vld [vmem:[#allocation11 + $0x490] sm:$0xff]
    %v3404 = vld [vmem:[#allocation11 + $0x498] sm:$0xff]
    %v3405 = vld [vmem:[#allocation11 + $0x4a0] sm:$0xff]
    %v3406 = vld [vmem:[#allocation11 + $0x4a8] sm:$0xff]
    %v3407 = vld [vmem:[#allocation11 + $0x4b0] sm:$0xff]
    %v3408 = vld [vmem:[#allocation11 + $0x4b8] sm:$0xff]
    %v3409 = vld [vmem:[#allocation11 + $0x4c0] sm:$0xff]
    %v3410 = vld [vmem:[#allocation11 + $0x4c8] sm:$0xff]
    %v3411 = vld [vmem:[#allocation11 + $0x4d0] sm:$0xff]
    %v3412 = vld [vmem:[#allocation11 + $0x4d8] sm:$0xff]
    %v3413 = vld [vmem:[#allocation11 + $0x4e0] sm:$0xff]
    %v3414 = vld [vmem:[#allocation11 + $0x4e8] sm:$0xff]
    %v3415 = vld [vmem:[#allocation11 + $0x4f0] sm:$0xff]
    %v3416 = vld [vmem:[#allocation11 + $0x4f8] sm:$0xff]
    %v3417 = vld [vmem:[#allocation11 + $0x500] sm:$0xff]
    %v3418 = vld [vmem:[#allocation11 + $0x508] sm:$0xff]
    %v3419 = vld [vmem:[#allocation11 + $0x510] sm:$0xff]
    %v3420 = vld [vmem:[#allocation11 + $0x518] sm:$0xff]
    %v3421 = vld [vmem:[#allocation11 + $0x520] sm:$0xff]
    %v3422 = vld [vmem:[#allocation11 + $0x528] sm:$0xff]
    %v3423 = vld [vmem:[#allocation11 + $0x530] sm:$0xff]
    %v3424 = vld [vmem:[#allocation11 + $0x538] sm:$0xff]
    %v3425 = vld [vmem:[#allocation11 + $0x540] sm:$0xff]
    %v3426 = vld [vmem:[#allocation11 + $0x548] sm:$0xff]
    %v3427 = vld [vmem:[#allocation11 + $0x550] sm:$0xff]
    %v3428 = vld [vmem:[#allocation11 + $0x558] sm:$0xff]
    %v3429 = vld [vmem:[#allocation11 + $0x560] sm:$0xff]
    %v3430 = vld [vmem:[#allocation11 + $0x568] sm:$0xff]
    %v3431 = vld [vmem:[#allocation11 + $0x570] sm:$0xff]
    %v3432 = vld [vmem:[#allocation11 + $0x578] sm:$0xff]
    %v3433 = vld [vmem:[#allocation11 + $0x580] sm:$0xff]
    %v3434 = vld [vmem:[#allocation11 + $0x588] sm:$0xff]
    %v3435 = vld [vmem:[#allocation11 + $0x590] sm:$0xff]
    %v3436 = vld [vmem:[#allocation11 + $0x598] sm:$0xff]
    %v3437 = vld [vmem:[#allocation11 + $0x5a0] sm:$0xff]
    %v3438 = vld [vmem:[#allocation11 + $0x5a8] sm:$0xff]
    %v3439 = vld [vmem:[#allocation11 + $0x5b0] sm:$0xff]
    %v3440 = vld [vmem:[#allocation11 + $0x5b8] sm:$0xff]
    %v3441 = vld [vmem:[#allocation11 + $0x5c0] sm:$0xff]
    %v3442 = vld [vmem:[#allocation11 + $0x5c8] sm:$0xff]
    %v3443 = vld [vmem:[#allocation11 + $0x5d0] sm:$0xff]
    %v3444 = vld [vmem:[#allocation11 + $0x5d8] sm:$0xff]
    %v3445 = vld [vmem:[#allocation11 + $0x5e0] sm:$0xff]
    %v3446 = vld [vmem:[#allocation11 + $0x5e8] sm:$0xff]
    %v3447 = vld [vmem:[#allocation11 + $0x5f0] sm:$0xff]
    %v3448 = vld [vmem:[#allocation11 + $0x5f8] sm:$0xff]
    %v3449 = vld [vmem:[%s8] sm:$0x3]
    %v3451 = vlaneseq
    %v3452 = vshrl.u32 %v3451, 7
    %v3453 = vsub.s32 0, %v3452
    %v3454 = vrot.slane %v3449, %v3453
    %v3455 = vlaneseq
    %v3456 = vshrl.u32 %v3455, 7
    %v3457 = vsub.s32 1, %v3456
    %v3458 = vrot.slane %v3449, %v3457
    %v3653 = vunpack.c.l.b16 %v3257
    %v3654 = vunpack.c.h.b16 %v3257
    %v3655 = vunpack.c.l.b16 %v3258
    %v3656 = vunpack.c.h.b16 %v3258
    %v3657 = vunpack.c.l.b16 %v3259
    %v3658 = vunpack.c.h.b16 %v3259
    %v3659 = vunpack.c.l.b16 %v3260
    %v3660 = vunpack.c.h.b16 %v3260
    %v3661 = vunpack.c.l.b16 %v3261
    %v3662 = vunpack.c.h.b16 %v3261
    %v3663 = vunpack.c.l.b16 %v3262
    %v3664 = vunpack.c.h.b16 %v3262
    %v3665 = vunpack.c.l.b16 %v3263
    %v3666 = vunpack.c.h.b16 %v3263
    %v3667 = vunpack.c.l.b16 %v3264
    %v3668 = vunpack.c.h.b16 %v3264
    %v3669 = vunpack.c.l.b16 %v3265
    %v3670 = vunpack.c.h.b16 %v3265
    %v3671 = vunpack.c.l.b16 %v3266
    %v3672 = vunpack.c.h.b16 %v3266
    %v3673 = vunpack.c.l.b16 %v3267
    %v3674 = vunpack.c.h.b16 %v3267
    %v3675 = vunpack.c.l.b16 %v3268
    %v3676 = vunpack.c.h.b16 %v3268
    %v3677 = vunpack.c.l.b16 %v3269
    %v3678 = vunpack.c.h.b16 %v3269
    %v3679 = vunpack.c.l.b16 %v3270
    %v3680 = vunpack.c.h.b16 %v3270
    %v3681 = vunpack.c.l.b16 %v3271
    %v3682 = vunpack.c.h.b16 %v3271
    %v3683 = vunpack.c.l.b16 %v3272
    %v3684 = vunpack.c.h.b16 %v3272
    %v3685 = vunpack.c.l.b16 %v3273
    %v3686 = vunpack.c.h.b16 %v3273
    %v3687 = vunpack.c.l.b16 %v3274
    %v3688 = vunpack.c.h.b16 %v3274
    %v3689 = vunpack.c.l.b16 %v3275
    %v3690 = vunpack.c.h.b16 %v3275
    %v3691 = vunpack.c.l.b16 %v3276
    %v3692 = vunpack.c.h.b16 %v3276
    %v3693 = vunpack.c.l.b16 %v3277
    %v3694 = vunpack.c.h.b16 %v3277
    %v3695 = vunpack.c.l.b16 %v3278
    %v3696 = vunpack.c.h.b16 %v3278
    %v3697 = vunpack.c.l.b16 %v3279
    %v3698 = vunpack.c.h.b16 %v3279
    %v3699 = vunpack.c.l.b16 %v3280
    %v3700 = vunpack.c.h.b16 %v3280
    %v3701 = vunpack.c.l.b16 %v3281
    %v3702 = vunpack.c.h.b16 %v3281
    %v3703 = vunpack.c.l.b16 %v3282
    %v3704 = vunpack.c.h.b16 %v3282
    %v3705 = vunpack.c.l.b16 %v3283
    %v3706 = vunpack.c.h.b16 %v3283
    %v3707 = vunpack.c.l.b16 %v3284
    %v3708 = vunpack.c.h.b16 %v3284
    %v3709 = vunpack.c.l.b16 %v3285
    %v3710 = vunpack.c.h.b16 %v3285
    %v3711 = vunpack.c.l.b16 %v3286
    %v3712 = vunpack.c.h.b16 %v3286
    %v3713 = vunpack.c.l.b16 %v3287
    %v3714 = vunpack.c.h.b16 %v3287
    %v3715 = vunpack.c.l.b16 %v3288
    %v3716 = vunpack.c.h.b16 %v3288
    %v3717 = vunpack.c.l.b16 %v3289
    %v3718 = vunpack.c.h.b16 %v3289
    %v3719 = vunpack.c.l.b16 %v3290
    %v3720 = vunpack.c.h.b16 %v3290
    %v3721 = vunpack.c.l.b16 %v3291
    %v3722 = vunpack.c.h.b16 %v3291
    %v3723 = vunpack.c.l.b16 %v3292
    %v3724 = vunpack.c.h.b16 %v3292
    %v3725 = vunpack.c.l.b16 %v3293
    %v3726 = vunpack.c.h.b16 %v3293
    %v3727 = vunpack.c.l.b16 %v3294
    %v3728 = vunpack.c.h.b16 %v3294
    %v3729 = vunpack.c.l.b16 %v3295
    %v3730 = vunpack.c.h.b16 %v3295
    %v3731 = vunpack.c.l.b16 %v3296
    %v3732 = vunpack.c.h.b16 %v3296
    %v3733 = vunpack.c.l.b16 %v3297
    %v3734 = vunpack.c.h.b16 %v3297
    %v3735 = vunpack.c.l.b16 %v3298
    %v3736 = vunpack.c.h.b16 %v3298
    %v3737 = vunpack.c.l.b16 %v3299
    %v3738 = vunpack.c.h.b16 %v3299
    %v3739 = vunpack.c.l.b16 %v3300
    %v3740 = vunpack.c.h.b16 %v3300
    %v3741 = vunpack.c.l.b16 %v3301
    %v3742 = vunpack.c.h.b16 %v3301
    %v3743 = vunpack.c.l.b16 %v3302
    %v3744 = vunpack.c.h.b16 %v3302
    %v3745 = vunpack.c.l.b16 %v3303
    %v3746 = vunpack.c.h.b16 %v3303
    %v3747 = vunpack.c.l.b16 %v3304
    %v3748 = vunpack.c.h.b16 %v3304
    %v3749 = vunpack.c.l.b16 %v3305
    %v3750 = vunpack.c.h.b16 %v3305
    %v3751 = vunpack.c.l.b16 %v3306
    %v3752 = vunpack.c.h.b16 %v3306
    %v3753 = vunpack.c.l.b16 %v3307
    %v3754 = vunpack.c.h.b16 %v3307
    %v3755 = vunpack.c.l.b16 %v3308
    %v3756 = vunpack.c.h.b16 %v3308
    %v3757 = vunpack.c.l.b16 %v3309
    %v3758 = vunpack.c.h.b16 %v3309
    %v3759 = vunpack.c.l.b16 %v3310
    %v3760 = vunpack.c.h.b16 %v3310
    %v3761 = vunpack.c.l.b16 %v3311
    %v3762 = vunpack.c.h.b16 %v3311
    %v3763 = vunpack.c.l.b16 %v3312
    %v3764 = vunpack.c.h.b16 %v3312
    %v3765 = vunpack.c.l.b16 %v3313
    %v3766 = vunpack.c.h.b16 %v3313
    %v3767 = vunpack.c.l.b16 %v3314
    %v3768 = vunpack.c.h.b16 %v3314
    %v3769 = vunpack.c.l.b16 %v3315
    %v3770 = vunpack.c.h.b16 %v3315
    %v3771 = vunpack.c.l.b16 %v3316
    %v3772 = vunpack.c.h.b16 %v3316
    %v3773 = vunpack.c.l.b16 %v3317
    %v3774 = vunpack.c.h.b16 %v3317
    %v3775 = vunpack.c.l.b16 %v3318
    %v3776 = vunpack.c.h.b16 %v3318
    %v3777 = vunpack.c.l.b16 %v3319
    %v3778 = vunpack.c.h.b16 %v3319
    %v3779 = vunpack.c.l.b16 %v3320
    %v3780 = vunpack.c.h.b16 %v3320
    %v3781 = vunpack.c.l.b16 %v3321
    %v3782 = vunpack.c.h.b16 %v3321
    %v3783 = vunpack.c.l.b16 %v3322
    %v3784 = vunpack.c.h.b16 %v3322
    %v3785 = vunpack.c.l.b16 %v3323
    %v3786 = vunpack.c.h.b16 %v3323
    %v3787 = vunpack.c.l.b16 %v3324
    %v3788 = vunpack.c.h.b16 %v3324
    %v3789 = vunpack.c.l.b16 %v3325
    %v3790 = vunpack.c.h.b16 %v3325
    %v3791 = vunpack.c.l.b16 %v3326
    %v3792 = vunpack.c.h.b16 %v3326
    %v3793 = vunpack.c.l.b16 %v3327
    %v3794 = vunpack.c.h.b16 %v3327
    %v3795 = vunpack.c.l.b16 %v3328
    %v3796 = vunpack.c.h.b16 %v3328
    %v3797 = vunpack.c.l.b16 %v3329
    %v3798 = vunpack.c.h.b16 %v3329
    %v3799 = vunpack.c.l.b16 %v3330
    %v3800 = vunpack.c.h.b16 %v3330
    %v3801 = vunpack.c.l.b16 %v3331
    %v3802 = vunpack.c.h.b16 %v3331
    %v3803 = vunpack.c.l.b16 %v3332
    %v3804 = vunpack.c.h.b16 %v3332
    %v3805 = vunpack.c.l.b16 %v3333
    %v3806 = vunpack.c.h.b16 %v3333
    %v3807 = vunpack.c.l.b16 %v3334
    %v3808 = vunpack.c.h.b16 %v3334
    %v3809 = vunpack.c.l.b16 %v3335
    %v3810 = vunpack.c.h.b16 %v3335
    %v3811 = vunpack.c.l.b16 %v3336
    %v3812 = vunpack.c.h.b16 %v3336
    %v3813 = vunpack.c.l.b16 %v3337
    %v3814 = vunpack.c.h.b16 %v3337
    %v3815 = vunpack.c.l.b16 %v3338
    %v3816 = vunpack.c.h.b16 %v3338
    %v3817 = vunpack.c.l.b16 %v3339
    %v3818 = vunpack.c.h.b16 %v3339
    %v3819 = vunpack.c.l.b16 %v3340
    %v3820 = vunpack.c.h.b16 %v3340
    %v3821 = vunpack.c.l.b16 %v3341
    %v3822 = vunpack.c.h.b16 %v3341
    %v3823 = vunpack.c.l.b16 %v3342
    %v3824 = vunpack.c.h.b16 %v3342
    %v3825 = vunpack.c.l.b16 %v3343
    %v3826 = vunpack.c.h.b16 %v3343
    %v3827 = vunpack.c.l.b16 %v3344
    %v3828 = vunpack.c.h.b16 %v3344
    %v3829 = vunpack.c.l.b16 %v3345
    %v3830 = vunpack.c.h.b16 %v3345
    %v3831 = vunpack.c.l.b16 %v3346
    %v3832 = vunpack.c.h.b16 %v3346
    %v3833 = vunpack.c.l.b16 %v3347
    %v3834 = vunpack.c.h.b16 %v3347
    %v3835 = vunpack.c.l.b16 %v3348
    %v3836 = vunpack.c.h.b16 %v3348
    %v3837 = vunpack.c.l.b16 %v3349
    %v3838 = vunpack.c.h.b16 %v3349
    %v3839 = vunpack.c.l.b16 %v3350
    %v3840 = vunpack.c.h.b16 %v3350
    %v3841 = vunpack.c.l.b16 %v3351
    %v3842 = vunpack.c.h.b16 %v3351
    %v3843 = vunpack.c.l.b16 %v3352
    %v3844 = vunpack.c.h.b16 %v3352
    %v3845 = vunpack.c.l.b16 %v3353
    %v3846 = vunpack.c.h.b16 %v3353
    %v3847 = vunpack.c.l.b16 %v3354
    %v3848 = vunpack.c.h.b16 %v3354
    %v3849 = vunpack.c.l.b16 %v3355
    %v3850 = vunpack.c.h.b16 %v3355
    %v3851 = vunpack.c.l.b16 %v3356
    %v3852 = vunpack.c.h.b16 %v3356
    %v3853 = vunpack.c.l.b16 %v3357
    %v3854 = vunpack.c.h.b16 %v3357
    %v3855 = vunpack.c.l.b16 %v3358
    %v3856 = vunpack.c.h.b16 %v3358
    %v3857 = vunpack.c.l.b16 %v3359
    %v3858 = vunpack.c.h.b16 %v3359
    %v3859 = vunpack.c.l.b16 %v3360
    %v3860 = vunpack.c.h.b16 %v3360
    %v3861 = vunpack.c.l.b16 %v3361
    %v3862 = vunpack.c.h.b16 %v3361
    %v3863 = vunpack.c.l.b16 %v3362
    %v3864 = vunpack.c.h.b16 %v3362
    %v3865 = vunpack.c.l.b16 %v3363
    %v3866 = vunpack.c.h.b16 %v3363
    %v3867 = vunpack.c.l.b16 %v3364
    %v3868 = vunpack.c.h.b16 %v3364
    %v3869 = vunpack.c.l.b16 %v3365
    %v3870 = vunpack.c.h.b16 %v3365
    %v3871 = vunpack.c.l.b16 %v3366
    %v3872 = vunpack.c.h.b16 %v3366
    %v3873 = vunpack.c.l.b16 %v3367
    %v3874 = vunpack.c.h.b16 %v3367
    %v3875 = vunpack.c.l.b16 %v3368
    %v3876 = vunpack.c.h.b16 %v3368
    %v3877 = vunpack.c.l.b16 %v3369
    %v3878 = vunpack.c.h.b16 %v3369
    %v3879 = vunpack.c.l.b16 %v3370
    %v3880 = vunpack.c.h.b16 %v3370
    %v3881 = vunpack.c.l.b16 %v3371
    %v3882 = vunpack.c.h.b16 %v3371
    %v3883 = vunpack.c.l.b16 %v3372
    %v3884 = vunpack.c.h.b16 %v3372
    %v3885 = vunpack.c.l.b16 %v3373
    %v3886 = vunpack.c.h.b16 %v3373
    %v3887 = vunpack.c.l.b16 %v3374
    %v3888 = vunpack.c.h.b16 %v3374
    %v3889 = vunpack.c.l.b16 %v3375
    %v3890 = vunpack.c.h.b16 %v3375
    %v3891 = vunpack.c.l.b16 %v3376
    %v3892 = vunpack.c.h.b16 %v3376
    %v3893 = vunpack.c.l.b16 %v3377
    %v3894 = vunpack.c.h.b16 %v3377
    %v3895 = vunpack.c.l.b16 %v3378
    %v3896 = vunpack.c.h.b16 %v3378
    %v3897 = vunpack.c.l.b16 %v3379
    %v3898 = vunpack.c.h.b16 %v3379
    %v3899 = vunpack.c.l.b16 %v3380
    %v3900 = vunpack.c.h.b16 %v3380
    %v3901 = vunpack.c.l.b16 %v3381
    %v3902 = vunpack.c.h.b16 %v3381
    %v3903 = vunpack.c.l.b16 %v3382
    %v3904 = vunpack.c.h.b16 %v3382
    %v3905 = vunpack.c.l.b16 %v3383
    %v3906 = vunpack.c.h.b16 %v3383
    %v3907 = vunpack.c.l.b16 %v3384
    %v3908 = vunpack.c.h.b16 %v3384
    %v3909 = vunpack.c.l.b16 %v3385
    %v3910 = vunpack.c.h.b16 %v3385
    %v3911 = vunpack.c.l.b16 %v3386
    %v3912 = vunpack.c.h.b16 %v3386
    %v3913 = vunpack.c.l.b16 %v3387
    %v3914 = vunpack.c.h.b16 %v3387
    %v3915 = vunpack.c.l.b16 %v3388
    %v3916 = vunpack.c.h.b16 %v3388
    %v3917 = vunpack.c.l.b16 %v3389
    %v3918 = vunpack.c.h.b16 %v3389
    %v3919 = vunpack.c.l.b16 %v3390
    %v3920 = vunpack.c.h.b16 %v3390
    %v3921 = vunpack.c.l.b16 %v3391
    %v3922 = vunpack.c.h.b16 %v3391
    %v3923 = vunpack.c.l.b16 %v3392
    %v3924 = vunpack.c.h.b16 %v3392
    %v3925 = vunpack.c.l.b16 %v3393
    %v3926 = vunpack.c.h.b16 %v3393
    %v3927 = vunpack.c.l.b16 %v3394
    %v3928 = vunpack.c.h.b16 %v3394
    %v3929 = vunpack.c.l.b16 %v3395
    %v3930 = vunpack.c.h.b16 %v3395
    %v3931 = vunpack.c.l.b16 %v3396
    %v3932 = vunpack.c.h.b16 %v3396
    %v3933 = vunpack.c.l.b16 %v3397
    %v3934 = vunpack.c.h.b16 %v3397
    %v3935 = vunpack.c.l.b16 %v3398
    %v3936 = vunpack.c.h.b16 %v3398
    %v3937 = vunpack.c.l.b16 %v3399
    %v3938 = vunpack.c.h.b16 %v3399
    %v3939 = vunpack.c.l.b16 %v3400
    %v3940 = vunpack.c.h.b16 %v3400
    %v3941 = vunpack.c.l.b16 %v3401
    %v3942 = vunpack.c.h.b16 %v3401
    %v3943 = vunpack.c.l.b16 %v3402
    %v3944 = vunpack.c.h.b16 %v3402
    %v3945 = vunpack.c.l.b16 %v3403
    %v3946 = vunpack.c.h.b16 %v3403
    %v3947 = vunpack.c.l.b16 %v3404
    %v3948 = vunpack.c.h.b16 %v3404
    %v3949 = vunpack.c.l.b16 %v3405
    %v3950 = vunpack.c.h.b16 %v3405
    %v3951 = vunpack.c.l.b16 %v3406
    %v3952 = vunpack.c.h.b16 %v3406
    %v3953 = vunpack.c.l.b16 %v3407
    %v3954 = vunpack.c.h.b16 %v3407
    %v3955 = vunpack.c.l.b16 %v3408
    %v3956 = vunpack.c.h.b16 %v3408
    %v3957 = vunpack.c.l.b16 %v3409
    %v3958 = vunpack.c.h.b16 %v3409
    %v3959 = vunpack.c.l.b16 %v3410
    %v3960 = vunpack.c.h.b16 %v3410
    %v3961 = vunpack.c.l.b16 %v3411
    %v3962 = vunpack.c.h.b16 %v3411
    %v3963 = vunpack.c.l.b16 %v3412
    %v3964 = vunpack.c.h.b16 %v3412
    %v3965 = vunpack.c.l.b16 %v3413
    %v3966 = vunpack.c.h.b16 %v3413
    %v3967 = vunpack.c.l.b16 %v3414
    %v3968 = vunpack.c.h.b16 %v3414
    %v3969 = vunpack.c.l.b16 %v3415
    %v3970 = vunpack.c.h.b16 %v3415
    %v3971 = vunpack.c.l.b16 %v3416
    %v3972 = vunpack.c.h.b16 %v3416
    %v3973 = vunpack.c.l.b16 %v3417
    %v3974 = vunpack.c.h.b16 %v3417
    %v3975 = vunpack.c.l.b16 %v3418
    %v3976 = vunpack.c.h.b16 %v3418
    %v3977 = vunpack.c.l.b16 %v3419
    %v3978 = vunpack.c.h.b16 %v3419
    %v3979 = vunpack.c.l.b16 %v3420
    %v3980 = vunpack.c.h.b16 %v3420
    %v3981 = vunpack.c.l.b16 %v3421
    %v3982 = vunpack.c.h.b16 %v3421
    %v3983 = vunpack.c.l.b16 %v3422
    %v3984 = vunpack.c.h.b16 %v3422
    %v3985 = vunpack.c.l.b16 %v3423
    %v3986 = vunpack.c.h.b16 %v3423
    %v3987 = vunpack.c.l.b16 %v3424
    %v3988 = vunpack.c.h.b16 %v3424
    %v3989 = vunpack.c.l.b16 %v3425
    %v3990 = vunpack.c.h.b16 %v3425
    %v3991 = vunpack.c.l.b16 %v3426
    %v3992 = vunpack.c.h.b16 %v3426
    %v3993 = vunpack.c.l.b16 %v3427
    %v3994 = vunpack.c.h.b16 %v3427
    %v3995 = vunpack.c.l.b16 %v3428
    %v3996 = vunpack.c.h.b16 %v3428
    %v3997 = vunpack.c.l.b16 %v3429
    %v3998 = vunpack.c.h.b16 %v3429
    %v3999 = vunpack.c.l.b16 %v3430
    %v4000 = vunpack.c.h.b16 %v3430
    %v4001 = vunpack.c.l.b16 %v3431
    %v4002 = vunpack.c.h.b16 %v3431
    %v4003 = vunpack.c.l.b16 %v3432
    %v4004 = vunpack.c.h.b16 %v3432
    %v4005 = vunpack.c.l.b16 %v3433
    %v4006 = vunpack.c.h.b16 %v3433
    %v4007 = vunpack.c.l.b16 %v3434
    %v4008 = vunpack.c.h.b16 %v3434
    %v4009 = vunpack.c.l.b16 %v3435
    %v4010 = vunpack.c.h.b16 %v3435
    %v4011 = vunpack.c.l.b16 %v3436
    %v4012 = vunpack.c.h.b16 %v3436
    %v4013 = vunpack.c.l.b16 %v3437
    %v4014 = vunpack.c.h.b16 %v3437
    %v4015 = vunpack.c.l.b16 %v3438
    %v4016 = vunpack.c.h.b16 %v3438
    %v4017 = vunpack.c.l.b16 %v3439
    %v4018 = vunpack.c.h.b16 %v3439
    %v4019 = vunpack.c.l.b16 %v3440
    %v4020 = vunpack.c.h.b16 %v3440
    %v4021 = vunpack.c.l.b16 %v3441
    %v4022 = vunpack.c.h.b16 %v3441
    %v4023 = vunpack.c.l.b16 %v3442
    %v4024 = vunpack.c.h.b16 %v3442
    %v4025 = vunpack.c.l.b16 %v3443
    %v4026 = vunpack.c.h.b16 %v3443
    %v4027 = vunpack.c.l.b16 %v3444
    %v4028 = vunpack.c.h.b16 %v3444
    %v4029 = vunpack.c.l.b16 %v3445
    %v4030 = vunpack.c.h.b16 %v3445
    %v4031 = vunpack.c.l.b16 %v3446
    %v4032 = vunpack.c.h.b16 %v3446
    %v4033 = vunpack.c.l.b16 %v3447
    %v4034 = vunpack.c.h.b16 %v3447
    %v4035 = vunpack.c.l.b16 %v3448
    %v4036 = vunpack.c.h.b16 %v3448
    %v4037 = vpack.c.b16 %v3655, %v3653
    %v4038 = vpack.c.b16 %v3656, %v3654
    %v4039 = vpack.c.b16 %v3659, %v3657
    %v4040 = vpack.c.b16 %v3660, %v3658
    %v4041 = vpack.c.b16 %v3663, %v3661
    %v4042 = vpack.c.b16 %v3664, %v3662
    %v4043 = vpack.c.b16 %v3667, %v3665
    %v4044 = vpack.c.b16 %v3668, %v3666
    %v4045 = vpack.c.b16 %v3671, %v3669
    %v4046 = vpack.c.b16 %v3672, %v3670
    %v4047 = vpack.c.b16 %v3675, %v3673
    %v4048 = vpack.c.b16 %v3676, %v3674
    %v4049 = vpack.c.b16 %v3679, %v3677
    %v4050 = vpack.c.b16 %v3680, %v3678
    %v4051 = vpack.c.b16 %v3683, %v3681
    %v4052 = vpack.c.b16 %v3684, %v3682
    %v4053 = vpack.c.b16 %v3687, %v3685
    %v4054 = vpack.c.b16 %v3688, %v3686
    %v4055 = vpack.c.b16 %v3691, %v3689
    %v4056 = vpack.c.b16 %v3692, %v3690
    %v4057 = vpack.c.b16 %v3695, %v3693
    %v4058 = vpack.c.b16 %v3696, %v3694
    %v4059 = vpack.c.b16 %v3699, %v3697
    %v4060 = vpack.c.b16 %v3700, %v3698
    %v4061 = vpack.c.b16 %v3703, %v3701
    %v4062 = vpack.c.b16 %v3704, %v3702
    %v4063 = vpack.c.b16 %v3707, %v3705
    %v4064 = vpack.c.b16 %v3708, %v3706
    %v4065 = vpack.c.b16 %v3711, %v3709
    %v4066 = vpack.c.b16 %v3712, %v3710
    %v4067 = vpack.c.b16 %v3715, %v3713
    %v4068 = vpack.c.b16 %v3716, %v3714
    %v4069 = vpack.c.b16 %v3719, %v3717
    %v4070 = vpack.c.b16 %v3720, %v3718
    %v4071 = vpack.c.b16 %v3723, %v3721
    %v4072 = vpack.c.b16 %v3724, %v3722
    %v4073 = vpack.c.b16 %v3727, %v3725
    %v4074 = vpack.c.b16 %v3728, %v3726
    %v4075 = vpack.c.b16 %v3731, %v3729
    %v4076 = vpack.c.b16 %v3732, %v3730
    %v4077 = vpack.c.b16 %v3735, %v3733
    %v4078 = vpack.c.b16 %v3736, %v3734
    %v4079 = vpack.c.b16 %v3739, %v3737
    %v4080 = vpack.c.b16 %v3740, %v3738
    %v4081 = vpack.c.b16 %v3743, %v3741
    %v4082 = vpack.c.b16 %v3744, %v3742
    %v4083 = vpack.c.b16 %v3747, %v3745
    %v4084 = vpack.c.b16 %v3748, %v3746
    %v4085 = vpack.c.b16 %v3751, %v3749
    %v4086 = vpack.c.b16 %v3752, %v3750
    %v4087 = vpack.c.b16 %v3755, %v3753
    %v4088 = vpack.c.b16 %v3756, %v3754
    %v4089 = vpack.c.b16 %v3759, %v3757
    %v4090 = vpack.c.b16 %v3760, %v3758
    %v4091 = vpack.c.b16 %v3763, %v3761
    %v4092 = vpack.c.b16 %v3764, %v3762
    %v4093 = vpack.c.b16 %v3767, %v3765
    %v4094 = vpack.c.b16 %v3768, %v3766
    %v4095 = vpack.c.b16 %v3771, %v3769
    %v4096 = vpack.c.b16 %v3772, %v3770
    %v4097 = vpack.c.b16 %v3775, %v3773
    %v4098 = vpack.c.b16 %v3776, %v3774
    %v4099 = vpack.c.b16 %v3779, %v3777
    %v4100 = vpack.c.b16 %v3780, %v3778
    %v4101 = vpack.c.b16 %v3783, %v3781
    %v4102 = vpack.c.b16 %v3784, %v3782
    %v4103 = vpack.c.b16 %v3787, %v3785
    %v4104 = vpack.c.b16 %v3788, %v3786
    %v4105 = vpack.c.b16 %v3791, %v3789
    %v4106 = vpack.c.b16 %v3792, %v3790
    %v4107 = vpack.c.b16 %v3795, %v3793
    %v4108 = vpack.c.b16 %v3796, %v3794
    %v4109 = vpack.c.b16 %v3799, %v3797
    %v4110 = vpack.c.b16 %v3800, %v3798
    %v4111 = vpack.c.b16 %v3803, %v3801
    %v4112 = vpack.c.b16 %v3804, %v3802
    %v4113 = vpack.c.b16 %v3807, %v3805
    %v4114 = vpack.c.b16 %v3808, %v3806
    %v4115 = vpack.c.b16 %v3811, %v3809
    %v4116 = vpack.c.b16 %v3812, %v3810
    %v4117 = vpack.c.b16 %v3815, %v3813
    %v4118 = vpack.c.b16 %v3816, %v3814
    %v4119 = vpack.c.b16 %v3819, %v3817
    %v4120 = vpack.c.b16 %v3820, %v3818
    %v4121 = vpack.c.b16 %v3823, %v3821
    %v4122 = vpack.c.b16 %v3824, %v3822
    %v4123 = vpack.c.b16 %v3827, %v3825
    %v4124 = vpack.c.b16 %v3828, %v3826
    %v4125 = vpack.c.b16 %v3831, %v3829
    %v4126 = vpack.c.b16 %v3832, %v3830
    %v4127 = vpack.c.b16 %v3835, %v3833
    %v4128 = vpack.c.b16 %v3836, %v3834
    %v4129 = vpack.c.b16 %v3839, %v3837
    %v4130 = vpack.c.b16 %v3840, %v3838
    %v4131 = vpack.c.b16 %v3843, %v3841
    %v4132 = vpack.c.b16 %v3844, %v3842
    %v4133 = vpack.c.b16 %v3847, %v3845
    %v4134 = vpack.c.b16 %v3848, %v3846
    %v4135 = vpack.c.b16 %v3851, %v3849
    %v4136 = vpack.c.b16 %v3852, %v3850
    %v4137 = vpack.c.b16 %v3855, %v3853
    %v4138 = vpack.c.b16 %v3856, %v3854
    %v4139 = vpack.c.b16 %v3859, %v3857
    %v4140 = vpack.c.b16 %v3860, %v3858
    %v4141 = vpack.c.b16 %v3863, %v3861
    %v4142 = vpack.c.b16 %v3864, %v3862
    %v4143 = vpack.c.b16 %v3867, %v3865
    %v4144 = vpack.c.b16 %v3868, %v3866
    %v4145 = vpack.c.b16 %v3871, %v3869
    %v4146 = vpack.c.b16 %v3872, %v3870
    %v4147 = vpack.c.b16 %v3875, %v3873
    %v4148 = vpack.c.b16 %v3876, %v3874
    %v4149 = vpack.c.b16 %v3879, %v3877
    %v4150 = vpack.c.b16 %v3880, %v3878
    %v4151 = vpack.c.b16 %v3883, %v3881
    %v4152 = vpack.c.b16 %v3884, %v3882
    %v4153 = vpack.c.b16 %v3887, %v3885
    %v4154 = vpack.c.b16 %v3888, %v3886
    %v4155 = vpack.c.b16 %v3891, %v3889
    %v4156 = vpack.c.b16 %v3892, %v3890
    %v4157 = vpack.c.b16 %v3895, %v3893
    %v4158 = vpack.c.b16 %v3896, %v3894
    %v4159 = vpack.c.b16 %v3899, %v3897
    %v4160 = vpack.c.b16 %v3900, %v3898
    %v4161 = vpack.c.b16 %v3903, %v3901
    %v4162 = vpack.c.b16 %v3904, %v3902
    %v4163 = vpack.c.b16 %v3907, %v3905
    %v4164 = vpack.c.b16 %v3908, %v3906
    %v4165 = vpack.c.b16 %v3911, %v3909
    %v4166 = vpack.c.b16 %v3912, %v3910
    %v4167 = vpack.c.b16 %v3915, %v3913
    %v4168 = vpack.c.b16 %v3916, %v3914
    %v4169 = vpack.c.b16 %v3919, %v3917
    %v4170 = vpack.c.b16 %v3920, %v3918
    %v4171 = vpack.c.b16 %v3923, %v3921
    %v4172 = vpack.c.b16 %v3924, %v3922
    %v4173 = vpack.c.b16 %v3927, %v3925
    %v4174 = vpack.c.b16 %v3928, %v3926
    %v4175 = vpack.c.b16 %v3931, %v3929
    %v4176 = vpack.c.b16 %v3932, %v3930
    %v4177 = vpack.c.b16 %v3935, %v3933
    %v4178 = vpack.c.b16 %v3936, %v3934
    %v4179 = vpack.c.b16 %v3939, %v3937
    %v4180 = vpack.c.b16 %v3940, %v3938
    %v4181 = vpack.c.b16 %v3943, %v3941
    %v4182 = vpack.c.b16 %v3944, %v3942
    %v4183 = vpack.c.b16 %v3947, %v3945
    %v4184 = vpack.c.b16 %v3948, %v3946
    %v4185 = vpack.c.b16 %v3951, %v3949
    %v4186 = vpack.c.b16 %v3952, %v3950
    %v4187 = vpack.c.b16 %v3955, %v3953
    %v4188 = vpack.c.b16 %v3956, %v3954
    %v4189 = vpack.c.b16 %v3959, %v3957
    %v4190 = vpack.c.b16 %v3960, %v3958
    %v4191 = vpack.c.b16 %v3963, %v3961
    %v4192 = vpack.c.b16 %v3964, %v3962
    %v4193 = vpack.c.b16 %v3967, %v3965
    %v4194 = vpack.c.b16 %v3968, %v3966
    %v4195 = vpack.c.b16 %v3971, %v3969
    %v4196 = vpack.c.b16 %v3972, %v3970
    %v4197 = vpack.c.b16 %v3975, %v3973
    %v4198 = vpack.c.b16 %v3976, %v3974
    %v4199 = vpack.c.b16 %v3979, %v3977
    %v4200 = vpack.c.b16 %v3980, %v3978
    %v4201 = vpack.c.b16 %v3983, %v3981
    %v4202 = vpack.c.b16 %v3984, %v3982
    %v4203 = vpack.c.b16 %v3987, %v3985
    %v4204 = vpack.c.b16 %v3988, %v3986
    %v4205 = vpack.c.b16 %v3991, %v3989
    %v4206 = vpack.c.b16 %v3992, %v3990
    %v4207 = vpack.c.b16 %v3995, %v3993
    %v4208 = vpack.c.b16 %v3996, %v3994
    %v4209 = vpack.c.b16 %v3999, %v3997
    %v4210 = vpack.c.b16 %v4000, %v3998
    %v4211 = vpack.c.b16 %v4003, %v4001
    %v4212 = vpack.c.b16 %v4004, %v4002
    %v4213 = vpack.c.b16 %v4007, %v4005
    %v4214 = vpack.c.b16 %v4008, %v4006
    %v4215 = vpack.c.b16 %v4011, %v4009
    %v4216 = vpack.c.b16 %v4012, %v4010
    %v4217 = vpack.c.b16 %v4015, %v4013
    %v4218 = vpack.c.b16 %v4016, %v4014
    %v4219 = vpack.c.b16 %v4019, %v4017
    %v4220 = vpack.c.b16 %v4020, %v4018
    %v4221 = vpack.c.b16 %v4023, %v4021
    %v4222 = vpack.c.b16 %v4024, %v4022
    %v4223 = vpack.c.b16 %v4027, %v4025
    %v4224 = vpack.c.b16 %v4028, %v4026
    %v4225 = vpack.c.b16 %v4031, %v4029
    %v4226 = vpack.c.b16 %v4032, %v4030
    %v4227 = vpack.c.b16 %v4035, %v4033
    %v4228 = vpack.c.b16 %v4036, %v4034
    %4421 = vmatprep.subr.bf16.mxu0 %v4038
    %4422 = vmatpush1.bf16.msra.mxu0 %v4037
    %4423 = vmatprep.subr.bf16.mxu0 %v4040
    %4424 = vmatpush1.bf16.msra.mxu0 %v4039
    %4425 = vmatprep.subr.bf16.mxu0 %v4042
    %4426 = vmatpush1.bf16.msra.mxu0 %v4041
    %4427 = vmatprep.subr.bf16.mxu0 %v4044
    %4428 = vmatpush1.bf16.msra.mxu0 %v4043
    %4429 = vmatprep.subr.bf16.mxu0 %v4046
    %4430 = vmatpush1.bf16.msra.mxu0 %v4045
    %4431 = vmatprep.subr.bf16.mxu0 %v4048
    %4432 = vmatpush1.bf16.msra.mxu0 %v4047
    %4433 = vmatprep.subr.bf16.mxu0 %v4050
    %4434 = vmatpush1.bf16.msra.mxu0 %v4049
    %4435 = vmatprep.subr.bf16.mxu0 %v4052
    %4436 = vmatpush1.bf16.msra.mxu0 %v4051
    %4437 = vmatprep.subr.bf16.mxu0 %v4054
    %4438 = vmatpush1.bf16.msra.mxu0 %v4053
    %4439 = vmatprep.subr.bf16.mxu0 %v4056
    %4440 = vmatpush1.bf16.msra.mxu0 %v4055
    %4441 = vmatprep.subr.bf16.mxu0 %v4058
    %4442 = vmatpush1.bf16.msra.mxu0 %v4057
    %4443 = vmatprep.subr.bf16.mxu0 %v4060
    %4444 = vmatpush1.bf16.msra.mxu0 %v4059
    %4445 = vmatprep.subr.bf16.mxu0 %v4062
    %4446 = vmatpush1.bf16.msra.mxu0 %v4061
    %4447 = vmatprep.subr.bf16.mxu0 %v4064
    %4448 = vmatpush1.bf16.msra.mxu0 %v4063
    %4449 = vmatprep.subr.bf16.mxu0 %v4066
    %4450 = vmatpush1.bf16.msra.mxu0 %v4065
    %4451 = vmatprep.subr.bf16.mxu0 %v4068
    %4452 = vmatpush1.bf16.msra.mxu0 %v4067
    %4453 = vmatprep.mubr.bf16.mxu0 %v3246
    %4454 = vmatmul.mubr.bf16.gmra.mrb[0].mxu0 %v3245
    %v4455 = vpop.f32.mrb[0].mxu0
    %v4456 = vadd.f32 %v3454, %v4455
    %v4457 = vpop.f32.mrb[0].mxu0
    %v4458 = vadd.f32 %v3458, %v4457
    %v4459 = vpop.f32.mrb[0].mxu0
    %v4460 = vpop.f32.mrb[0].mxu0
    %4461 = vdwg.mxu0
    %4462 = vmatprep.subr.bf16.mxu0 %v4070
    %4463 = vmatpush1.bf16.msra.mxu0 %v4069
    %4464 = vmatprep.subr.bf16.mxu0 %v4072
    %4465 = vmatpush1.bf16.msra.mxu0 %v4071
    %4466 = vmatprep.subr.bf16.mxu0 %v4074
    %4467 = vmatpush1.bf16.msra.mxu0 %v4073
    %4468 = vmatprep.subr.bf16.mxu0 %v4076
    %4469 = vmatpush1.bf16.msra.mxu0 %v4075
    %4470 = vmatprep.subr.bf16.mxu0 %v4078
    %4471 = vmatpush1.bf16.msra.mxu0 %v4077
    %4472 = vmatprep.subr.bf16.mxu0 %v4080
    %4473 = vmatpush1.bf16.msra.mxu0 %v4079
    %4474 = vmatprep.subr.bf16.mxu0 %v4082
    %4475 = vmatpush1.bf16.msra.mxu0 %v4081
    %4476 = vmatprep.subr.bf16.mxu0 %v4084
    %4477 = vmatpush1.bf16.msra.mxu0 %v4083
    %4478 = vmatprep.subr.bf16.mxu0 %v4086
    %4479 = vmatpush1.bf16.msra.mxu0 %v4085
    %4480 = vmatprep.subr.bf16.mxu0 %v4088
    %4481 = vmatpush1.bf16.msra.mxu0 %v4087
    %4482 = vmatprep.subr.bf16.mxu0 %v4090
    %4483 = vmatpush1.bf16.msra.mxu0 %v4089
    %4484 = vmatprep.subr.bf16.mxu0 %v4092
    %4485 = vmatpush1.bf16.msra.mxu0 %v4091
    %4486 = vmatprep.subr.bf16.mxu0 %v4094
    %4487 = vmatpush1.bf16.msra.mxu0 %v4093
    %4488 = vmatprep.subr.bf16.mxu0 %v4096
    %4489 = vmatpush1.bf16.msra.mxu0 %v4095
    %4490 = vmatprep.subr.bf16.mxu0 %v4098
    %4491 = vmatpush1.bf16.msra.mxu0 %v4097
    %4492 = vmatprep.subr.bf16.mxu0 %v4100
    %4493 = vmatpush1.bf16.msra.mxu0 %v4099
    %4494 = vmatprep.mubr.bf16.mxu0 %v3248
    %4495 = vmatmul.mubr.bf16.gmra.mrb[0].mxu0 %v3247
    %v4496 = vpop.f32.mrb[0].mxu0
    %v4497 = vadd.f32 %v4456, %v4496
    %v4498 = vpop.f32.mrb[0].mxu0
    %v4499 = vadd.f32 %v4458, %v4498
    %v4500 = vpop.f32.mrb[0].mxu0
    %v4501 = vpop.f32.mrb[0].mxu0
    %4502 = vdwg.mxu0
    %4503 = vmatprep.subr.bf16.mxu0 %v4102
    %4504 = vmatpush1.bf16.msra.mxu0 %v4101
    %4505 = vmatprep.subr.bf16.mxu0 %v4104
    %4506 = vmatpush1.bf16.msra.mxu0 %v4103
    %4507 = vmatprep.subr.bf16.mxu0 %v4106
    %4508 = vmatpush1.bf16.msra.mxu0 %v4105
    %4509 = vmatprep.subr.bf16.mxu0 %v4108
    %4510 = vmatpush1.bf16.msra.mxu0 %v4107
    %4511 = vmatprep.subr.bf16.mxu0 %v4110
    %4512 = vmatpush1.bf16.msra.mxu0 %v4109
    %4513 = vmatprep.subr.bf16.mxu0 %v4112
    %4514 = vmatpush1.bf16.msra.mxu0 %v4111
    %4515 = vmatprep.subr.bf16.mxu0 %v4114
    %4516 = vmatpush1.bf16.msra.mxu0 %v4113
    %4517 = vmatprep.subr.bf16.mxu0 %v4116
    %4518 = vmatpush1.bf16.msra.mxu0 %v4115
    %4519 = vmatprep.subr.bf16.mxu0 %v4118
    %4520 = vmatpush1.bf16.msra.mxu0 %v4117
    %4521 = vmatprep.subr.bf16.mxu0 %v4120
    %4522 = vmatpush1.bf16.msra.mxu0 %v4119
    %4523 = vmatprep.subr.bf16.mxu0 %v4122
    %4524 = vmatpush1.bf16.msra.mxu0 %v4121
    %4525 = vmatprep.subr.bf16.mxu0 %v4124
    %4526 = vmatpush1.bf16.msra.mxu0 %v4123
    %4527 = vmatprep.subr.bf16.mxu0 %v4126
    %4528 = vmatpush1.bf16.msra.mxu0 %v4125
    %4529 = vmatprep.subr.bf16.mxu0 %v4128
    %4530 = vmatpush1.bf16.msra.mxu0 %v4127
    %4531 = vmatprep.subr.bf16.mxu0 %v4130
    %4532 = vmatpush1.bf16.msra.mxu0 %v4129
    %4533 = vmatprep.subr.bf16.mxu0 %v4132
    %4534 = vmatpush1.bf16.msra.mxu0 %v4131
    %4535 = vmatprep.mubr.bf16.mxu0 %v3250
    %4536 = vmatmul.mubr.bf16.gmra.mrb[0].mxu0 %v3249
    %v4537 = vpop.f32.mrb[0].mxu0
    %v4538 = vadd.f32 %v4497, %v4537
    %v4539 = vpop.f32.mrb[0].mxu0
    %v4540 = vadd.f32 %v4499, %v4539
    %v4541 = vpop.f32.mrb[0].mxu0
    %v4542 = vpop.f32.mrb[0].mxu0
    %4543 = vdwg.mxu0
    %4544 = vmatprep.subr.bf16.mxu0 %v4134
    %4545 = vmatpush1.bf16.msra.mxu0 %v4133
    %4546 = vmatprep.subr.bf16.mxu0 %v4136
    %4547 = vmatpush1.bf16.msra.mxu0 %v4135
    %4548 = vmatprep.subr.bf16.mxu0 %v4138
    %4549 = vmatpush1.bf16.msra.mxu0 %v4137
    %4550 = vmatprep.subr.bf16.mxu0 %v4140
    %4551 = vmatpush1.bf16.msra.mxu0 %v4139
    %4552 = vmatprep.subr.bf16.mxu0 %v4142
    %4553 = vmatpush1.bf16.msra.mxu0 %v4141
    %4554 = vmatprep.subr.bf16.mxu0 %v4144
    %4555 = vmatpush1.bf16.msra.mxu0 %v4143
    %4556 = vmatprep.subr.bf16.mxu0 %v4146
    %4557 = vmatpush1.bf16.msra.mxu0 %v4145
    %4558 = vmatprep.subr.bf16.mxu0 %v4148
    %4559 = vmatpush1.bf16.msra.mxu0 %v4147
    %4560 = vmatprep.subr.bf16.mxu0 %v4150
    %4561 = vmatpush1.bf16.msra.mxu0 %v4149
    %4562 = vmatprep.subr.bf16.mxu0 %v4152
    %4563 = vmatpush1.bf16.msra.mxu0 %v4151
    %4564 = vmatprep.subr.bf16.mxu0 %v4154
    %4565 = vmatpush1.bf16.msra.mxu0 %v4153
    %4566 = vmatprep.subr.bf16.mxu0 %v4156
    %4567 = vmatpush1.bf16.msra.mxu0 %v4155
    %4568 = vmatprep.subr.bf16.mxu0 %v4158
    %4569 = vmatpush1.bf16.msra.mxu0 %v4157
    %4570 = vmatprep.subr.bf16.mxu0 %v4160
    %4571 = vmatpush1.bf16.msra.mxu0 %v4159
    %4572 = vmatprep.subr.bf16.mxu0 %v4162
    %4573 = vmatpush1.bf16.msra.mxu0 %v4161
    %4574 = vmatprep.subr.bf16.mxu0 %v4164
    %4575 = vmatpush1.bf16.msra.mxu0 %v4163
    %4576 = vmatprep.mubr.bf16.mxu0 %v3252
    %4577 = vmatmul.mubr.bf16.gmra.mrb[0].mxu0 %v3251
    %v4578 = vpop.f32.mrb[0].mxu0
    %v4579 = vadd.f32 %v4538, %v4578
    %v4580 = vpop.f32.mrb[0].mxu0
    %v4581 = vadd.f32 %v4540, %v4580
    %v4582 = vpop.f32.mrb[0].mxu0
    %v4583 = vpop.f32.mrb[0].mxu0
    %4584 = vdwg.mxu0
    %4585 = vmatprep.subr.bf16.mxu0 %v4166
    %4586 = vmatpush1.bf16.msra.mxu0 %v4165
    %4587 = vmatprep.subr.bf16.mxu0 %v4168
    %4588 = vmatpush1.bf16.msra.mxu0 %v4167
    %4589 = vmatprep.subr.bf16.mxu0 %v4170
    %4590 = vmatpush1.bf16.msra.mxu0 %v4169
    %4591 = vmatprep.subr.bf16.mxu0 %v4172
    %4592 = vmatpush1.bf16.msra.mxu0 %v4171
    %4593 = vmatprep.subr.bf16.mxu0 %v4174
    %4594 = vmatpush1.bf16.msra.mxu0 %v4173
    %4595 = vmatprep.subr.bf16.mxu0 %v4176
    %4596 = vmatpush1.bf16.msra.mxu0 %v4175
    %4597 = vmatprep.subr.bf16.mxu0 %v4178
    %4598 = vmatpush1.bf16.msra.mxu0 %v4177
    %4599 = vmatprep.subr.bf16.mxu0 %v4180
    %4600 = vmatpush1.bf16.msra.mxu0 %v4179
    %4601 = vmatprep.subr.bf16.mxu0 %v4182
    %4602 = vmatpush1.bf16.msra.mxu0 %v4181
    %4603 = vmatprep.subr.bf16.mxu0 %v4184
    %4604 = vmatpush1.bf16.msra.mxu0 %v4183
    %4605 = vmatprep.subr.bf16.mxu0 %v4186
    %4606 = vmatpush1.bf16.msra.mxu0 %v4185
    %4607 = vmatprep.subr.bf16.mxu0 %v4188
    %4608 = vmatpush1.bf16.msra.mxu0 %v4187
    %4609 = vmatprep.subr.bf16.mxu0 %v4190
    %4610 = vmatpush1.bf16.msra.mxu0 %v4189
    %4611 = vmatprep.subr.bf16.mxu0 %v4192
    %4612 = vmatpush1.bf16.msra.mxu0 %v4191
    %4613 = vmatprep.subr.bf16.mxu0 %v4194
    %4614 = vmatpush1.bf16.msra.mxu0 %v4193
    %4615 = vmatprep.subr.bf16.mxu0 %v4196
    %4616 = vmatpush1.bf16.msra.mxu0 %v4195
    %4617 = vmatprep.mubr.bf16.mxu0 %v3254
    %4618 = vmatmul.mubr.bf16.gmra.mrb[0].mxu0 %v3253
    %v4619 = vpop.f32.mrb[0].mxu0
    %v4620 = vadd.f32 %v4579, %v4619
    %v4621 = vpop.f32.mrb[0].mxu0
    %v4622 = vadd.f32 %v4581, %v4621
    %v4623 = vpop.f32.mrb[0].mxu0
    %v4624 = vpop.f32.mrb[0].mxu0
    %4625 = vdwg.mxu0
    %4626 = vmatprep.subr.bf16.mxu0 %v4198
    %4627 = vmatpush1.bf16.msra.mxu0 %v4197
    %4628 = vmatprep.subr.bf16.mxu0 %v4200
    %4629 = vmatpush1.bf16.msra.mxu0 %v4199
    %4630 = vmatprep.subr.bf16.mxu0 %v4202
    %4631 = vmatpush1.bf16.msra.mxu0 %v4201
    %4632 = vmatprep.subr.bf16.mxu0 %v4204
    %4633 = vmatpush1.bf16.msra.mxu0 %v4203
    %4634 = vmatprep.subr.bf16.mxu0 %v4206
    %4635 = vmatpush1.bf16.msra.mxu0 %v4205
    %4636 = vmatprep.subr.bf16.mxu0 %v4208
    %4637 = vmatpush1.bf16.msra.mxu0 %v4207
    %4638 = vmatprep.subr.bf16.mxu0 %v4210
    %4639 = vmatpush1.bf16.msra.mxu0 %v4209
    %4640 = vmatprep.subr.bf16.mxu0 %v4212
    %4641 = vmatpush1.bf16.msra.mxu0 %v4211
    %4642 = vmatprep.subr.bf16.mxu0 %v4214
    %4643 = vmatpush1.bf16.msra.mxu0 %v4213
    %4644 = vmatprep.subr.bf16.mxu0 %v4216
    %4645 = vmatpush1.bf16.msra.mxu0 %v4215
    %4646 = vmatprep.subr.bf16.mxu0 %v4218
    %4647 = vmatpush1.bf16.msra.mxu0 %v4217
    %4648 = vmatprep.subr.bf16.mxu0 %v4220
    %4649 = vmatpush1.bf16.msra.mxu0 %v4219
    %4650 = vmatprep.subr.bf16.mxu0 %v4222
    %4651 = vmatpush1.bf16.msra.mxu0 %v4221
    %4652 = vmatprep.subr.bf16.mxu0 %v4224
    %4653 = vmatpush1.bf16.msra.mxu0 %v4223
    %4654 = vmatprep.subr.bf16.mxu0 %v4226
    %4655 = vmatpush1.bf16.msra.mxu0 %v4225
    %4656 = vmatprep.subr.bf16.mxu0 %v4228
    %4657 = vmatpush1.bf16.msra.mxu0 %v4227
    %4658 = vmatprep.mubr.bf16.mxu0 %v3256
    %4659 = vmatmul.mubr.bf16.gmra.mrb[0].mxu0 %v3255
    %v4660 = vpop.f32.mrb[0].mxu0
    %v4661 = vadd.f32 %v4620, %v4660
    %v4662 = vpop.f32.mrb[0].mxu0
    %v4663 = vadd.f32 %v4622, %v4662
    %v4664 = vpop.f32.mrb[0].mxu0
    %v4665 = vpop.f32.mrb[0].mxu0
    %4666 = vdwg.mxu0
    %4667 = vst [vmem:[#allocation13] sm:$0xff] %v4661
    %4668 = vst [vmem:[#allocation13 + $0x8] sm:$0xff] %v4663
    // Predicated region
    $region62: #{tpu_custom_call.1} parent=1 // pred_check
      _
    $region63: #{tpu_custom_call.1} parent=1 // pred_check_branch
      %4670 = sbr.rel (0) target = $region65
    $region64: #{tpu_custom_call.1} parent=1 // pred_region
      %s4672 = ssub.s32 256, 256
      %4673 = vsyncadd [#allocation4], %s4672
      %s4675 = sshll.u32 [#allocation13], 4
      %s4676 = int_to_ptr.vmem [resolvable:$true] %s4675
      %4678 = dma.vmem_to_hbm [thread:$0]  %s4676, 256, %s9, [#allocation4]
    $region65: #{tpu_custom_call.1} parent=1 // pred_fallthru
      _
    // Predicated region
    $region66: #{tpu_custom_call.1} parent=1 // pred_check
      _
    $region67: #{tpu_custom_call.1} parent=1 // pred_check_branch
      %4680 = sbr.rel (0) target = $region69
    $region68: #{tpu_custom_call.1} parent=1 // pred_region
      %4681 = dma.done [#allocation4], 256
    $region69: #{tpu_custom_call.1} parent=1 // pred_fallthru
      _
    %4682 = vsyncpa [#allocation3], 1
    %4683 = vsyncpa [#allocation6], 1
    %4684 = vsyncpa [#allocation9], 1
    %4685 = vsyncpa [#allocation12], 1
    %4686 = vsyncpa [#allocation4], 1

</llo_original>
